<compile_context>
chip_gen: v7x
topology: tpu7x:2x2x1
jax: 0.10.0
libtpu: 0.0.40
codegen_flags: <defaults>
</compile_context>

<pallas_src>
import functools

import jax
import jax.numpy as jnp
from jax.experimental import pallas as pl
from jax.experimental.pallas import tpu as pltpu

F32 = jnp.float32

# Order in which packed weights/biases are passed to the kernel.
_PACK_ORDER = (
    "w_obs", "we2", "we3", "w_h", "w_act", "w_enc", "wp2", "wq2", "w_z", "w_hn",
    "wd2", "wd3",
    "be1", "be2", "be3", "bp1", "bq1", "bp2", "bq2", "b_ih", "b_hh",
    "bd1", "bd2", "bd3",
)


# ----------------------------------------------------------------------------
# Kernel factory: fused RSSM forward on one [TILE_B, :] batch tile.
# ----------------------------------------------------------------------------
def make_rssm_kernel(obs_dim, act_dim, z_dim, h_dim, tile_b, out_pad):
    dq = (h_dim + 2 * z_dim) // 2       # sampled-z width in forward()
    h3 = 3 * h_dim

    def kernel(obs_ref, act_ref, h_ref, eps_ref,
               w_obs, we2, we3, w_h, w_act, w_enc, wp2, wq2, w_z, w_hn, wd2, wd3,
               be1, be2, be3, bp1, bq1, bp2, bq2, b_ih, b_hh, bd1, bd2, bd3,
               out_ref):
        def mm(x, w_ref):
            w = w_ref[...]
            # cast activations to the weight dtype (f32 or bf16); accumulate f32.
            return jnp.dot(x.astype(w.dtype), w, preferred_element_type=F32)

        relu = lambda x: jnp.maximum(x, 0.0)

        obs = obs_ref[...]
        act = act_ref[...]
        h = h_ref[...]
        eps = eps_ref[...]

        # --- fused shared-LHS matmuls (one MXU pass per LHS) -----------------
        obs_f = mm(obs, w_obs)    # [B, 512]      = [enc layer1 | posterior obs slab]
        h_f = mm(h, w_h)          # [B, 512+3h]   = [prior h | posterior h | GRU gh]
        act_f = mm(act, w_act)    # [B, 256+3h]   = [posterior act | GRU gi(act)]

        # --- encoder: obs -> 256 -> 256 -> 2z (only the mean half is used) ---
        e1 = relu(obs_f[:, :256] + be1[...])
        e2 = relu(mm(e1, we2) + be2[...])
        enc = mm(e2, we3) + be3[...]
        enc_mean = enc[:, :z_dim]

        # --- prior: [h, enc_mean] -> 256 -> (h+z), chunk mean/logvar ---------
        p1 = relu(h_f[:, :256] + mm(enc_mean, w_enc) + bp1[...])
        prior = mm(p1, wp2) + bp2[...]                  # [B, 2*dpz]

        # --- posterior: [h, obs, act] -> 256 -> (h+2z), chunk ----------------
        q1 = relu(h_f[:, 256:512] + obs_f[:, 256:] + act_f[:, :256] + bq1[...])
        post = mm(q1, wq2) + bq2[...]                   # [B, 2*dq]
        post_mean = post[:, :dq]
        post_logvar = post[:, dq:]

        # --- reparameterize (f32 epilogue) -----------------------------------
        z = post_mean + eps * jnp.exp(0.5 * post_logvar)

        # fused z matmul: [decoder z slab | GRU gi(z)]
        z_f = mm(z, w_z)                                # [B, 256+3h]

        # --- GRU cell (PyTorch GRUCell semantics), gate order (r, z, n) ------
        gi = z_f[:, 256:] + act_f[:, 256:] + b_ih[...]  # [B, 3h]
        gh = h_f[:, 512:] + b_hh[...]                   # [B, 3h]
        r = jax.nn.sigmoid(gi[:, :h_dim] + gh[:, :h_dim])
        zg = jax.nn.sigmoid(gi[:, h_dim:2 * h_dim] + gh[:, h_dim:2 * h_dim])
        n = jnp.tanh(gi[:, 2 * h_dim:] + r * gh[:, 2 * h_dim:])
        h_next = (1.0 - zg) * n + zg * h

        # --- decoder: [h_next, z] -> 256 -> 256 -> obs_dim --------------------
        d1 = relu(mm(h_next, w_hn) + z_f[:, :256] + bd1[...])
        d2 = relu(mm(d1, wd2) + bd2[...])
        dec = mm(d2, wd3) + bd3[...]

        # --- single lane-dense fused output -----------------------------------
        pieces = [prior, post, z, h_next, dec]
        if out_pad:
            pieces.append(jnp.zeros((tile_b, out_pad), F32))
        out_ref[...] = jnp.concatenate(pieces, axis=-1)

    return kernel


# ----------------------------------------------------------------------------
# Parameter init (deterministic, PyTorch-default-style uniform init).
# ----------------------------------------------------------------------------
def _linear_init(key, fan_in, fan_out):
    k1, k2 = jax.random.split(key)
    bound = 1.0 / float(fan_in) ** 0.5
    w = jax.random.uniform(k1, (fan_in, fan_out), F32, -bound, bound)
    b = jax.random.uniform(k2, (fan_out,), F32, -bound, bound)
    return w, b


def init_rssm_params(key, obs_dim, act_dim, z_dim, h_dim):
    dq = (h_dim + 2 * z_dim) // 2
    gru_in = dq + act_dim
    dec_in = h_dim + dq

    ks = jax.random.split(key, 16)
    p = {}
    p["we1"], p["be1"] = _linear_init(ks[0], obs_dim, 256)
    p["we2"], p["be2"] = _linear_init(ks[1], 256, 256)
    p["we3"], p["be3"] = _linear_init(ks[2], 256, 2 * z_dim)
    p["wp1"], p["bp1"] = _linear_init(ks[3], h_dim + z_dim, 256)
    p["wp2"], p["bp2"] = _linear_init(ks[4], 256, h_dim + z_dim)
    p["wq1"], p["bq1"] = _linear_init(ks[5], h_dim + obs_dim + act_dim, 256)
    p["wq2"], p["bq2"] = _linear_init(ks[6], 256, h_dim + 2 * z_dim)
    p["wd1"], p["bd1"] = _linear_init(ks[7], dec_in, 256)
    p["wd2"], p["bd2"] = _linear_init(ks[8], 256, 256)
    p["wd3"], p["bd3"] = _linear_init(ks[9], 256, obs_dim)
    gb = 1.0 / float(h_dim) ** 0.5
    p["w_ih"] = jax.random.uniform(ks[10], (gru_in, 3 * h_dim), F32, -gb, gb)
    p["w_hh"] = jax.random.uniform(ks[11], (h_dim, 3 * h_dim), F32, -gb, gb)
    p["b_ih"] = jax.random.uniform(ks[12], (3 * h_dim,), F32, -gb, gb)
    p["b_hh"] = jax.random.uniform(ks[13], (3 * h_dim,), F32, -gb, gb)
    return p


# ----------------------------------------------------------------------------
# One-time weight packing (done at parameter-prep time, NOT per forward call).
# Matmuls that share an LHS are fused along the output (lane) axis.
# ----------------------------------------------------------------------------
def pack_rssm_params(p, *, obs_dim, act_dim, z_dim, h_dim, weight_dtype=F32):
    dq = (h_dim + 2 * z_dim) // 2
    row = lambda b: b.reshape(1, -1).astype(F32)      # biases stay f32 (epilogue)
    wd = lambda w: w.astype(weight_dtype)             # set bf16 on v6e/v7x if desired
    wp1, wq1, wd1 = p["wp1"], p["wq1"], p["wd1"]
    wih, whh = p["w_ih"], p["w_hh"]
    return {
        # obs -> [encoder L1 (256) | posterior obs slab (256)]
        "w_obs": wd(jnp.concatenate([p["we1"], wq1[h_dim:h_dim + obs_dim]], axis=1)),
        "we2": wd(p["we2"]),
        "we3": wd(p["we3"]),
        # h -> [prior h slab (256) | posterior h slab (256) | GRU hidden (3h)]
        "w_h": wd(jnp.concatenate([wp1[:h_dim], wq1[:h_dim], whh], axis=1)),
        # act -> [posterior act slab (256) | GRU input act slab (3h)]
        "w_act": wd(jnp.concatenate([wq1[h_dim + obs_dim:], wih[dq:]], axis=1)),
        # enc_mean -> prior z slab
        "w_enc": wd(wp1[h_dim:]),
        "wp2": wd(p["wp2"]),
        "wq2": wd(p["wq2"]),
        # z -> [decoder z slab (256) | GRU input z slab (3h)]
        "w_z": wd(jnp.concatenate([wd1[h_dim:], wih[:dq]], axis=1)),
        # h_next -> decoder h slab
        "w_hn": wd(wd1[:h_dim]),
        "wd2": wd(p["wd2"]),
        "wd3": wd(p["wd3"]),
        "be1": row(p["be1"]), "be2": row(p["be2"]), "be3": row(p["be3"]),
        "bp1": row(p["bp1"]), "bq1": row(p["bq1"]),
        "bp2": row(p["bp2"]), "bq2": row(p["bq2"]),
        "b_ih": row(p["b_ih"]), "b_hh": row(p["b_hh"]),
        "bd1": row(p["bd1"]), "bd2": row(p["bd2"]), "bd3": row(p["bd3"]),
    }


# ----------------------------------------------------------------------------
# Forward wrapper: batch-tiled grid, weights VMEM-resident, fused output.
# ----------------------------------------------------------------------------
@functools.partial(
    jax.jit, static_argnames=("obs_dim", "act_dim", "z_dim", "h_dim", "tile_b"))
def rssm_forward(packed, obs, act, hidden, eps, *,
                 obs_dim, act_dim, z_dim, h_dim, tile_b=128):
    B = obs.shape[0]
    dq = (h_dim + 2 * z_dim) // 2
    dpz = (h_dim + z_dim) // 2

    tile_b = min(tile_b, B)
    assert B % tile_b == 0, "batch must be a multiple of the batch tile"
    nb = B // tile_b

    total = 2 * dpz + 2 * dq + dq + h_dim + obs_dim
    out_w = ((total + 127) // 128) * 128        # lane-dense fused output width
    out_pad = out_w - total

    kernel = make_rssm_kernel(obs_dim, act_dim, z_dim, h_dim, tile_b, out_pad)

    weight_args = [packed[k] for k in _PACK_ORDER]

    def batch_spec(feat):
        return pl.BlockSpec((tile_b, feat), lambda i: (i, 0))

    def const_spec(arr):
        # full-array block + constant index_map: stays VMEM-resident across steps
        return pl.BlockSpec(arr.shape, lambda i: (0, 0))

    in_specs = [batch_spec(obs_dim), batch_spec(act_dim),
                batch_spec(h_dim), batch_spec(dq)]
    in_specs += [const_spec(a) for a in weight_args]

    fused = pl.pallas_call(
        kernel,
        out_shape=jax.ShapeDtypeStruct((B, out_w), F32),
        grid=(nb,),
        in_specs=in_specs,
        out_specs=pl.BlockSpec((tile_b, out_w), lambda i: (i, 0)),
        compiler_params=pltpu.CompilerParams(
            dimension_semantics=("parallel",),        # megacore-shards batch tiles
            vmem_limit_bytes=32 * 1024 * 1024,        # explicit (v7x-safe) budget
        ),
    )(obs, act, hidden, eps, *weight_args)

    # Slice the fused lane-dense output apart (cheap host-side glue).
    o = [0]
    def take(w):
        s = fused[:, o[0]:o[0] + w]
        o[0] += w
        return s
    prior_mean = take(dpz)
    prior_logvar = take(dpz)
    post_mean = take(dq)
    post_logvar = take(dq)
    z = take(dq)
    h_next = take(h_dim)
    obs_dec = take(obs_dim)
    return prior_mean, prior_logvar, post_mean, post_logvar, z, h_next, obs_dec


# ----------------------------------------------------------------------------
# Pure-JAX reference (same math, XLA only) for a correctness check.
# ----------------------------------------------------------------------------
def rssm_reference(params, obs, act, hidden, eps, *, obs_dim, act_dim, z_dim, h_dim):
    p = params
    relu = lambda x: jnp.maximum(x, 0.0)

    e = relu(obs @ p["we1"] + p["be1"])
    e = relu(e @ p["we2"] + p["be2"])
    enc = e @ p["we3"] + p["be3"]
    enc_mean = enc[:, :z_dim]

    pin = jnp.concatenate([hidden, enc_mean], axis=-1)
    po = relu(pin @ p["wp1"] + p["bp1"]) @ p["wp2"] + p["bp2"]
    prior_mean, prior_logvar = jnp.split(po, 2, axis=-1)

    qin = jnp.concatenate([hidden, obs, act], axis=-1)
    qo = relu(qin @ p["wq1"] + p["bq1"]) @ p["wq2"] + p["bq2"]
    post_mean, post_logvar = jnp.split(qo, 2, axis=-1)

    z = post_mean + eps * jnp.exp(0.5 * post_logvar)

    x = jnp.concatenate([z, act], axis=-1)
    gi = x @ p["w_ih"] + p["b_ih"]
    gh = hidden @ p["w_hh"] + p["b_hh"]
    ir, iz, in_ = jnp.split(gi, 3, axis=-1)
    hr, hz, hn = jnp.split(gh, 3, axis=-1)
    r = jax.nn.sigmoid(ir + hr)
    zg = jax.nn.sigmoid(iz + hz)
    n = jnp.tanh(in_ + r * hn)
    h_next = (1.0 - zg) * n + zg * hidden

    din = jnp.concatenate([h_next, z], axis=-1)
    d = relu(din @ p["wd1"] + p["bd1"])
    d = relu(d @ p["wd2"] + p["bd2"])
    obs_dec = d @ p["wd3"] + p["bd3"]
    return prior_mean, prior_logvar, post_mean, post_logvar, z, h_next, obs_dec


if __name__ == "__main__":
    # Small model dims; batch sized to exercise the grid (2 tiles of 128).
    B, OBS, ACT, ZDIM, HDIM = 256, 16, 4, 8, 24
    TILE_B = 128
    DQ = (HDIM + 2 * ZDIM) // 2

    key = jax.random.PRNGKey(0)
    kp, ko, ka, kh, ke = jax.random.split(key, 5)

    params = init_rssm_params(kp, OBS, ACT, ZDIM, HDIM)
    packed = pack_rssm_params(params, obs_dim=OBS, act_dim=ACT,
                              z_dim=ZDIM, h_dim=HDIM, weight_dtype=F32)

    obs = jax.random.normal(ko, (B, OBS), F32)
    act = jax.random.normal(ka, (B, ACT), F32)
    hidden = jax.random.normal(kh, (B, HDIM), F32)
    eps = jax.random.normal(ke, (B, DQ), F32)   # torch.randn_like equivalent

    kw = dict(obs_dim=OBS, act_dim=ACT, z_dim=ZDIM, h_dim=HDIM)
    outs = rssm_forward(packed, obs, act, hidden, eps, tile_b=TILE_B, **kw)
    outs = jax.block_until_ready(outs)

    refs = rssm_reference(params, obs, act, hidden, eps, **kw)
    names = ["prior_mean", "prior_logvar", "post_mean", "post_logvar",
             "z", "next_hidden", "obs_dec"]
    for name, o, r in zip(names, outs, refs):
        assert o.shape == r.shape, (name, o.shape, r.shape)
        assert jnp.allclose(o, r, rtol=1e-3, atol=1e-3), name

    print("KERNEL_OK")
</pallas_src>

<mosaic_0001>
module attributes {stable_mosaic.version = 11 : i64} {
  func.func @kernel(%arg0: i32, %arg1: memref<128x16xf32, #tpu.memory_space<vmem>>, %arg2: memref<128x4xf32, #tpu.memory_space<vmem>>, %arg3: memref<128x24xf32, #tpu.memory_space<vmem>>, %arg4: memref<128x20xf32, #tpu.memory_space<vmem>>, %arg5: memref<16x512xf32, #tpu.memory_space<vmem>>, %arg6: memref<256x256xf32, #tpu.memory_space<vmem>>, %arg7: memref<256x16xf32, #tpu.memory_space<vmem>>, %arg8: memref<24x584xf32, #tpu.memory_space<vmem>>, %arg9: memref<4x328xf32, #tpu.memory_space<vmem>>, %arg10: memref<8x256xf32, #tpu.memory_space<vmem>>, %arg11: memref<256x32xf32, #tpu.memory_space<vmem>>, %arg12: memref<256x40xf32, #tpu.memory_space<vmem>>, %arg13: memref<20x328xf32, #tpu.memory_space<vmem>>, %arg14: memref<24x256xf32, #tpu.memory_space<vmem>>, %arg15: memref<256x256xf32, #tpu.memory_space<vmem>>, %arg16: memref<256x16xf32, #tpu.memory_space<vmem>>, %arg17: memref<1x256xf32, #tpu.memory_space<vmem>>, %arg18: memref<1x256xf32, #tpu.memory_space<vmem>>, %arg19: memref<1x16xf32, #tpu.memory_space<vmem>>, %arg20: memref<1x256xf32, #tpu.memory_space<vmem>>, %arg21: memref<1x256xf32, #tpu.memory_space<vmem>>, %arg22: memref<1x32xf32, #tpu.memory_space<vmem>>, %arg23: memref<1x40xf32, #tpu.memory_space<vmem>>, %arg24: memref<1x72xf32, #tpu.memory_space<vmem>>, %arg25: memref<1x72xf32, #tpu.memory_space<vmem>>, %arg26: memref<1x256xf32, #tpu.memory_space<vmem>>, %arg27: memref<1x256xf32, #tpu.memory_space<vmem>>, %arg28: memref<1x16xf32, #tpu.memory_space<vmem>>, %arg29: memref<128x256xf32, #tpu.memory_space<vmem>>) attributes {dimension_semantics = [#tpu.dimension_semantics<parallel>], iteration_bounds = array<i64: 2>, scalar_prefetch = 0 : i64, scratch_operands = 0 : i64, tpu.core_type = #tpu.core_type<tc>, window_params = [{transform_indices = @transform_0, window_bounds = array<i64: 128, 16>}, {transform_indices = @transform_1, window_bounds = array<i64: 128, 4>}, {transform_indices = @transform_2, window_bounds = array<i64: 128, 24>}, {transform_indices = @transform_3, window_bounds = array<i64: 128, 20>}, {pipeline_mode = #tpu.pipeline_mode<synchronous>, transform_indices = @transform_4, window_bounds = array<i64: 16, 512>}, {pipeline_mode = #tpu.pipeline_mode<synchronous>, transform_indices = @transform_5, window_bounds = array<i64: 256, 256>}, {pipeline_mode = #tpu.pipeline_mode<synchronous>, transform_indices = @transform_6, window_bounds = array<i64: 256, 16>}, {pipeline_mode = #tpu.pipeline_mode<synchronous>, transform_indices = @transform_7, window_bounds = array<i64: 24, 584>}, {pipeline_mode = #tpu.pipeline_mode<synchronous>, transform_indices = @transform_8, window_bounds = array<i64: 4, 328>}, {pipeline_mode = #tpu.pipeline_mode<synchronous>, transform_indices = @transform_9, window_bounds = array<i64: 8, 256>}, {pipeline_mode = #tpu.pipeline_mode<synchronous>, transform_indices = @transform_10, window_bounds = array<i64: 256, 32>}, {pipeline_mode = #tpu.pipeline_mode<synchronous>, transform_indices = @transform_11, window_bounds = array<i64: 256, 40>}, {pipeline_mode = #tpu.pipeline_mode<synchronous>, transform_indices = @transform_12, window_bounds = array<i64: 20, 328>}, {pipeline_mode = #tpu.pipeline_mode<synchronous>, transform_indices = @transform_13, window_bounds = array<i64: 24, 256>}, {pipeline_mode = #tpu.pipeline_mode<synchronous>, transform_indices = @transform_14, window_bounds = array<i64: 256, 256>}, {pipeline_mode = #tpu.pipeline_mode<synchronous>, transform_indices = @transform_15, window_bounds = array<i64: 256, 16>}, {pipeline_mode = #tpu.pipeline_mode<synchronous>, transform_indices = @transform_16, window_bounds = array<i64: 1, 256>}, {pipeline_mode = #tpu.pipeline_mode<synchronous>, transform_indices = @transform_17, window_bounds = array<i64: 1, 256>}, {pipeline_mode = #tpu.pipeline_mode<synchronous>, transform_indices = @transform_18, window_bounds = array<i64: 1, 16>}, {pipeline_mode = #tpu.pipeline_mode<synchronous>, transform_indices = @transform_19, window_bounds = array<i64: 1, 256>}, {pipeline_mode = #tpu.pipeline_mode<synchronous>, transform_indices = @transform_20, window_bounds = array<i64: 1, 256>}, {pipeline_mode = #tpu.pipeline_mode<synchronous>, transform_indices = @transform_21, window_bounds = array<i64: 1, 32>}, {pipeline_mode = #tpu.pipeline_mode<synchronous>, transform_indices = @transform_22, window_bounds = array<i64: 1, 40>}, {pipeline_mode = #tpu.pipeline_mode<synchronous>, transform_indices = @transform_23, window_bounds = array<i64: 1, 72>}, {pipeline_mode = #tpu.pipeline_mode<synchronous>, transform_indices = @transform_24, window_bounds = array<i64: 1, 72>}, {pipeline_mode = #tpu.pipeline_mode<synchronous>, transform_indices = @transform_25, window_bounds = array<i64: 1, 256>}, {pipeline_mode = #tpu.pipeline_mode<synchronous>, transform_indices = @transform_26, window_bounds = array<i64: 1, 256>}, {pipeline_mode = #tpu.pipeline_mode<synchronous>, transform_indices = @transform_27, window_bounds = array<i64: 1, 16>}, {transform_indices = @transform_28, window_bounds = array<i64: 128, 256>}]} {
    %c0 = arith.constant 0 : index
    %c0_0 = arith.constant 0 : index
    %0 = vector.load %arg1[%c0, %c0_0] : memref<128x16xf32, #tpu.memory_space<vmem>>, vector<128x16xf32>
    %c0_1 = arith.constant 0 : index
    %c0_2 = arith.constant 0 : index
    %1 = vector.load %arg2[%c0_1, %c0_2] : memref<128x4xf32, #tpu.memory_space<vmem>>, vector<128x4xf32>
    %c0_3 = arith.constant 0 : index
    %c0_4 = arith.constant 0 : index
    %2 = vector.load %arg3[%c0_3, %c0_4] : memref<128x24xf32, #tpu.memory_space<vmem>>, vector<128x24xf32>
    %c0_5 = arith.constant 0 : index
    %c0_6 = arith.constant 0 : index
    %3 = vector.load %arg4[%c0_5, %c0_6] : memref<128x20xf32, #tpu.memory_space<vmem>>, vector<128x20xf32>
    %c0_7 = arith.constant 0 : index
    %c0_8 = arith.constant 0 : index
    %4 = vector.load %arg5[%c0_7, %c0_8] : memref<16x512xf32, #tpu.memory_space<vmem>>, vector<16x512xf32>
    %cst = arith.constant dense<0.000000e+00> : vector<128x512xf32>
    %5 = tpu.matmul %0, %4, %cst {dimension_numbers = #tpu.dot_dimension_numbers<[1], [0], [0], [1], [0, 0, 1, 1], [], []>} : vector<128x16xf32>, vector<16x512xf32>, vector<128x512xf32> -> vector<128x512xf32>
    %c0_9 = arith.constant 0 : index
    %c0_10 = arith.constant 0 : index
    %6 = vector.load %arg8[%c0_9, %c0_10] : memref<24x584xf32, #tpu.memory_space<vmem>>, vector<24x584xf32>
    %cst_11 = arith.constant dense<0.000000e+00> : vector<128x584xf32>
    %7 = tpu.matmul %2, %6, %cst_11 {dimension_numbers = #tpu.dot_dimension_numbers<[1], [0], [0], [1], [0, 0, 1, 1], [], []>} : vector<128x24xf32>, vector<24x584xf32>, vector<128x584xf32> -> vector<128x584xf32>
    %c0_12 = arith.constant 0 : index
    %c0_13 = arith.constant 0 : index
    %8 = vector.load %arg9[%c0_12, %c0_13] : memref<4x328xf32, #tpu.memory_space<vmem>>, vector<4x328xf32>
    %cst_14 = arith.constant dense<0.000000e+00> : vector<128x328xf32>
    %9 = tpu.matmul %1, %8, %cst_14 {dimension_numbers = #tpu.dot_dimension_numbers<[1], [0], [0], [1], [0, 0, 1, 1], [], []>} : vector<128x4xf32>, vector<4x328xf32>, vector<128x328xf32> -> vector<128x328xf32>
    %10 = vector.extract_strided_slice %5 {offsets = [0, 0], sizes = [128, 256], strides = [1, 1]} : vector<128x512xf32> to vector<128x256xf32>
    %c0_15 = arith.constant 0 : index
    %c0_16 = arith.constant 0 : index
    %11 = vector.load %arg17[%c0_15, %c0_16] : memref<1x256xf32, #tpu.memory_space<vmem>>, vector<1x256xf32>
    %12 = vector.broadcast %11 : vector<1x256xf32> to vector<128x256xf32>
    %13 = arith.addf %10, %12 : vector<128x256xf32>
    %cst_17 = arith.constant 0.000000e+00 : f32
    %14 = vector.broadcast %cst_17 : f32 to vector<128x256xf32>
    %15 = arith.maximumf %13, %14 : vector<128x256xf32>
    %c0_18 = arith.constant 0 : index
    %c0_19 = arith.constant 0 : index
    %16 = vector.load %arg6[%c0_18, %c0_19] : memref<256x256xf32, #tpu.memory_space<vmem>>, vector<256x256xf32>
    %cst_20 = arith.constant dense<0.000000e+00> : vector<128x256xf32>
    %17 = tpu.matmul %15, %16, %cst_20 {dimension_numbers = #tpu.dot_dimension_numbers<[1], [0], [0], [1], [0, 0, 1, 1], [], []>} : vector<128x256xf32>, vector<256x256xf32>, vector<128x256xf32> -> vector<128x256xf32>
    %c0_21 = arith.constant 0 : index
    %c0_22 = arith.constant 0 : index
    %18 = vector.load %arg18[%c0_21, %c0_22] : memref<1x256xf32, #tpu.memory_space<vmem>>, vector<1x256xf32>
    %19 = vector.broadcast %18 : vector<1x256xf32> to vector<128x256xf32>
    %20 = arith.addf %17, %19 : vector<128x256xf32>
    %cst_23 = arith.constant 0.000000e+00 : f32
    %21 = vector.broadcast %cst_23 : f32 to vector<128x256xf32>
    %22 = arith.maximumf %20, %21 : vector<128x256xf32>
    %c0_24 = arith.constant 0 : index
    %c0_25 = arith.constant 0 : index
    %23 = vector.load %arg7[%c0_24, %c0_25] : memref<256x16xf32, #tpu.memory_space<vmem>>, vector<256x16xf32>
    %cst_26 = arith.constant dense<0.000000e+00> : vector<128x16xf32>
    %24 = tpu.matmul %22, %23, %cst_26 {dimension_numbers = #tpu.dot_dimension_numbers<[1], [0], [0], [1], [0, 0, 1, 1], [], []>} : vector<128x256xf32>, vector<256x16xf32>, vector<128x16xf32> -> vector<128x16xf32>
    %c0_27 = arith.constant 0 : index
    %c0_28 = arith.constant 0 : index
    %25 = vector.load %arg19[%c0_27, %c0_28] : memref<1x16xf32, #tpu.memory_space<vmem>>, vector<1x16xf32>
    %26 = vector.broadcast %25 : vector<1x16xf32> to vector<128x16xf32>
    %27 = arith.addf %24, %26 : vector<128x16xf32>
    %28 = vector.extract_strided_slice %27 {offsets = [0, 0], sizes = [128, 8], strides = [1, 1]} : vector<128x16xf32> to vector<128x8xf32>
    %29 = vector.extract_strided_slice %7 {offsets = [0, 0], sizes = [128, 256], strides = [1, 1]} : vector<128x584xf32> to vector<128x256xf32>
    %c0_29 = arith.constant 0 : index
    %c0_30 = arith.constant 0 : index
    %30 = vector.load %arg10[%c0_29, %c0_30] : memref<8x256xf32, #tpu.memory_space<vmem>>, vector<8x256xf32>
    %cst_31 = arith.constant dense<0.000000e+00> : vector<128x256xf32>
    %31 = tpu.matmul %28, %30, %cst_31 {dimension_numbers = #tpu.dot_dimension_numbers<[1], [0], [0], [1], [0, 0, 1, 1], [], []>} : vector<128x8xf32>, vector<8x256xf32>, vector<128x256xf32> -> vector<128x256xf32>
    %32 = arith.addf %29, %31 : vector<128x256xf32>
    %c0_32 = arith.constant 0 : index
    %c0_33 = arith.constant 0 : index
    %33 = vector.load %arg20[%c0_32, %c0_33] : memref<1x256xf32, #tpu.memory_space<vmem>>, vector<1x256xf32>
    %34 = vector.broadcast %33 : vector<1x256xf32> to vector<128x256xf32>
    %35 = arith.addf %32, %34 : vector<128x256xf32>
    %cst_34 = arith.constant 0.000000e+00 : f32
    %36 = vector.broadcast %cst_34 : f32 to vector<128x256xf32>
    %37 = arith.maximumf %35, %36 : vector<128x256xf32>
    %c0_35 = arith.constant 0 : index
    %c0_36 = arith.constant 0 : index
    %38 = vector.load %arg11[%c0_35, %c0_36] : memref<256x32xf32, #tpu.memory_space<vmem>>, vector<256x32xf32>
    %cst_37 = arith.constant dense<0.000000e+00> : vector<128x32xf32>
    %39 = tpu.matmul %37, %38, %cst_37 {dimension_numbers = #tpu.dot_dimension_numbers<[1], [0], [0], [1], [0, 0, 1, 1], [], []>} : vector<128x256xf32>, vector<256x32xf32>, vector<128x32xf32> -> vector<128x32xf32>
    %c0_38 = arith.constant 0 : index
    %c0_39 = arith.constant 0 : index
    %40 = vector.load %arg22[%c0_38, %c0_39] : memref<1x32xf32, #tpu.memory_space<vmem>>, vector<1x32xf32>
    %41 = vector.broadcast %40 : vector<1x32xf32> to vector<128x32xf32>
    %42 = arith.addf %39, %41 : vector<128x32xf32>
    %43 = vector.extract_strided_slice %7 {offsets = [0, 256], sizes = [128, 256], strides = [1, 1]} : vector<128x584xf32> to vector<128x256xf32>
    %44 = vector.extract_strided_slice %5 {offsets = [0, 256], sizes = [128, 256], strides = [1, 1]} : vector<128x512xf32> to vector<128x256xf32>
    %45 = arith.addf %43, %44 : vector<128x256xf32>
    %46 = vector.extract_strided_slice %9 {offsets = [0, 0], sizes = [128, 256], strides = [1, 1]} : vector<128x328xf32> to vector<128x256xf32>
    %47 = arith.addf %45, %46 : vector<128x256xf32>
    %c0_40 = arith.constant 0 : index
    %c0_41 = arith.constant 0 : index
    %48 = vector.load %arg21[%c0_40, %c0_41] : memref<1x256xf32, #tpu.memory_space<vmem>>, vector<1x256xf32>
    %49 = vector.broadcast %48 : vector<1x256xf32> to vector<128x256xf32>
    %50 = arith.addf %47, %49 : vector<128x256xf32>
    %cst_42 = arith.constant 0.000000e+00 : f32
    %51 = vector.broadcast %cst_42 : f32 to vector<128x256xf32>
    %52 = arith.maximumf %50, %51 : vector<128x256xf32>
    %c0_43 = arith.constant 0 : index
    %c0_44 = arith.constant 0 : index
    %53 = vector.load %arg12[%c0_43, %c0_44] : memref<256x40xf32, #tpu.memory_space<vmem>>, vector<256x40xf32>
    %cst_45 = arith.constant dense<0.000000e+00> : vector<128x40xf32>
    %54 = tpu.matmul %52, %53, %cst_45 {dimension_numbers = #tpu.dot_dimension_numbers<[1], [0], [0], [1], [0, 0, 1, 1], [], []>} : vector<128x256xf32>, vector<256x40xf32>, vector<128x40xf32> -> vector<128x40xf32>
    %c0_46 = arith.constant 0 : index
    %c0_47 = arith.constant 0 : index
    %55 = vector.load %arg23[%c0_46, %c0_47] : memref<1x40xf32, #tpu.memory_space<vmem>>, vector<1x40xf32>
    %56 = vector.broadcast %55 : vector<1x40xf32> to vector<128x40xf32>
    %57 = arith.addf %54, %56 : vector<128x40xf32>
    %58 = vector.extract_strided_slice %57 {offsets = [0, 0], sizes = [128, 20], strides = [1, 1]} : vector<128x40xf32> to vector<128x20xf32>
    %59 = vector.extract_strided_slice %57 {offsets = [0, 20], sizes = [128, 20], strides = [1, 1]} : vector<128x40xf32> to vector<128x20xf32>
    %cst_48 = arith.constant 5.000000e-01 : f32
    %60 = vector.broadcast %cst_48 : f32 to vector<128x20xf32>
    %61 = arith.mulf %60, %59 : vector<128x20xf32>
    %62 = math.exp %61 : vector<128x20xf32>
    %63 = arith.mulf %3, %62 : vector<128x20xf32>
    %64 = arith.addf %58, %63 : vector<128x20xf32>
    %c0_49 = arith.constant 0 : index
    %c0_50 = arith.constant 0 : index
    %65 = vector.load %arg13[%c0_49, %c0_50] : memref<20x328xf32, #tpu.memory_space<vmem>>, vector<20x328xf32>
    %cst_51 = arith.constant dense<0.000000e+00> : vector<128x328xf32>
    %66 = tpu.matmul %64, %65, %cst_51 {dimension_numbers = #tpu.dot_dimension_numbers<[1], [0], [0], [1], [0, 0, 1, 1], [], []>} : vector<128x20xf32>, vector<20x328xf32>, vector<128x328xf32> -> vector<128x328xf32>
    %67 = vector.extract_strided_slice %66 {offsets = [0, 256], sizes = [128, 72], strides = [1, 1]} : vector<128x328xf32> to vector<128x72xf32>
    %68 = vector.extract_strided_slice %9 {offsets = [0, 256], sizes = [128, 72], strides = [1, 1]} : vector<128x328xf32> to vector<128x72xf32>
    %69 = arith.addf %67, %68 : vector<128x72xf32>
    %c0_52 = arith.constant 0 : index
    %c0_53 = arith.constant 0 : index
    %70 = vector.load %arg24[%c0_52, %c0_53] : memref<1x72xf32, #tpu.memory_space<vmem>>, vector<1x72xf32>
    %71 = vector.broadcast %70 : vector<1x72xf32> to vector<128x72xf32>
    %72 = arith.addf %69, %71 : vector<128x72xf32>
    %73 = vector.extract_strided_slice %7 {offsets = [0, 512], sizes = [128, 72], strides = [1, 1]} : vector<128x584xf32> to vector<128x72xf32>
    %c0_54 = arith.constant 0 : index
    %c0_55 = arith.constant 0 : index
    %74 = vector.load %arg25[%c0_54, %c0_55] : memref<1x72xf32, #tpu.memory_space<vmem>>, vector<1x72xf32>
    %75 = vector.broadcast %74 : vector<1x72xf32> to vector<128x72xf32>
    %76 = arith.addf %73, %75 : vector<128x72xf32>
    %77 = vector.extract_strided_slice %72 {offsets = [0, 0], sizes = [128, 24], strides = [1, 1]} : vector<128x72xf32> to vector<128x24xf32>
    %78 = vector.extract_strided_slice %76 {offsets = [0, 0], sizes = [128, 24], strides = [1, 1]} : vector<128x72xf32> to vector<128x24xf32>
    %79 = arith.addf %77, %78 : vector<128x24xf32>
    %80 = arith.negf %79 : vector<128x24xf32>
    %81 = math.exp %80 : vector<128x24xf32>
    %cst_56 = arith.constant 1.000000e+00 : f32
    %82 = vector.broadcast %cst_56 : f32 to vector<128x24xf32>
    %83 = arith.addf %82, %81 : vector<128x24xf32>
    %84 = arith.divf %82, %83 : vector<128x24xf32>
    %85 = vector.extract_strided_slice %72 {offsets = [0, 24], sizes = [128, 24], strides = [1, 1]} : vector<128x72xf32> to vector<128x24xf32>
    %86 = vector.extract_strided_slice %76 {offsets = [0, 24], sizes = [128, 24], strides = [1, 1]} : vector<128x72xf32> to vector<128x24xf32>
    %87 = arith.addf %85, %86 : vector<128x24xf32>
    %88 = arith.negf %87 : vector<128x24xf32>
    %89 = math.exp %88 : vector<128x24xf32>
    %cst_57 = arith.constant 1.000000e+00 : f32
    %90 = vector.broadcast %cst_57 : f32 to vector<128x24xf32>
    %91 = arith.addf %90, %89 : vector<128x24xf32>
    %92 = arith.divf %90, %91 : vector<128x24xf32>
    %93 = vector.extract_strided_slice %72 {offsets = [0, 48], sizes = [128, 24], strides = [1, 1]} : vector<128x72xf32> to vector<128x24xf32>
    %94 = vector.extract_strided_slice %76 {offsets = [0, 48], sizes = [128, 24], strides = [1, 1]} : vector<128x72xf32> to vector<128x24xf32>
    %95 = arith.mulf %84, %94 : vector<128x24xf32>
    %96 = arith.addf %93, %95 : vector<128x24xf32>
    %97 = math.tanh %96 : vector<128x24xf32>
    %cst_58 = arith.constant 1.000000e+00 : f32
    %98 = vector.broadcast %cst_58 : f32 to vector<128x24xf32>
    %99 = arith.subf %98, %92 : vector<128x24xf32>
    %100 = arith.mulf %99, %97 : vector<128x24xf32>
    %101 = arith.mulf %92, %2 : vector<128x24xf32>
    %102 = arith.addf %100, %101 : vector<128x24xf32>
    %c0_59 = arith.constant 0 : index
    %c0_60 = arith.constant 0 : index
    %103 = vector.load %arg14[%c0_59, %c0_60] : memref<24x256xf32, #tpu.memory_space<vmem>>, vector<24x256xf32>
    %cst_61 = arith.constant dense<0.000000e+00> : vector<128x256xf32>
    %104 = tpu.matmul %102, %103, %cst_61 {dimension_numbers = #tpu.dot_dimension_numbers<[1], [0], [0], [1], [0, 0, 1, 1], [], []>} : vector<128x24xf32>, vector<24x256xf32>, vector<128x256xf32> -> vector<128x256xf32>
    %105 = vector.extract_strided_slice %66 {offsets = [0, 0], sizes = [128, 256], strides = [1, 1]} : vector<128x328xf32> to vector<128x256xf32>
    %106 = arith.addf %104, %105 : vector<128x256xf32>
    %c0_62 = arith.constant 0 : index
    %c0_63 = arith.constant 0 : index
    %107 = vector.load %arg26[%c0_62, %c0_63] : memref<1x256xf32, #tpu.memory_space<vmem>>, vector<1x256xf32>
    %108 = vector.broadcast %107 : vector<1x256xf32> to vector<128x256xf32>
    %109 = arith.addf %106, %108 : vector<128x256xf32>
    %cst_64 = arith.constant 0.000000e+00 : f32
    %110 = vector.broadcast %cst_64 : f32 to vector<128x256xf32>
    %111 = arith.maximumf %109, %110 : vector<128x256xf32>
    %c0_65 = arith.constant 0 : index
    %c0_66 = arith.constant 0 : index
    %112 = vector.load %arg15[%c0_65, %c0_66] : memref<256x256xf32, #tpu.memory_space<vmem>>, vector<256x256xf32>
    %cst_67 = arith.constant dense<0.000000e+00> : vector<128x256xf32>
    %113 = tpu.matmul %111, %112, %cst_67 {dimension_numbers = #tpu.dot_dimension_numbers<[1], [0], [0], [1], [0, 0, 1, 1], [], []>} : vector<128x256xf32>, vector<256x256xf32>, vector<128x256xf32> -> vector<128x256xf32>
    %c0_68 = arith.constant 0 : index
    %c0_69 = arith.constant 0 : index
    %114 = vector.load %arg27[%c0_68, %c0_69] : memref<1x256xf32, #tpu.memory_space<vmem>>, vector<1x256xf32>
    %115 = vector.broadcast %114 : vector<1x256xf32> to vector<128x256xf32>
    %116 = arith.addf %113, %115 : vector<128x256xf32>
    %cst_70 = arith.constant 0.000000e+00 : f32
    %117 = vector.broadcast %cst_70 : f32 to vector<128x256xf32>
    %118 = arith.maximumf %116, %117 : vector<128x256xf32>
    %c0_71 = arith.constant 0 : index
    %c0_72 = arith.constant 0 : index
    %119 = vector.load %arg16[%c0_71, %c0_72] : memref<256x16xf32, #tpu.memory_space<vmem>>, vector<256x16xf32>
    %cst_73 = arith.constant dense<0.000000e+00> : vector<128x16xf32>
    %120 = tpu.matmul %118, %119, %cst_73 {dimension_numbers = #tpu.dot_dimension_numbers<[1], [0], [0], [1], [0, 0, 1, 1], [], []>} : vector<128x256xf32>, vector<256x16xf32>, vector<128x16xf32> -> vector<128x16xf32>
    %c0_74 = arith.constant 0 : index
    %c0_75 = arith.constant 0 : index
    %121 = vector.load %arg28[%c0_74, %c0_75] : memref<1x16xf32, #tpu.memory_space<vmem>>, vector<1x16xf32>
    %122 = vector.broadcast %121 : vector<1x16xf32> to vector<128x16xf32>
    %123 = arith.addf %120, %122 : vector<128x16xf32>
    %cst_76 = arith.constant 0.000000e+00 : f32
    %124 = vector.broadcast %cst_76 : f32 to vector<128x124xf32>
    %125 = tpu.concatenate %42, %57, %64, %102, %123, %124 in 1 : vector<128x32xf32>, vector<128x40xf32>, vector<128x20xf32>, vector<128x24xf32>, vector<128x16xf32>, vector<128x124xf32> -> vector<128x256xf32>
    %c0_77 = arith.constant 0 : index
    %c0_78 = arith.constant 0 : index
    %126 = vector.load %arg29[%c0_77, %c0_78] : memref<128x256xf32, #tpu.memory_space<vmem>>, vector<128x256xf32>
    tpu.vector_store %arg29[%c0_77, %c0_78], %125 {strides = array<i32>} : memref<128x256xf32, #tpu.memory_space<vmem>>, vector<128x256xf32>,
    return
  }
  func.func @transform_0(%arg0: i32) -> (i32, i32) {
    %c0_i32 = arith.constant 0 : i32
    %c0_i32_0 = arith.constant 0 : i32
    return %arg0, %c0_i32 : i32, i32
  }
  func.func @transform_1(%arg0: i32) -> (i32, i32) {
    %c0_i32 = arith.constant 0 : i32
    %c0_i32_0 = arith.constant 0 : i32
    return %arg0, %c0_i32 : i32, i32
  }
  func.func @transform_2(%arg0: i32) -> (i32, i32) {
    %c0_i32 = arith.constant 0 : i32
    %c0_i32_0 = arith.constant 0 : i32
    return %arg0, %c0_i32 : i32, i32
  }
  func.func @transform_3(%arg0: i32) -> (i32, i32) {
    %c0_i32 = arith.constant 0 : i32
    %c0_i32_0 = arith.constant 0 : i32
    return %arg0, %c0_i32 : i32, i32
  }
  func.func @transform_4(%arg0: i32) -> (i32, i32) {
    %c0_i32 = arith.constant 0 : i32
    %c0_i32_0 = arith.constant 0 : i32
    %c0_i32_1 = arith.constant 0 : i32
    return %c0_i32, %c0_i32_0 : i32, i32
  }
  func.func @transform_5(%arg0: i32) -> (i32, i32) {
    %c0_i32 = arith.constant 0 : i32
    %c0_i32_0 = arith.constant 0 : i32
    %c0_i32_1 = arith.constant 0 : i32
    return %c0_i32, %c0_i32_0 : i32, i32
  }
  func.func @transform_6(%arg0: i32) -> (i32, i32) {
    %c0_i32 = arith.constant 0 : i32
    %c0_i32_0 = arith.constant 0 : i32
    %c0_i32_1 = arith.constant 0 : i32
    return %c0_i32, %c0_i32_0 : i32, i32
  }
  func.func @transform_7(%arg0: i32) -> (i32, i32) {
    %c0_i32 = arith.constant 0 : i32
    %c0_i32_0 = arith.constant 0 : i32
    %c0_i32_1 = arith.constant 0 : i32
    return %c0_i32, %c0_i32_0 : i32, i32
  }
  func.func @transform_8(%arg0: i32) -> (i32, i32) {
    %c0_i32 = arith.constant 0 : i32
    %c0_i32_0 = arith.constant 0 : i32
    %c0_i32_1 = arith.constant 0 : i32
    return %c0_i32, %c0_i32_0 : i32, i32
  }
  func.func @transform_9(%arg0: i32) -> (i32, i32) {
    %c0_i32 = arith.constant 0 : i32
    %c0_i32_0 = arith.constant 0 : i32
    %c0_i32_1 = arith.constant 0 : i32
    return %c0_i32, %c0_i32_0 : i32, i32
  }
  func.func @transform_10(%arg0: i32) -> (i32, i32) {
    %c0_i32 = arith.constant 0 : i32
    %c0_i32_0 = arith.constant 0 : i32
    %c0_i32_1 = arith.constant 0 : i32
    return %c0_i32, %c0_i32_0 : i32, i32
  }
  func.func @transform_11(%arg0: i32) -> (i32, i32) {
    %c0_i32 = arith.constant 0 : i32
    %c0_i32_0 = arith.constant 0 : i32
    %c0_i32_1 = arith.constant 0 : i32
    return %c0_i32, %c0_i32_0 : i32, i32
  }
  func.func @transform_12(%arg0: i32) -> (i32, i32) {
    %c0_i32 = arith.constant 0 : i32
    %c0_i32_0 = arith.constant 0 : i32
    %c0_i32_1 = arith.constant 0 : i32
    return %c0_i32, %c0_i32_0 : i32, i32
  }
  func.func @transform_13(%arg0: i32) -> (i32, i32) {
    %c0_i32 = arith.constant 0 : i32
    %c0_i32_0 = arith.constant 0 : i32
    %c0_i32_1 = arith.constant 0 : i32
    return %c0_i32, %c0_i32_0 : i32, i32
  }
  func.func @transform_14(%arg0: i32) -> (i32, i32) {
    %c0_i32 = arith.constant 0 : i32
    %c0_i32_0 = arith.constant 0 : i32
    %c0_i32_1 = arith.constant 0 : i32
    return %c0_i32, %c0_i32_0 : i32, i32
  }
  func.func @transform_15(%arg0: i32) -> (i32, i32) {
    %c0_i32 = arith.constant 0 : i32
    %c0_i32_0 = arith.constant 0 : i32
    %c0_i32_1 = arith.constant 0 : i32
    return %c0_i32, %c0_i32_0 : i32, i32
  }
  func.func @transform_16(%arg0: i32) -> (i32, i32) {
    %c0_i32 = arith.constant 0 : i32
    %c0_i32_0 = arith.constant 0 : i32
    %c0_i32_1 = arith.constant 0 : i32
    return %c0_i32, %c0_i32_0 : i32, i32
  }
  func.func @transform_17(%arg0: i32) -> (i32, i32) {
    %c0_i32 = arith.constant 0 : i32
    %c0_i32_0 = arith.constant 0 : i32
    %c0_i32_1 = arith.constant 0 : i32
    return %c0_i32, %c0_i32_0 : i32, i32
  }
  func.func @transform_18(%arg0: i32) -> (i32, i32) {
    %c0_i32 = arith.constant 0 : i32
    %c0_i32_0 = arith.constant 0 : i32
    %c0_i32_1 = arith.constant 0 : i32
    return %c0_i32, %c0_i32_0 : i32, i32
  }
  func.func @transform_19(%arg0: i32) -> (i32, i32) {
    %c0_i32 = arith.constant 0 : i32
    %c0_i32_0 = arith.constant 0 : i32
    %c0_i32_1 = arith.constant 0 : i32
    return %c0_i32, %c0_i32_0 : i32, i32
  }
  func.func @transform_20(%arg0: i32) -> (i32, i32) {
    %c0_i32 = arith.constant 0 : i32
    %c0_i32_0 = arith.constant 0 : i32
    %c0_i32_1 = arith.constant 0 : i32
    return %c0_i32, %c0_i32_0 : i32, i32
  }
  func.func @transform_21(%arg0: i32) -> (i32, i32) {
    %c0_i32 = arith.constant 0 : i32
    %c0_i32_0 = arith.constant 0 : i32
    %c0_i32_1 = arith.constant 0 : i32
    return %c0_i32, %c0_i32_0 : i32, i32
  }
  func.func @transform_22(%arg0: i32) -> (i32, i32) {
    %c0_i32 = arith.constant 0 : i32
    %c0_i32_0 = arith.constant 0 : i32
    %c0_i32_1 = arith.constant 0 : i32
    return %c0_i32, %c0_i32_0 : i32, i32
  }
  func.func @transform_23(%arg0: i32) -> (i32, i32) {
    %c0_i32 = arith.constant 0 : i32
    %c0_i32_0 = arith.constant 0 : i32
    %c0_i32_1 = arith.constant 0 : i32
    return %c0_i32, %c0_i32_0 : i32, i32
  }
  func.func @transform_24(%arg0: i32) -> (i32, i32) {
    %c0_i32 = arith.constant 0 : i32
    %c0_i32_0 = arith.constant 0 : i32
    %c0_i32_1 = arith.constant 0 : i32
    return %c0_i32, %c0_i32_0 : i32, i32
  }
  func.func @transform_25(%arg0: i32) -> (i32, i32) {
    %c0_i32 = arith.constant 0 : i32
    %c0_i32_0 = arith.constant 0 : i32
    %c0_i32_1 = arith.constant 0 : i32
    return %c0_i32, %c0_i32_0 : i32, i32
  }
  func.func @transform_26(%arg0: i32) -> (i32, i32) {
    %c0_i32 = arith.constant 0 : i32
    %c0_i32_0 = arith.constant 0 : i32
    %c0_i32_1 = arith.constant 0 : i32
    return %c0_i32, %c0_i32_0 : i32, i32
  }
  func.func @transform_27(%arg0: i32) -> (i32, i32) {
    %c0_i32 = arith.constant 0 : i32
    %c0_i32_0 = arith.constant 0 : i32
    %c0_i32_1 = arith.constant 0 : i32
    return %c0_i32, %c0_i32_0 : i32, i32
  }
  func.func @transform_28(%arg0: i32) -> (i32, i32) {
    %c0_i32 = arith.constant 0 : i32
    %c0_i32_0 = arith.constant 0 : i32
    return %arg0, %c0_i32 : i32, i32
  }
}

</mosaic_0001>

<llo_original>
// kernel: rssm_forward.1
$region0: #{rssm_forward.1}
  #allocation0 [shape = 'u32[]', space=smem, size = 0x4, offset = 0x4, fixed_abs, tag = 'smem constant byte address 0x4 - core index']
  #allocation1 [shape = 'u32[144,128]{1,0:T(1,128)}', space=vmem, size = 0x12000, scoped, tag = 'internal scratch']
  %s0 = inlined_call_operand.vmem [shape: f32[256,16], index: 0, kind: input, shape index: {}]
  %s1 = inlined_call_operand.vmem [shape: f32[256,4], index: 1, kind: input, shape index: {}]
  %s2 = inlined_call_operand.vmem [shape: f32[256,24], index: 2, kind: input, shape index: {}]
  %s3 = inlined_call_operand.vmem [shape: f32[256,20], index: 3, kind: input, shape index: {}]
  %s4 = inlined_call_operand.vmem [shape: f32[16,512], index: 4, kind: input, shape index: {}]
  %s5 = inlined_call_operand.vmem [shape: f32[256,256], index: 5, kind: input, shape index: {}]
  %s6 = inlined_call_operand.vmem [shape: f32[256,16], index: 6, kind: input, shape index: {}]
  %s7 = inlined_call_operand.vmem [shape: f32[24,584], index: 7, kind: input, shape index: {}]
  %s8 = inlined_call_operand.vmem [shape: f32[4,328], index: 8, kind: input, shape index: {}]
  %s9 = inlined_call_operand.vmem [shape: f32[8,256], index: 9, kind: input, shape index: {}]
  %s10 = inlined_call_operand.vmem [shape: f32[256,32], index: 10, kind: input, shape index: {}]
  %s11 = inlined_call_operand.vmem [shape: f32[256,40], index: 11, kind: input, shape index: {}]
  %s12 = inlined_call_operand.vmem [shape: f32[20,328], index: 12, kind: input, shape index: {}]
  %s13 = inlined_call_operand.vmem [shape: f32[24,256], index: 13, kind: input, shape index: {}]
  %s14 = inlined_call_operand.vmem [shape: f32[256,256], index: 14, kind: input, shape index: {}]
  %s15 = inlined_call_operand.vmem [shape: f32[256,16], index: 15, kind: input, shape index: {}]
  %s16 = inlined_call_operand.vmem [shape: f32[1,256], index: 16, kind: input, shape index: {}]
  %s17 = inlined_call_operand.vmem [shape: f32[1,256], index: 17, kind: input, shape index: {}]
  %s18 = inlined_call_operand.vmem [shape: f32[1,16], index: 18, kind: input, shape index: {}]
  %s19 = inlined_call_operand.vmem [shape: f32[1,256], index: 19, kind: input, shape index: {}]
  %s20 = inlined_call_operand.vmem [shape: f32[1,256], index: 20, kind: input, shape index: {}]
  %s21 = inlined_call_operand.vmem [shape: f32[1,32], index: 21, kind: input, shape index: {}]
  %s22 = inlined_call_operand.vmem [shape: f32[1,40], index: 22, kind: input, shape index: {}]
  %s23 = inlined_call_operand.vmem [shape: f32[1,72], index: 23, kind: input, shape index: {}]
  %s24 = inlined_call_operand.vmem [shape: f32[1,72], index: 24, kind: input, shape index: {}]
  %s25 = inlined_call_operand.vmem [shape: f32[1,256], index: 25, kind: input, shape index: {}]
  %s26 = inlined_call_operand.vmem [shape: f32[1,256], index: 26, kind: input, shape index: {}]
  %s27 = inlined_call_operand.vmem [shape: f32[1,16], index: 27, kind: input, shape index: {}]
  %s28 = inlined_call_operand.vmem [shape: f32[256,256], index: 28, kind: output, shape index: {}]
  %s29 = sld [smem:[#allocation0]]
  $region145: #{rssm_forward.1} parent=0
    _
  %s31 = ssub.s32 1, %s29
  %s32 = scalar_select 0, %s31, %s29
  loop: start=0, step=1, limit=4
  $region2: #{rssm_forward.1} parent=0 // loop_pre_header
    _
  $region3: #{rssm_forward.1} parent=0 // loop_header
    %s34 = sphi 0, %s38
    %p35 = scmp.ge.s32.totalorder %s34, 4
    %s44 = sphi 0, %s46
    %s47 = sphi 0, %s44
    %s48 = sphi 0, %s47
    %s64 = sphi 0, %s48
    %s70 = sphi 0, %s72
    %s73 = sphi 0, %s70
    %s74 = sphi 0, %s73
    %s90 = sphi 0, %s74
    %s96 = sphi 0, %s98
    %s99 = sphi 0, %s96
    %s100 = sphi 0, %s99
    %s116 = sphi 0, %s100
    %s122 = sphi 0, %s124
    %s125 = sphi 0, %s122
    %s126 = sphi 0, %s125
    %s142 = sphi 0, %s126
    %s146 = sphi 0, %s146
    %s148 = sphi 0, %s146
    %s149 = sphi 0, %s148
    %s163 = sphi 0, %s149
    %s167 = sphi 0, %s167
    %s169 = sphi 0, %s167
    %s170 = sphi 0, %s169
    %s184 = sphi 0, %s170
    %s188 = sphi 0, %s188
    %s190 = sphi 0, %s188
    %s191 = sphi 0, %s190
    %s205 = sphi 0, %s191
    %s209 = sphi 0, %s209
    %s211 = sphi 0, %s209
    %s212 = sphi 0, %s211
    %s226 = sphi 0, %s212
    %s230 = sphi 0, %s230
    %s232 = sphi 0, %s230
    %s233 = sphi 0, %s232
    %s247 = sphi 0, %s233
    %s251 = sphi 0, %s251
    %s253 = sphi 0, %s251
    %s254 = sphi 0, %s253
    %s268 = sphi 0, %s254
    %s272 = sphi 0, %s272
    %s274 = sphi 0, %s272
    %s275 = sphi 0, %s274
    %s289 = sphi 0, %s275
    %s293 = sphi 0, %s293
    %s295 = sphi 0, %s293
    %s296 = sphi 0, %s295
    %s310 = sphi 0, %s296
    %s314 = sphi 0, %s314
    %s316 = sphi 0, %s314
    %s317 = sphi 0, %s316
    %s331 = sphi 0, %s317
    %s335 = sphi 0, %s335
    %s337 = sphi 0, %s335
    %s338 = sphi 0, %s337
    %s352 = sphi 0, %s338
    %s356 = sphi 0, %s356
    %s358 = sphi 0, %s356
    %s359 = sphi 0, %s358
    %s373 = sphi 0, %s359
    %s377 = sphi 0, %s377
    %s379 = sphi 0, %s377
    %s380 = sphi 0, %s379
    %s394 = sphi 0, %s380
    %s398 = sphi 0, %s398
    %s400 = sphi 0, %s398
    %s401 = sphi 0, %s400
    %s415 = sphi 0, %s401
    %s419 = sphi 0, %s419
    %s421 = sphi 0, %s419
    %s422 = sphi 0, %s421
    %s436 = sphi 0, %s422
    %s440 = sphi 0, %s440
    %s442 = sphi 0, %s440
    %s443 = sphi 0, %s442
    %s457 = sphi 0, %s443
    %s461 = sphi 0, %s461
    %s463 = sphi 0, %s461
    %s464 = sphi 0, %s463
    %s478 = sphi 0, %s464
    %s482 = sphi 0, %s482
    %s484 = sphi 0, %s482
    %s485 = sphi 0, %s484
    %s499 = sphi 0, %s485
    %s503 = sphi 0, %s503
    %s505 = sphi 0, %s503
    %s506 = sphi 0, %s505
    %s520 = sphi 0, %s506
    %s524 = sphi 0, %s524
    %s526 = sphi 0, %s524
    %s527 = sphi 0, %s526
    %s541 = sphi 0, %s527
    %s545 = sphi 0, %s545
    %s547 = sphi 0, %s545
    %s548 = sphi 0, %s547
    %s562 = sphi 0, %s548
    %s566 = sphi 0, %s566
    %s568 = sphi 0, %s566
    %s569 = sphi 0, %s568
    %s583 = sphi 0, %s569
    %s587 = sphi 0, %s587
    %s589 = sphi 0, %s587
    %s590 = sphi 0, %s589
    %s604 = sphi 0, %s590
    %s608 = sphi 0, %s608
    %s610 = sphi 0, %s608
    %s611 = sphi 0, %s610
    %s625 = sphi 0, %s611
    %s629 = sphi 0, %s629
    %s631 = sphi 0, %s629
    %s632 = sphi 0, %s631
    %s646 = sphi 0, %s632
    %s652 = sphi 0, %s654
    %s655 = sphi 0, %s652
    %s656 = sphi 0, %s655
    %s672 = sphi 0, %s656
  $region4: #{rssm_forward.1} parent=0 // loop_header_branch
    %37 = sbr.rel (%p35) target = $region8
  $region5: #{rssm_forward.1} parent=0 // loop_body
    %s39 = ssub.s32 %s34, 1
    %s40 = ssub.s32 %s34, 2
    %s41 = sadd.s32 %s34, 1
    %s42 = ssub.s32 %s34, %s41
    %p43 = scmp.eq.s32.totalorder %s42, 0
    %s45 = sadd.s32 %s44, 1
    %s46 = scalar_select %p43, %s44, %s45
    %p49 = pneg %p43
    %p50 = scmp.eq.s32.totalorder %s34, 1
    %p51 = por %p49, %p50
    %p52 = scmp.ne.s32.totalorder %s44, %s47
    %p53 = scmp.eq.s32.totalorder %s34, 0
    %p54 = por %p52, %p53
    %p55 = scmp.ne.s32.totalorder %s44, %s47
    %p56 = scmp.eq.s32.totalorder %s39, 1
    %p57 = por %p55, %p56
    %p58 = scmp.ne.s32.totalorder %s47, %s48
    %p59 = scmp.eq.s32.totalorder %s39, 0
    %p60 = por %p58, %p59
    %p61 = scmp.ne.s32.totalorder %s47, %s48
    %p62 = scmp.eq.s32.totalorder %s40, 1
    %p63 = por %p61, %p62
    %p65 = scmp.ne.s32.totalorder %s48, %s64
    %p66 = scmp.eq.s32.totalorder %s40, 0
    %p67 = por %p65, %p66
    %s68 = ssub.s32 %s34, %s41
    %p69 = scmp.eq.s32.totalorder %s68, 0
    %s71 = sadd.s32 %s70, 1
    %s72 = scalar_select %p69, %s70, %s71
    %p75 = pneg %p69
    %p76 = scmp.eq.s32.totalorder %s34, 1
    %p77 = por %p75, %p76
    %p78 = scmp.ne.s32.totalorder %s70, %s73
    %p79 = scmp.eq.s32.totalorder %s34, 0
    %p80 = por %p78, %p79
    %p81 = scmp.ne.s32.totalorder %s70, %s73
    %p82 = scmp.eq.s32.totalorder %s39, 1
    %p83 = por %p81, %p82
    %p84 = scmp.ne.s32.totalorder %s73, %s74
    %p85 = scmp.eq.s32.totalorder %s39, 0
    %p86 = por %p84, %p85
    %p87 = scmp.ne.s32.totalorder %s73, %s74
    %p88 = scmp.eq.s32.totalorder %s40, 1
    %p89 = por %p87, %p88
    %p91 = scmp.ne.s32.totalorder %s74, %s90
    %p92 = scmp.eq.s32.totalorder %s40, 0
    %p93 = por %p91, %p92
    %s94 = ssub.s32 %s34, %s41
    %p95 = scmp.eq.s32.totalorder %s94, 0
    %s97 = sadd.s32 %s96, 1
    %s98 = scalar_select %p95, %s96, %s97
    %p101 = pneg %p95
    %p102 = scmp.eq.s32.totalorder %s34, 1
    %p103 = por %p101, %p102
    %p104 = scmp.ne.s32.totalorder %s96, %s99
    %p105 = scmp.eq.s32.totalorder %s34, 0
    %p106 = por %p104, %p105
    %p107 = scmp.ne.s32.totalorder %s96, %s99
    %p108 = scmp.eq.s32.totalorder %s39, 1
    %p109 = por %p107, %p108
    %p110 = scmp.ne.s32.totalorder %s99, %s100
    %p111 = scmp.eq.s32.totalorder %s39, 0
    %p112 = por %p110, %p111
    %p113 = scmp.ne.s32.totalorder %s99, %s100
    %p114 = scmp.eq.s32.totalorder %s40, 1
    %p115 = por %p113, %p114
    %p117 = scmp.ne.s32.totalorder %s100, %s116
    %p118 = scmp.eq.s32.totalorder %s40, 0
    %p119 = por %p117, %p118
    %s120 = ssub.s32 %s34, %s41
    %p121 = scmp.eq.s32.totalorder %s120, 0
    %s123 = sadd.s32 %s122, 1
    %s124 = scalar_select %p121, %s122, %s123
    %p127 = pneg %p121
    %p128 = scmp.eq.s32.totalorder %s34, 1
    %p129 = por %p127, %p128
    %p130 = scmp.ne.s32.totalorder %s122, %s125
    %p131 = scmp.eq.s32.totalorder %s34, 0
    %p132 = por %p130, %p131
    %p133 = scmp.ne.s32.totalorder %s122, %s125
    %p134 = scmp.eq.s32.totalorder %s39, 1
    %p135 = por %p133, %p134
    %p136 = scmp.ne.s32.totalorder %s125, %s126
    %p137 = scmp.eq.s32.totalorder %s39, 0
    %p138 = por %p136, %p137
    %p139 = scmp.ne.s32.totalorder %s125, %s126
    %p140 = scmp.eq.s32.totalorder %s40, 1
    %p141 = por %p139, %p140
    %p143 = scmp.ne.s32.totalorder %s126, %s142
    %p144 = scmp.eq.s32.totalorder %s40, 0
    %p145 = por %p143, %p144
    %s147 = sadd.s32 %s146, 1
    %p150 = scmp.eq.s32.totalorder %s34, 1
    %p151 = scmp.ne.s32.totalorder %s146, %s148
    %p152 = scmp.eq.s32.totalorder %s34, 0
    %p153 = por %p151, %p152
    %p154 = scmp.ne.s32.totalorder %s146, %s148
    %p155 = scmp.eq.s32.totalorder %s39, 1
    %p156 = por %p154, %p155
    %p157 = scmp.ne.s32.totalorder %s148, %s149
    %p158 = scmp.eq.s32.totalorder %s39, 0
    %p159 = por %p157, %p158
    %p160 = scmp.ne.s32.totalorder %s148, %s149
    %p161 = scmp.eq.s32.totalorder %s40, 1
    %p162 = por %p160, %p161
    %p164 = scmp.ne.s32.totalorder %s149, %s163
    %p165 = scmp.eq.s32.totalorder %s40, 0
    %p166 = por %p164, %p165
    %s168 = sadd.s32 %s167, 1
    %p171 = scmp.eq.s32.totalorder %s34, 1
    %p172 = scmp.ne.s32.totalorder %s167, %s169
    %p173 = scmp.eq.s32.totalorder %s34, 0
    %p174 = por %p172, %p173
    %p175 = scmp.ne.s32.totalorder %s167, %s169
    %p176 = scmp.eq.s32.totalorder %s39, 1
    %p177 = por %p175, %p176
    %p178 = scmp.ne.s32.totalorder %s169, %s170
    %p179 = scmp.eq.s32.totalorder %s39, 0
    %p180 = por %p178, %p179
    %p181 = scmp.ne.s32.totalorder %s169, %s170
    %p182 = scmp.eq.s32.totalorder %s40, 1
    %p183 = por %p181, %p182
    %p185 = scmp.ne.s32.totalorder %s170, %s184
    %p186 = scmp.eq.s32.totalorder %s40, 0
    %p187 = por %p185, %p186
    %s189 = sadd.s32 %s188, 1
    %p192 = scmp.eq.s32.totalorder %s34, 1
    %p193 = scmp.ne.s32.totalorder %s188, %s190
    %p194 = scmp.eq.s32.totalorder %s34, 0
    %p195 = por %p193, %p194
    %p196 = scmp.ne.s32.totalorder %s188, %s190
    %p197 = scmp.eq.s32.totalorder %s39, 1
    %p198 = por %p196, %p197
    %p199 = scmp.ne.s32.totalorder %s190, %s191
    %p200 = scmp.eq.s32.totalorder %s39, 0
    %p201 = por %p199, %p200
    %p202 = scmp.ne.s32.totalorder %s190, %s191
    %p203 = scmp.eq.s32.totalorder %s40, 1
    %p204 = por %p202, %p203
    %p206 = scmp.ne.s32.totalorder %s191, %s205
    %p207 = scmp.eq.s32.totalorder %s40, 0
    %p208 = por %p206, %p207
    %s210 = sadd.s32 %s209, 1
    %p213 = scmp.eq.s32.totalorder %s34, 1
    %p214 = scmp.ne.s32.totalorder %s209, %s211
    %p215 = scmp.eq.s32.totalorder %s34, 0
    %p216 = por %p214, %p215
    %p217 = scmp.ne.s32.totalorder %s209, %s211
    %p218 = scmp.eq.s32.totalorder %s39, 1
    %p219 = por %p217, %p218
    %p220 = scmp.ne.s32.totalorder %s211, %s212
    %p221 = scmp.eq.s32.totalorder %s39, 0
    %p222 = por %p220, %p221
    %p223 = scmp.ne.s32.totalorder %s211, %s212
    %p224 = scmp.eq.s32.totalorder %s40, 1
    %p225 = por %p223, %p224
    %p227 = scmp.ne.s32.totalorder %s212, %s226
    %p228 = scmp.eq.s32.totalorder %s40, 0
    %p229 = por %p227, %p228
    %s231 = sadd.s32 %s230, 1
    %p234 = scmp.eq.s32.totalorder %s34, 1
    %p235 = scmp.ne.s32.totalorder %s230, %s232
    %p236 = scmp.eq.s32.totalorder %s34, 0
    %p237 = por %p235, %p236
    %p238 = scmp.ne.s32.totalorder %s230, %s232
    %p239 = scmp.eq.s32.totalorder %s39, 1
    %p240 = por %p238, %p239
    %p241 = scmp.ne.s32.totalorder %s232, %s233
    %p242 = scmp.eq.s32.totalorder %s39, 0
    %p243 = por %p241, %p242
    %p244 = scmp.ne.s32.totalorder %s232, %s233
    %p245 = scmp.eq.s32.totalorder %s40, 1
    %p246 = por %p244, %p245
    %p248 = scmp.ne.s32.totalorder %s233, %s247
    %p249 = scmp.eq.s32.totalorder %s40, 0
    %p250 = por %p248, %p249
    %s252 = sadd.s32 %s251, 1
    %p255 = scmp.eq.s32.totalorder %s34, 1
    %p256 = scmp.ne.s32.totalorder %s251, %s253
    %p257 = scmp.eq.s32.totalorder %s34, 0
    %p258 = por %p256, %p257
    %p259 = scmp.ne.s32.totalorder %s251, %s253
    %p260 = scmp.eq.s32.totalorder %s39, 1
    %p261 = por %p259, %p260
    %p262 = scmp.ne.s32.totalorder %s253, %s254
    %p263 = scmp.eq.s32.totalorder %s39, 0
    %p264 = por %p262, %p263
    %p265 = scmp.ne.s32.totalorder %s253, %s254
    %p266 = scmp.eq.s32.totalorder %s40, 1
    %p267 = por %p265, %p266
    %p269 = scmp.ne.s32.totalorder %s254, %s268
    %p270 = scmp.eq.s32.totalorder %s40, 0
    %p271 = por %p269, %p270
    %s273 = sadd.s32 %s272, 1
    %p276 = scmp.eq.s32.totalorder %s34, 1
    %p277 = scmp.ne.s32.totalorder %s272, %s274
    %p278 = scmp.eq.s32.totalorder %s34, 0
    %p279 = por %p277, %p278
    %p280 = scmp.ne.s32.totalorder %s272, %s274
    %p281 = scmp.eq.s32.totalorder %s39, 1
    %p282 = por %p280, %p281
    %p283 = scmp.ne.s32.totalorder %s274, %s275
    %p284 = scmp.eq.s32.totalorder %s39, 0
    %p285 = por %p283, %p284
    %p286 = scmp.ne.s32.totalorder %s274, %s275
    %p287 = scmp.eq.s32.totalorder %s40, 1
    %p288 = por %p286, %p287
    %p290 = scmp.ne.s32.totalorder %s275, %s289
    %p291 = scmp.eq.s32.totalorder %s40, 0
    %p292 = por %p290, %p291
    %s294 = sadd.s32 %s293, 1
    %p297 = scmp.eq.s32.totalorder %s34, 1
    %p298 = scmp.ne.s32.totalorder %s293, %s295
    %p299 = scmp.eq.s32.totalorder %s34, 0
    %p300 = por %p298, %p299
    %p301 = scmp.ne.s32.totalorder %s293, %s295
    %p302 = scmp.eq.s32.totalorder %s39, 1
    %p303 = por %p301, %p302
    %p304 = scmp.ne.s32.totalorder %s295, %s296
    %p305 = scmp.eq.s32.totalorder %s39, 0
    %p306 = por %p304, %p305
    %p307 = scmp.ne.s32.totalorder %s295, %s296
    %p308 = scmp.eq.s32.totalorder %s40, 1
    %p309 = por %p307, %p308
    %p311 = scmp.ne.s32.totalorder %s296, %s310
    %p312 = scmp.eq.s32.totalorder %s40, 0
    %p313 = por %p311, %p312
    %s315 = sadd.s32 %s314, 1
    %p318 = scmp.eq.s32.totalorder %s34, 1
    %p319 = scmp.ne.s32.totalorder %s314, %s316
    %p320 = scmp.eq.s32.totalorder %s34, 0
    %p321 = por %p319, %p320
    %p322 = scmp.ne.s32.totalorder %s314, %s316
    %p323 = scmp.eq.s32.totalorder %s39, 1
    %p324 = por %p322, %p323
    %p325 = scmp.ne.s32.totalorder %s316, %s317
    %p326 = scmp.eq.s32.totalorder %s39, 0
    %p327 = por %p325, %p326
    %p328 = scmp.ne.s32.totalorder %s316, %s317
    %p329 = scmp.eq.s32.totalorder %s40, 1
    %p330 = por %p328, %p329
    %p332 = scmp.ne.s32.totalorder %s317, %s331
    %p333 = scmp.eq.s32.totalorder %s40, 0
    %p334 = por %p332, %p333
    %s336 = sadd.s32 %s335, 1
    %p339 = scmp.eq.s32.totalorder %s34, 1
    %p340 = scmp.ne.s32.totalorder %s335, %s337
    %p341 = scmp.eq.s32.totalorder %s34, 0
    %p342 = por %p340, %p341
    %p343 = scmp.ne.s32.totalorder %s335, %s337
    %p344 = scmp.eq.s32.totalorder %s39, 1
    %p345 = por %p343, %p344
    %p346 = scmp.ne.s32.totalorder %s337, %s338
    %p347 = scmp.eq.s32.totalorder %s39, 0
    %p348 = por %p346, %p347
    %p349 = scmp.ne.s32.totalorder %s337, %s338
    %p350 = scmp.eq.s32.totalorder %s40, 1
    %p351 = por %p349, %p350
    %p353 = scmp.ne.s32.totalorder %s338, %s352
    %p354 = scmp.eq.s32.totalorder %s40, 0
    %p355 = por %p353, %p354
    %s357 = sadd.s32 %s356, 1
    %p360 = scmp.eq.s32.totalorder %s34, 1
    %p361 = scmp.ne.s32.totalorder %s356, %s358
    %p362 = scmp.eq.s32.totalorder %s34, 0
    %p363 = por %p361, %p362
    %p364 = scmp.ne.s32.totalorder %s356, %s358
    %p365 = scmp.eq.s32.totalorder %s39, 1
    %p366 = por %p364, %p365
    %p367 = scmp.ne.s32.totalorder %s358, %s359
    %p368 = scmp.eq.s32.totalorder %s39, 0
    %p369 = por %p367, %p368
    %p370 = scmp.ne.s32.totalorder %s358, %s359
    %p371 = scmp.eq.s32.totalorder %s40, 1
    %p372 = por %p370, %p371
    %p374 = scmp.ne.s32.totalorder %s359, %s373
    %p375 = scmp.eq.s32.totalorder %s40, 0
    %p376 = por %p374, %p375
    %s378 = sadd.s32 %s377, 1
    %p381 = scmp.eq.s32.totalorder %s34, 1
    %p382 = scmp.ne.s32.totalorder %s377, %s379
    %p383 = scmp.eq.s32.totalorder %s34, 0
    %p384 = por %p382, %p383
    %p385 = scmp.ne.s32.totalorder %s377, %s379
    %p386 = scmp.eq.s32.totalorder %s39, 1
    %p387 = por %p385, %p386
    %p388 = scmp.ne.s32.totalorder %s379, %s380
    %p389 = scmp.eq.s32.totalorder %s39, 0
    %p390 = por %p388, %p389
    %p391 = scmp.ne.s32.totalorder %s379, %s380
    %p392 = scmp.eq.s32.totalorder %s40, 1
    %p393 = por %p391, %p392
    %p395 = scmp.ne.s32.totalorder %s380, %s394
    %p396 = scmp.eq.s32.totalorder %s40, 0
    %p397 = por %p395, %p396
    %s399 = sadd.s32 %s398, 1
    %p402 = scmp.eq.s32.totalorder %s34, 1
    %p403 = scmp.ne.s32.totalorder %s398, %s400
    %p404 = scmp.eq.s32.totalorder %s34, 0
    %p405 = por %p403, %p404
    %p406 = scmp.ne.s32.totalorder %s398, %s400
    %p407 = scmp.eq.s32.totalorder %s39, 1
    %p408 = por %p406, %p407
    %p409 = scmp.ne.s32.totalorder %s400, %s401
    %p410 = scmp.eq.s32.totalorder %s39, 0
    %p411 = por %p409, %p410
    %p412 = scmp.ne.s32.totalorder %s400, %s401
    %p413 = scmp.eq.s32.totalorder %s40, 1
    %p414 = por %p412, %p413
    %p416 = scmp.ne.s32.totalorder %s401, %s415
    %p417 = scmp.eq.s32.totalorder %s40, 0
    %p418 = por %p416, %p417
    %s420 = sadd.s32 %s419, 1
    %p423 = scmp.eq.s32.totalorder %s34, 1
    %p424 = scmp.ne.s32.totalorder %s419, %s421
    %p425 = scmp.eq.s32.totalorder %s34, 0
    %p426 = por %p424, %p425
    %p427 = scmp.ne.s32.totalorder %s419, %s421
    %p428 = scmp.eq.s32.totalorder %s39, 1
    %p429 = por %p427, %p428
    %p430 = scmp.ne.s32.totalorder %s421, %s422
    %p431 = scmp.eq.s32.totalorder %s39, 0
    %p432 = por %p430, %p431
    %p433 = scmp.ne.s32.totalorder %s421, %s422
    %p434 = scmp.eq.s32.totalorder %s40, 1
    %p435 = por %p433, %p434
    %p437 = scmp.ne.s32.totalorder %s422, %s436
    %p438 = scmp.eq.s32.totalorder %s40, 0
    %p439 = por %p437, %p438
    %s441 = sadd.s32 %s440, 1
    %p444 = scmp.eq.s32.totalorder %s34, 1
    %p445 = scmp.ne.s32.totalorder %s440, %s442
    %p446 = scmp.eq.s32.totalorder %s34, 0
    %p447 = por %p445, %p446
    %p448 = scmp.ne.s32.totalorder %s440, %s442
    %p449 = scmp.eq.s32.totalorder %s39, 1
    %p450 = por %p448, %p449
    %p451 = scmp.ne.s32.totalorder %s442, %s443
    %p452 = scmp.eq.s32.totalorder %s39, 0
    %p453 = por %p451, %p452
    %p454 = scmp.ne.s32.totalorder %s442, %s443
    %p455 = scmp.eq.s32.totalorder %s40, 1
    %p456 = por %p454, %p455
    %p458 = scmp.ne.s32.totalorder %s443, %s457
    %p459 = scmp.eq.s32.totalorder %s40, 0
    %p460 = por %p458, %p459
    %s462 = sadd.s32 %s461, 1
    %p465 = scmp.eq.s32.totalorder %s34, 1
    %p466 = scmp.ne.s32.totalorder %s461, %s463
    %p467 = scmp.eq.s32.totalorder %s34, 0
    %p468 = por %p466, %p467
    %p469 = scmp.ne.s32.totalorder %s461, %s463
    %p470 = scmp.eq.s32.totalorder %s39, 1
    %p471 = por %p469, %p470
    %p472 = scmp.ne.s32.totalorder %s463, %s464
    %p473 = scmp.eq.s32.totalorder %s39, 0
    %p474 = por %p472, %p473
    %p475 = scmp.ne.s32.totalorder %s463, %s464
    %p476 = scmp.eq.s32.totalorder %s40, 1
    %p477 = por %p475, %p476
    %p479 = scmp.ne.s32.totalorder %s464, %s478
    %p480 = scmp.eq.s32.totalorder %s40, 0
    %p481 = por %p479, %p480
    %s483 = sadd.s32 %s482, 1
    %p486 = scmp.eq.s32.totalorder %s34, 1
    %p487 = scmp.ne.s32.totalorder %s482, %s484
    %p488 = scmp.eq.s32.totalorder %s34, 0
    %p489 = por %p487, %p488
    %p490 = scmp.ne.s32.totalorder %s482, %s484
    %p491 = scmp.eq.s32.totalorder %s39, 1
    %p492 = por %p490, %p491
    %p493 = scmp.ne.s32.totalorder %s484, %s485
    %p494 = scmp.eq.s32.totalorder %s39, 0
    %p495 = por %p493, %p494
    %p496 = scmp.ne.s32.totalorder %s484, %s485
    %p497 = scmp.eq.s32.totalorder %s40, 1
    %p498 = por %p496, %p497
    %p500 = scmp.ne.s32.totalorder %s485, %s499
    %p501 = scmp.eq.s32.totalorder %s40, 0
    %p502 = por %p500, %p501
    %s504 = sadd.s32 %s503, 1
    %p507 = scmp.eq.s32.totalorder %s34, 1
    %p508 = scmp.ne.s32.totalorder %s503, %s505
    %p509 = scmp.eq.s32.totalorder %s34, 0
    %p510 = por %p508, %p509
    %p511 = scmp.ne.s32.totalorder %s503, %s505
    %p512 = scmp.eq.s32.totalorder %s39, 1
    %p513 = por %p511, %p512
    %p514 = scmp.ne.s32.totalorder %s505, %s506
    %p515 = scmp.eq.s32.totalorder %s39, 0
    %p516 = por %p514, %p515
    %p517 = scmp.ne.s32.totalorder %s505, %s506
    %p518 = scmp.eq.s32.totalorder %s40, 1
    %p519 = por %p517, %p518
    %p521 = scmp.ne.s32.totalorder %s506, %s520
    %p522 = scmp.eq.s32.totalorder %s40, 0
    %p523 = por %p521, %p522
    %s525 = sadd.s32 %s524, 1
    %p528 = scmp.eq.s32.totalorder %s34, 1
    %p529 = scmp.ne.s32.totalorder %s524, %s526
    %p530 = scmp.eq.s32.totalorder %s34, 0
    %p531 = por %p529, %p530
    %p532 = scmp.ne.s32.totalorder %s524, %s526
    %p533 = scmp.eq.s32.totalorder %s39, 1
    %p534 = por %p532, %p533
    %p535 = scmp.ne.s32.totalorder %s526, %s527
    %p536 = scmp.eq.s32.totalorder %s39, 0
    %p537 = por %p535, %p536
    %p538 = scmp.ne.s32.totalorder %s526, %s527
    %p539 = scmp.eq.s32.totalorder %s40, 1
    %p540 = por %p538, %p539
    %p542 = scmp.ne.s32.totalorder %s527, %s541
    %p543 = scmp.eq.s32.totalorder %s40, 0
    %p544 = por %p542, %p543
    %s546 = sadd.s32 %s545, 1
    %p549 = scmp.eq.s32.totalorder %s34, 1
    %p550 = scmp.ne.s32.totalorder %s545, %s547
    %p551 = scmp.eq.s32.totalorder %s34, 0
    %p552 = por %p550, %p551
    %p553 = scmp.ne.s32.totalorder %s545, %s547
    %p554 = scmp.eq.s32.totalorder %s39, 1
    %p555 = por %p553, %p554
    %p556 = scmp.ne.s32.totalorder %s547, %s548
    %p557 = scmp.eq.s32.totalorder %s39, 0
    %p558 = por %p556, %p557
    %p559 = scmp.ne.s32.totalorder %s547, %s548
    %p560 = scmp.eq.s32.totalorder %s40, 1
    %p561 = por %p559, %p560
    %p563 = scmp.ne.s32.totalorder %s548, %s562
    %p564 = scmp.eq.s32.totalorder %s40, 0
    %p565 = por %p563, %p564
    %s567 = sadd.s32 %s566, 1
    %p570 = scmp.eq.s32.totalorder %s34, 1
    %p571 = scmp.ne.s32.totalorder %s566, %s568
    %p572 = scmp.eq.s32.totalorder %s34, 0
    %p573 = por %p571, %p572
    %p574 = scmp.ne.s32.totalorder %s566, %s568
    %p575 = scmp.eq.s32.totalorder %s39, 1
    %p576 = por %p574, %p575
    %p577 = scmp.ne.s32.totalorder %s568, %s569
    %p578 = scmp.eq.s32.totalorder %s39, 0
    %p579 = por %p577, %p578
    %p580 = scmp.ne.s32.totalorder %s568, %s569
    %p581 = scmp.eq.s32.totalorder %s40, 1
    %p582 = por %p580, %p581
    %p584 = scmp.ne.s32.totalorder %s569, %s583
    %p585 = scmp.eq.s32.totalorder %s40, 0
    %p586 = por %p584, %p585
    %s588 = sadd.s32 %s587, 1
    %p591 = scmp.eq.s32.totalorder %s34, 1
    %p592 = scmp.ne.s32.totalorder %s587, %s589
    %p593 = scmp.eq.s32.totalorder %s34, 0
    %p594 = por %p592, %p593
    %p595 = scmp.ne.s32.totalorder %s587, %s589
    %p596 = scmp.eq.s32.totalorder %s39, 1
    %p597 = por %p595, %p596
    %p598 = scmp.ne.s32.totalorder %s589, %s590
    %p599 = scmp.eq.s32.totalorder %s39, 0
    %p600 = por %p598, %p599
    %p601 = scmp.ne.s32.totalorder %s589, %s590
    %p602 = scmp.eq.s32.totalorder %s40, 1
    %p603 = por %p601, %p602
    %p605 = scmp.ne.s32.totalorder %s590, %s604
    %p606 = scmp.eq.s32.totalorder %s40, 0
    %p607 = por %p605, %p606
    %s609 = sadd.s32 %s608, 1
    %p612 = scmp.eq.s32.totalorder %s34, 1
    %p613 = scmp.ne.s32.totalorder %s608, %s610
    %p614 = scmp.eq.s32.totalorder %s34, 0
    %p615 = por %p613, %p614
    %p616 = scmp.ne.s32.totalorder %s608, %s610
    %p617 = scmp.eq.s32.totalorder %s39, 1
    %p618 = por %p616, %p617
    %p619 = scmp.ne.s32.totalorder %s610, %s611
    %p620 = scmp.eq.s32.totalorder %s39, 0
    %p621 = por %p619, %p620
    %p622 = scmp.ne.s32.totalorder %s610, %s611
    %p623 = scmp.eq.s32.totalorder %s40, 1
    %p624 = por %p622, %p623
    %p626 = scmp.ne.s32.totalorder %s611, %s625
    %p627 = scmp.eq.s32.totalorder %s40, 0
    %p628 = por %p626, %p627
    %s630 = sadd.s32 %s629, 1
    %p633 = scmp.eq.s32.totalorder %s34, 1
    %p634 = scmp.ne.s32.totalorder %s629, %s631
    %p635 = scmp.eq.s32.totalorder %s34, 0
    %p636 = por %p634, %p635
    %p637 = scmp.ne.s32.totalorder %s629, %s631
    %p638 = scmp.eq.s32.totalorder %s39, 1
    %p639 = por %p637, %p638
    %p640 = scmp.ne.s32.totalorder %s631, %s632
    %p641 = scmp.eq.s32.totalorder %s39, 0
    %p642 = por %p640, %p641
    %p643 = scmp.ne.s32.totalorder %s631, %s632
    %p644 = scmp.eq.s32.totalorder %s40, 1
    %p645 = por %p643, %p644
    %p647 = scmp.ne.s32.totalorder %s632, %s646
    %p648 = scmp.eq.s32.totalorder %s40, 0
    %p649 = por %p647, %p648
    %s650 = ssub.s32 %s34, %s41
    %p651 = scmp.eq.s32.totalorder %s650, 0
    %s653 = sadd.s32 %s652, 1
    %s654 = scalar_select %p651, %s652, %s653
    %p657 = pneg %p651
    %p658 = scmp.eq.s32.totalorder %s34, 1
    %p659 = por %p657, %p658
    %p660 = scmp.ne.s32.totalorder %s652, %s655
    %p661 = scmp.eq.s32.totalorder %s34, 0
    %p662 = por %p660, %p661
    %p663 = scmp.ne.s32.totalorder %s652, %s655
    %p664 = scmp.eq.s32.totalorder %s39, 1
    %p665 = por %p663, %p664
    %p666 = scmp.ne.s32.totalorder %s655, %s656
    %p667 = scmp.eq.s32.totalorder %s39, 0
    %p668 = por %p666, %p667
    %p669 = scmp.ne.s32.totalorder %s655, %s656
    %p670 = scmp.eq.s32.totalorder %s40, 1
    %p671 = por %p669, %p670
    %p673 = scmp.ne.s32.totalorder %s656, %s672
    %p674 = scmp.eq.s32.totalorder %s40, 0
    %p675 = por %p673, %p674
    %p676 = scmp.le.s32.totalorder 1, %s34
    %p677 = scmp.lt.s32.totalorder %s34, 3
    %p678 = pnand %p676, %p677
    %p679 = pneg %p678
    // Predicated region
    $region9: #{rssm_forward.1} parent=5 // pred_check
      _
    $region10: #{rssm_forward.1} parent=5 // pred_check_branch
      %681 = sbr.rel (%p678) target = $region12
    $region11: #{rssm_forward.1} parent=5 // pred_region
      %s682 = ssub.s32 %s34, 1
      // Predicated region
      $region13: #{rssm_forward.1} parent=11 // pred_check
        %p683 = pneg %p159
      $region14: #{rssm_forward.1} parent=11 // pred_check_branch
        %685 = sbr.rel (%p683) target = $region16
      $region15: #{rssm_forward.1} parent=11 // pred_region
        _
      $region16: #{rssm_forward.1} parent=11 // pred_fallthru
        _
      // Predicated region
      $region17: #{rssm_forward.1} parent=11 // pred_check
        %p686 = pneg %p180
      $region18: #{rssm_forward.1} parent=11 // pred_check_branch
        %688 = sbr.rel (%p686) target = $region20
      $region19: #{rssm_forward.1} parent=11 // pred_region
        _
      $region20: #{rssm_forward.1} parent=11 // pred_fallthru
        _
      // Predicated region
      $region21: #{rssm_forward.1} parent=11 // pred_check
        %p689 = pneg %p201
      $region22: #{rssm_forward.1} parent=11 // pred_check_branch
        %691 = sbr.rel (%p689) target = $region24
      $region23: #{rssm_forward.1} parent=11 // pred_region
        _
      $region24: #{rssm_forward.1} parent=11 // pred_fallthru
        _
      // Predicated region
      $region25: #{rssm_forward.1} parent=11 // pred_check
        %p692 = pneg %p222
      $region26: #{rssm_forward.1} parent=11 // pred_check_branch
        %694 = sbr.rel (%p692) target = $region28
      $region27: #{rssm_forward.1} parent=11 // pred_region
        _
      $region28: #{rssm_forward.1} parent=11 // pred_fallthru
        _
      // Predicated region
      $region29: #{rssm_forward.1} parent=11 // pred_check
        %p695 = pneg %p243
      $region30: #{rssm_forward.1} parent=11 // pred_check_branch
        %697 = sbr.rel (%p695) target = $region32
      $region31: #{rssm_forward.1} parent=11 // pred_region
        _
      $region32: #{rssm_forward.1} parent=11 // pred_fallthru
        _
      // Predicated region
      $region33: #{rssm_forward.1} parent=11 // pred_check
        %p698 = pneg %p264
      $region34: #{rssm_forward.1} parent=11 // pred_check_branch
        %700 = sbr.rel (%p698) target = $region36
      $region35: #{rssm_forward.1} parent=11 // pred_region
        _
      $region36: #{rssm_forward.1} parent=11 // pred_fallthru
        _
      // Predicated region
      $region37: #{rssm_forward.1} parent=11 // pred_check
        %p701 = pneg %p285
      $region38: #{rssm_forward.1} parent=11 // pred_check_branch
        %703 = sbr.rel (%p701) target = $region40
      $region39: #{rssm_forward.1} parent=11 // pred_region
        _
      $region40: #{rssm_forward.1} parent=11 // pred_fallthru
        _
      // Predicated region
      $region41: #{rssm_forward.1} parent=11 // pred_check
        %p704 = pneg %p306
      $region42: #{rssm_forward.1} parent=11 // pred_check_branch
        %706 = sbr.rel (%p704) target = $region44
      $region43: #{rssm_forward.1} parent=11 // pred_region
        _
      $region44: #{rssm_forward.1} parent=11 // pred_fallthru
        _
      // Predicated region
      $region45: #{rssm_forward.1} parent=11 // pred_check
        %p707 = pneg %p327
      $region46: #{rssm_forward.1} parent=11 // pred_check_branch
        %709 = sbr.rel (%p707) target = $region48
      $region47: #{rssm_forward.1} parent=11 // pred_region
        _
      $region48: #{rssm_forward.1} parent=11 // pred_fallthru
        _
      // Predicated region
      $region49: #{rssm_forward.1} parent=11 // pred_check
        %p710 = pneg %p348
      $region50: #{rssm_forward.1} parent=11 // pred_check_branch
        %712 = sbr.rel (%p710) target = $region52
      $region51: #{rssm_forward.1} parent=11 // pred_region
        _
      $region52: #{rssm_forward.1} parent=11 // pred_fallthru
        _
      // Predicated region
      $region53: #{rssm_forward.1} parent=11 // pred_check
        %p713 = pneg %p369
      $region54: #{rssm_forward.1} parent=11 // pred_check_branch
        %715 = sbr.rel (%p713) target = $region56
      $region55: #{rssm_forward.1} parent=11 // pred_region
        _
      $region56: #{rssm_forward.1} parent=11 // pred_fallthru
        _
      // Predicated region
      $region57: #{rssm_forward.1} parent=11 // pred_check
        %p716 = pneg %p390
      $region58: #{rssm_forward.1} parent=11 // pred_check_branch
        %718 = sbr.rel (%p716) target = $region60
      $region59: #{rssm_forward.1} parent=11 // pred_region
        _
      $region60: #{rssm_forward.1} parent=11 // pred_fallthru
        _
      // Predicated region
      $region61: #{rssm_forward.1} parent=11 // pred_check
        %p719 = pneg %p411
      $region62: #{rssm_forward.1} parent=11 // pred_check_branch
        %721 = sbr.rel (%p719) target = $region64
      $region63: #{rssm_forward.1} parent=11 // pred_region
        _
      $region64: #{rssm_forward.1} parent=11 // pred_fallthru
        _
      // Predicated region
      $region65: #{rssm_forward.1} parent=11 // pred_check
        %p722 = pneg %p432
      $region66: #{rssm_forward.1} parent=11 // pred_check_branch
        %724 = sbr.rel (%p722) target = $region68
      $region67: #{rssm_forward.1} parent=11 // pred_region
        _
      $region68: #{rssm_forward.1} parent=11 // pred_fallthru
        _
      // Predicated region
      $region69: #{rssm_forward.1} parent=11 // pred_check
        %p725 = pneg %p453
      $region70: #{rssm_forward.1} parent=11 // pred_check_branch
        %727 = sbr.rel (%p725) target = $region72
      $region71: #{rssm_forward.1} parent=11 // pred_region
        _
      $region72: #{rssm_forward.1} parent=11 // pred_fallthru
        _
      // Predicated region
      $region73: #{rssm_forward.1} parent=11 // pred_check
        %p728 = pneg %p474
      $region74: #{rssm_forward.1} parent=11 // pred_check_branch
        %730 = sbr.rel (%p728) target = $region76
      $region75: #{rssm_forward.1} parent=11 // pred_region
        _
      $region76: #{rssm_forward.1} parent=11 // pred_fallthru
        _
      // Predicated region
      $region77: #{rssm_forward.1} parent=11 // pred_check
        %p731 = pneg %p495
      $region78: #{rssm_forward.1} parent=11 // pred_check_branch
        %733 = sbr.rel (%p731) target = $region80
      $region79: #{rssm_forward.1} parent=11 // pred_region
        _
      $region80: #{rssm_forward.1} parent=11 // pred_fallthru
        _
      // Predicated region
      $region81: #{rssm_forward.1} parent=11 // pred_check
        %p734 = pneg %p516
      $region82: #{rssm_forward.1} parent=11 // pred_check_branch
        %736 = sbr.rel (%p734) target = $region84
      $region83: #{rssm_forward.1} parent=11 // pred_region
        _
      $region84: #{rssm_forward.1} parent=11 // pred_fallthru
        _
      // Predicated region
      $region85: #{rssm_forward.1} parent=11 // pred_check
        %p737 = pneg %p537
      $region86: #{rssm_forward.1} parent=11 // pred_check_branch
        %739 = sbr.rel (%p737) target = $region88
      $region87: #{rssm_forward.1} parent=11 // pred_region
        _
      $region88: #{rssm_forward.1} parent=11 // pred_fallthru
        _
      // Predicated region
      $region89: #{rssm_forward.1} parent=11 // pred_check
        %p740 = pneg %p558
      $region90: #{rssm_forward.1} parent=11 // pred_check_branch
        %742 = sbr.rel (%p740) target = $region92
      $region91: #{rssm_forward.1} parent=11 // pred_region
        _
      $region92: #{rssm_forward.1} parent=11 // pred_fallthru
        _
      // Predicated region
      $region93: #{rssm_forward.1} parent=11 // pred_check
        %p743 = pneg %p579
      $region94: #{rssm_forward.1} parent=11 // pred_check_branch
        %745 = sbr.rel (%p743) target = $region96
      $region95: #{rssm_forward.1} parent=11 // pred_region
        _
      $region96: #{rssm_forward.1} parent=11 // pred_fallthru
        _
      // Predicated region
      $region97: #{rssm_forward.1} parent=11 // pred_check
        %p746 = pneg %p600
      $region98: #{rssm_forward.1} parent=11 // pred_check_branch
        %748 = sbr.rel (%p746) target = $region100
      $region99: #{rssm_forward.1} parent=11 // pred_region
        _
      $region100: #{rssm_forward.1} parent=11 // pred_fallthru
        _
      // Predicated region
      $region101: #{rssm_forward.1} parent=11 // pred_check
        %p749 = pneg %p621
      $region102: #{rssm_forward.1} parent=11 // pred_check_branch
        %751 = sbr.rel (%p749) target = $region104
      $region103: #{rssm_forward.1} parent=11 // pred_region
        _
      $region104: #{rssm_forward.1} parent=11 // pred_fallthru
        _
      // Predicated region
      $region105: #{rssm_forward.1} parent=11 // pred_check
        %p752 = pneg %p642
      $region106: #{rssm_forward.1} parent=11 // pred_check_branch
        %754 = sbr.rel (%p752) target = $region108
      $region107: #{rssm_forward.1} parent=11 // pred_region
        _
      $region108: #{rssm_forward.1} parent=11 // pred_fallthru
        _
    $region12: #{rssm_forward.1} parent=5 // pred_fallthru
      _
    %p755 = scmp.lt.s32.totalorder %s34, 2
    // Predicated region
    $region109: #{rssm_forward.1} parent=5 // pred_check
      %p756 = pneg %p755
    $region110: #{rssm_forward.1} parent=5 // pred_check_branch
      %758 = sbr.rel (%p756) target = $region112
    $region111: #{rssm_forward.1} parent=5 // pred_region
      // Predicated region
      $region113: #{rssm_forward.1} parent=111 // pred_check
        %p759 = pneg %p54
      $region114: #{rssm_forward.1} parent=111 // pred_check_branch
        %761 = sbr.rel (%p759) target = $region116
      $region115: #{rssm_forward.1} parent=111 // pred_region
        %s762 = smul.u32 16, %s34
        %p763 = scmp.lt.s32.totalorder %s762, 31
        %s764 = scalar_select %p763, %s762, 31
        %s765 = smul.addr %s764, 8
        %s766 = scalar_lea.vmem %s0, %s765
        %s767 = smul.u32 16, %s34
      $region116: #{rssm_forward.1} parent=111 // pred_fallthru
        _
      // Predicated region
      $region117: #{rssm_forward.1} parent=111 // pred_check
        %p768 = pneg %p80
      $region118: #{rssm_forward.1} parent=111 // pred_check_branch
        %770 = sbr.rel (%p768) target = $region120
      $region119: #{rssm_forward.1} parent=111 // pred_region
        %s771 = smul.u32 16, %s34
        %p772 = scmp.lt.s32.totalorder %s771, 31
        %s773 = scalar_select %p772, %s771, 31
        %s774 = smul.addr %s773, 8
        %s775 = scalar_lea.vmem %s1, %s774
        %s776 = smul.u32 16, %s34
      $region120: #{rssm_forward.1} parent=111 // pred_fallthru
        _
      // Predicated region
      $region121: #{rssm_forward.1} parent=111 // pred_check
        %p777 = pneg %p106
      $region122: #{rssm_forward.1} parent=111 // pred_check_branch
        %779 = sbr.rel (%p777) target = $region124
      $region123: #{rssm_forward.1} parent=111 // pred_region
        %s780 = smul.u32 16, %s34
        %p781 = scmp.lt.s32.totalorder %s780, 31
        %s782 = scalar_select %p781, %s780, 31
        %s783 = smul.addr %s782, 8
        %s784 = scalar_lea.vmem %s2, %s783
        %s785 = smul.u32 16, %s34
      $region124: #{rssm_forward.1} parent=111 // pred_fallthru
        _
      // Predicated region
      $region125: #{rssm_forward.1} parent=111 // pred_check
        %p786 = pneg %p132
      $region126: #{rssm_forward.1} parent=111 // pred_check_branch
        %788 = sbr.rel (%p786) target = $region128
      $region127: #{rssm_forward.1} parent=111 // pred_region
        %s789 = smul.u32 16, %s34
        %p790 = scmp.lt.s32.totalorder %s789, 31
        %s791 = scalar_select %p790, %s789, 31
        %s792 = smul.addr %s791, 8
        %s793 = scalar_lea.vmem %s3, %s792
        %s794 = smul.u32 16, %s34
      $region128: #{rssm_forward.1} parent=111 // pred_fallthru
        _
    $region112: #{rssm_forward.1} parent=5 // pred_fallthru
      _
    %p795 = scmp.le.s32.totalorder 1, %s34
    %p796 = scmp.lt.s32.totalorder %s34, 3
    %p797 = pnand %p795, %p796
    %p798 = pneg %p797
    // Predicated region
    $region129: #{rssm_forward.1} parent=5 // pred_check
      _
    $region130: #{rssm_forward.1} parent=5 // pred_check_branch
      %800 = sbr.rel (%p797) target = $region132
    $region131: #{rssm_forward.1} parent=5 // pred_region
      %s801 = ssub.s32 %s34, 1
      %s802 = smul.u32 16, %s39
      %p803 = scmp.lt.s32.totalorder %s802, 31
      %s804 = scalar_select %p803, %s802, 31
      %s805 = smul.addr %s804, 8
      %s806 = scalar_lea.vmem %s0, %s805
      %p807 = pneg %p60
      %p808 = pneg %p57
      %s809 = smul.u32 16, %s39
      %p810 = scmp.lt.s32.totalorder %s809, 31
      %s811 = scalar_select %p810, %s809, 31
      %s812 = smul.addr %s811, 8
      %s813 = scalar_lea.vmem %s1, %s812
      %p814 = pneg %p86
      %p815 = pneg %p83
      %s816 = smul.u32 16, %s39
      %p817 = scmp.lt.s32.totalorder %s816, 31
      %s818 = scalar_select %p817, %s816, 31
      %s819 = smul.addr %s818, 8
      %s820 = scalar_lea.vmem %s2, %s819
      %p821 = pneg %p112
      %p822 = pneg %p109
      %s823 = smul.u32 16, %s39
      %p824 = scmp.lt.s32.totalorder %s823, 31
      %s825 = scalar_select %p824, %s823, 31
      %s826 = smul.addr %s825, 8
      %s827 = scalar_lea.vmem %s3, %s826
      %p828 = pneg %p138
      %p829 = pneg %p135
      %p830 = pneg %p159
      %p831 = pneg %p156
      %p832 = pneg %p180
      %p833 = pneg %p177
      %p834 = pneg %p201
      %p835 = pneg %p198
      %p836 = pneg %p222
      %p837 = pneg %p219
      %p838 = pneg %p243
      %p839 = pneg %p240
      %p840 = pneg %p264
      %p841 = pneg %p261
      %p842 = pneg %p285
      %p843 = pneg %p282
      %p844 = pneg %p306
      %p845 = pneg %p303
      %p846 = pneg %p327
      %p847 = pneg %p324
      %p848 = pneg %p348
      %p849 = pneg %p345
      %p850 = pneg %p369
      %p851 = pneg %p366
      %p852 = pneg %p390
      %p853 = pneg %p387
      %p854 = pneg %p411
      %p855 = pneg %p408
      %p856 = pneg %p432
      %p857 = pneg %p429
      %p858 = pneg %p453
      %p859 = pneg %p450
      %p860 = pneg %p474
      %p861 = pneg %p471
      %p862 = pneg %p495
      %p863 = pneg %p492
      %p864 = pneg %p516
      %p865 = pneg %p513
      %p866 = pneg %p537
      %p867 = pneg %p534
      %p868 = pneg %p558
      %p869 = pneg %p555
      %p870 = pneg %p579
      %p871 = pneg %p576
      %p872 = pneg %p600
      %p873 = pneg %p597
      %p874 = pneg %p621
      %p875 = pneg %p618
      %p876 = pneg %p642
      %p877 = pneg %p639
      %p878 = pneg %p668
      %p879 = pneg %p665
      %s880 = smul.u32 16, %s39
      %p881 = scmp.lt.s32.totalorder %s880, 31
      %s882 = scalar_select %p881, %s880, 31
      %s883 = smul.addr %s882, 2
      %s884 = smul.addr %s883, 8
      %s885 = scalar_lea.vmem %s28, %s884
      %s886 = smul.u32 16, %s39
      %p887 = scmp.lt.s32.totalorder %s886, 31
      %s888 = scalar_select %p887, %s886, 31
      %s889 = smul.addr %s888, 8
      %s890 = scalar_lea.vmem %s0, %s889
      %s891 = smul.u32 16, %s39
      %s892 = smul.u32 16, %s39
      %p893 = scmp.lt.s32.totalorder %s892, 31
      %s894 = scalar_select %p893, %s892, 31
      %s895 = smul.addr %s894, 8
      %s896 = scalar_lea.vmem %s1, %s895
      %s897 = smul.u32 16, %s39
      %s898 = smul.u32 16, %s39
      %p899 = scmp.lt.s32.totalorder %s898, 31
      %s900 = scalar_select %p899, %s898, 31
      %s901 = smul.addr %s900, 8
      %s902 = scalar_lea.vmem %s2, %s901
      %s903 = smul.u32 16, %s39
      %s904 = smul.u32 16, %s39
      %p905 = scmp.lt.s32.totalorder %s904, 31
      %s906 = scalar_select %p905, %s904, 31
      %s907 = smul.addr %s906, 8
      %s908 = scalar_lea.vmem %s3, %s907
      %s909 = smul.u32 16, %s39
      %s910 = smul.u32 16, %s39
      %p911 = scmp.lt.s32.totalorder %s910, 31
      %s912 = scalar_select %p911, %s910, 31
      %s913 = smul.addr %s912, 2
      %s914 = smul.addr %s913, 8
      %s915 = scalar_lea.vmem %s28, %s914
      %s916 = smul.u32 16, %s39
      %v917 = vld [vmem:[%s890] sm:$0xff]
      %v918 = vld [vmem:[%s890 + $0x8] sm:$0xff]
      %v919 = vld [vmem:[%s890 + $0x10] sm:$0xff]
      %v920 = vld [vmem:[%s890 + $0x18] sm:$0xff]
      %v921 = vld [vmem:[%s890 + $0x20] sm:$0xff]
      %v922 = vld [vmem:[%s890 + $0x28] sm:$0xff]
      %v923 = vld [vmem:[%s890 + $0x30] sm:$0xff]
      %v924 = vld [vmem:[%s890 + $0x38] sm:$0xff]
      %v925 = vld [vmem:[%s890 + $0x40] sm:$0xff]
      %v926 = vld [vmem:[%s890 + $0x48] sm:$0xff]
      %v927 = vld [vmem:[%s890 + $0x50] sm:$0xff]
      %v928 = vld [vmem:[%s890 + $0x58] sm:$0xff]
      %v929 = vld [vmem:[%s890 + $0x60] sm:$0xff]
      %v930 = vld [vmem:[%s890 + $0x68] sm:$0xff]
      %v931 = vld [vmem:[%s890 + $0x70] sm:$0xff]
      %v932 = vld [vmem:[%s890 + $0x78] sm:$0xff]
      %v933 = vld [vmem:[%s896] sm:$0xff]
      %v934 = vld [vmem:[%s896 + $0x8] sm:$0xff]
      %v935 = vld [vmem:[%s896 + $0x10] sm:$0xff]
      %v936 = vld [vmem:[%s896 + $0x18] sm:$0xff]
      %v937 = vld [vmem:[%s896 + $0x20] sm:$0xff]
      %v938 = vld [vmem:[%s896 + $0x28] sm:$0xff]
      %v939 = vld [vmem:[%s896 + $0x30] sm:$0xff]
      %v940 = vld [vmem:[%s896 + $0x38] sm:$0xff]
      %v941 = vld [vmem:[%s896 + $0x40] sm:$0xff]
      %v942 = vld [vmem:[%s896 + $0x48] sm:$0xff]
      %v943 = vld [vmem:[%s896 + $0x50] sm:$0xff]
      %v944 = vld [vmem:[%s896 + $0x58] sm:$0xff]
      %v945 = vld [vmem:[%s896 + $0x60] sm:$0xff]
      %v946 = vld [vmem:[%s896 + $0x68] sm:$0xff]
      %v947 = vld [vmem:[%s896 + $0x70] sm:$0xff]
      %v948 = vld [vmem:[%s896 + $0x78] sm:$0xff]
      %v949 = vld [vmem:[%s902] sm:$0xff]
      %v950 = vld [vmem:[%s902 + $0x8] sm:$0xff]
      %v951 = vld [vmem:[%s902 + $0x10] sm:$0xff]
      %v952 = vld [vmem:[%s902 + $0x18] sm:$0xff]
      %v953 = vld [vmem:[%s902 + $0x20] sm:$0xff]
      %v954 = vld [vmem:[%s902 + $0x28] sm:$0xff]
      %v955 = vld [vmem:[%s902 + $0x30] sm:$0xff]
      %v956 = vld [vmem:[%s902 + $0x38] sm:$0xff]
      %v957 = vld [vmem:[%s902 + $0x40] sm:$0xff]
      %v958 = vld [vmem:[%s902 + $0x48] sm:$0xff]
      %v959 = vld [vmem:[%s902 + $0x50] sm:$0xff]
      %v960 = vld [vmem:[%s902 + $0x58] sm:$0xff]
      %v961 = vld [vmem:[%s902 + $0x60] sm:$0xff]
      %v962 = vld [vmem:[%s902 + $0x68] sm:$0xff]
      %v963 = vld [vmem:[%s902 + $0x70] sm:$0xff]
      %v964 = vld [vmem:[%s902 + $0x78] sm:$0xff]
      %v965 = vld [vmem:[%s908] sm:$0xff]
      %v966 = vld [vmem:[%s908 + $0x8] sm:$0xff]
      %v967 = vld [vmem:[%s908 + $0x10] sm:$0xff]
      %v968 = vld [vmem:[%s908 + $0x18] sm:$0xff]
      %v969 = vld [vmem:[%s908 + $0x20] sm:$0xff]
      %v970 = vld [vmem:[%s908 + $0x28] sm:$0xff]
      %v971 = vld [vmem:[%s908 + $0x30] sm:$0xff]
      %v972 = vld [vmem:[%s908 + $0x38] sm:$0xff]
      %v973 = vld [vmem:[%s908 + $0x40] sm:$0xff]
      %v974 = vld [vmem:[%s908 + $0x48] sm:$0xff]
      %v975 = vld [vmem:[%s908 + $0x50] sm:$0xff]
      %v976 = vld [vmem:[%s908 + $0x58] sm:$0xff]
      %v977 = vld [vmem:[%s908 + $0x60] sm:$0xff]
      %v978 = vld [vmem:[%s908 + $0x68] sm:$0xff]
      %v979 = vld [vmem:[%s908 + $0x70] sm:$0xff]
      %v980 = vld [vmem:[%s908 + $0x78] sm:$0xff]
      %v981 = vld [vmem:[%s4] sm:$0xff]
      %v982 = vld [vmem:[%s4 + $0x8] sm:$0xff]
      %v983 = vld [vmem:[%s4 + $0x10] sm:$0xff]
      %v984 = vld [vmem:[%s4 + $0x18] sm:$0xff]
      %v985 = vld [vmem:[%s4 + $0x20] sm:$0xff]
      %v986 = vld [vmem:[%s4 + $0x28] sm:$0xff]
      %v987 = vld [vmem:[%s4 + $0x30] sm:$0xff]
      %v988 = vld [vmem:[%s4 + $0x38] sm:$0xff]
      %vm989 = vcmask 130048
      %v991 = vsel %vm989, %v917, 0
      %v994 = vsel %vm989, %v918, 0
      %v997 = vsel %vm989, %v919, 0
      %v1000 = vsel %vm989, %v920, 0
      %v1003 = vsel %vm989, %v921, 0
      %v1006 = vsel %vm989, %v922, 0
      %v1009 = vsel %vm989, %v923, 0
      %v1012 = vsel %vm989, %v924, 0
      %v1015 = vsel %vm989, %v925, 0
      %v1018 = vsel %vm989, %v926, 0
      %v1021 = vsel %vm989, %v927, 0
      %v1024 = vsel %vm989, %v928, 0
      %v1027 = vsel %vm989, %v929, 0
      %v1030 = vsel %vm989, %v930, 0
      %v1033 = vsel %vm989, %v931, 0
      %v1036 = vsel %vm989, %v932, 0
      %1038 = vmatprep.subr.mxu0 %v982
      %1039 = vmatpush1.msra.mxu0 %v981
      %1040 = vmatprep.subr.mxu0 %v986
      %1041 = vmatpush1.msra.mxu0 %v985
      %1042 = vmatprep.subr.mxu0 0.0
      %1043 = vmatpush1.msra.mxu0 0.0
      %1044 = vmatprep.subr.mxu0 0.0
      %1045 = vmatpush1.msra.mxu0 0.0
      %1046 = vmatprep.subr.mxu0 0.0
      %1047 = vmatpush1.msra.mxu0 0.0
      %1048 = vmatprep.subr.mxu0 0.0
      %1049 = vmatpush1.msra.mxu0 0.0
      %1050 = vmatprep.subr.mxu0 0.0
      %1051 = vmatpush1.msra.mxu0 0.0
      %1052 = vmatprep.subr.mxu0 0.0
      %1053 = vmatpush1.msra.mxu0 0.0
      %1054 = vmatprep.subr.mxu0 0.0
      %1055 = vmatpush1.msra.mxu0 0.0
      %1056 = vmatprep.subr.mxu0 0.0
      %1057 = vmatpush1.msra.mxu0 0.0
      %1058 = vmatprep.subr.mxu0 0.0
      %1059 = vmatpush1.msra.mxu0 0.0
      %1060 = vmatprep.subr.mxu0 0.0
      %1061 = vmatpush1.msra.mxu0 0.0
      %1062 = vmatprep.subr.mxu0 0.0
      %1063 = vmatpush1.msra.mxu0 0.0
      %1064 = vmatprep.subr.mxu0 0.0
      %1065 = vmatpush1.msra.mxu0 0.0
      %1066 = vmatprep.subr.mxu0 0.0
      %1067 = vmatpush1.msra.mxu0 0.0
      %1068 = vmatprep.subr.mxu0 0.0
      %1069 = vmatpush1.msra.mxu0 0.0
      %1070 = vmatprep.subr.mxu0 0.0
      %1071 = vmatpush1.msra.mxu0 0.0
      %1072 = vmatprep.subr.mxu0 0.0
      %1073 = vmatpush1.msra.mxu0 0.0
      %1074 = vmatprep.subr.mxu0 0.0
      %1075 = vmatpush1.msra.mxu0 0.0
      %1076 = vmatprep.subr.mxu0 0.0
      %1077 = vmatpush1.msra.mxu0 0.0
      %1078 = vmatprep.subr.mxu0 0.0
      %1079 = vmatpush1.msra.mxu0 0.0
      %1080 = vmatprep.subr.mxu0 0.0
      %1081 = vmatpush1.msra.mxu0 0.0
      %1082 = vmatprep.subr.mxu0 0.0
      %1083 = vmatpush1.msra.mxu0 0.0
      %1084 = vmatprep.subr.mxu0 0.0
      %1085 = vmatpush1.msra.mxu0 0.0
      %1086 = vmatprep.subr.mxu0 0.0
      %1087 = vmatpush1.msra.mxu0 0.0
      %1088 = vmatprep.subr.mxu0 0.0
      %1089 = vmatpush1.msra.mxu0 0.0
      %1090 = vmatprep.subr.mxu0 0.0
      %1091 = vmatpush1.msra.mxu0 0.0
      %1092 = vmatprep.subr.mxu0 0.0
      %1093 = vmatpush1.msra.mxu0 0.0
      %1094 = vmatprep.subr.mxu0 0.0
      %1095 = vmatpush1.msra.mxu0 0.0
      %1096 = vmatprep.subr.mxu0 0.0
      %1097 = vmatpush1.msra.mxu0 0.0
      %1098 = vmatprep.subr.mxu0 0.0
      %1099 = vmatpush1.msra.mxu0 0.0
      %1100 = vmatprep.subr.mxu0 0.0
      %1101 = vmatpush1.msra.mxu0 0.0
      %1102 = vmatprep.mubr.f32.mxu0 0.0
      %1103 = vmatmul.mubr.f32.gmra.mrb[0].mxu0 %v991
      %v1104 = vpop.f32.mrb[0].mxu0
      %v1105 = vadd.f32 0.0, %v1104
      %v1106 = vpop.f32.mrb[0].mxu0
      %v1107 = vadd.f32 0.0, %v1106
      %1108 = vmatprep.mubr.f32.mxu0 0.0
      %1109 = vmatmul.mubr.f32.gmra.mrb[0].mxu0 %v994
      %v1110 = vpop.f32.mrb[0].mxu0
      %v1111 = vadd.f32 0.0, %v1110
      %v1112 = vpop.f32.mrb[0].mxu0
      %v1113 = vadd.f32 0.0, %v1112
      %1114 = vmatprep.mubr.f32.mxu0 0.0
      %1115 = vmatmul.mubr.f32.gmra.mrb[0].mxu0 %v997
      %v1116 = vpop.f32.mrb[0].mxu0
      %v1117 = vadd.f32 0.0, %v1116
      %v1118 = vpop.f32.mrb[0].mxu0
      %v1119 = vadd.f32 0.0, %v1118
      %1120 = vmatprep.mubr.f32.mxu0 0.0
      %1121 = vmatmul.mubr.f32.gmra.mrb[0].mxu0 %v1000
      %v1122 = vpop.f32.mrb[0].mxu0
      %v1123 = vadd.f32 0.0, %v1122
      %v1124 = vpop.f32.mrb[0].mxu0
      %v1125 = vadd.f32 0.0, %v1124
      %1126 = vmatprep.mubr.f32.mxu0 0.0
      %1127 = vmatmul.mubr.f32.gmra.mrb[0].mxu0 %v1003
      %v1128 = vpop.f32.mrb[0].mxu0
      %v1129 = vadd.f32 0.0, %v1128
      %v1130 = vpop.f32.mrb[0].mxu0
      %v1131 = vadd.f32 0.0, %v1130
      %1132 = vmatprep.mubr.f32.mxu0 0.0
      %1133 = vmatmul.mubr.f32.gmra.mrb[0].mxu0 %v1006
      %v1134 = vpop.f32.mrb[0].mxu0
      %v1135 = vadd.f32 0.0, %v1134
      %v1136 = vpop.f32.mrb[0].mxu0
      %v1137 = vadd.f32 0.0, %v1136
      %1138 = vmatprep.mubr.f32.mxu0 0.0
      %1139 = vmatmul.mubr.f32.gmra.mrb[0].mxu0 %v1009
      %v1140 = vpop.f32.mrb[0].mxu0
      %v1141 = vadd.f32 0.0, %v1140
      %v1142 = vpop.f32.mrb[0].mxu0
      %v1143 = vadd.f32 0.0, %v1142
      %1144 = vmatprep.mubr.f32.mxu0 0.0
      %1145 = vmatmul.mubr.f32.gmra.mrb[0].mxu0 %v1012
      %v1146 = vpop.f32.mrb[0].mxu0
      %v1147 = vadd.f32 0.0, %v1146
      %v1148 = vpop.f32.mrb[0].mxu0
      %v1149 = vadd.f32 0.0, %v1148
      %1150 = vmatprep.mubr.f32.mxu0 0.0
      %1151 = vmatmul.mubr.f32.gmra.mrb[0].mxu0 %v1015
      %v1152 = vpop.f32.mrb[0].mxu0
      %v1153 = vadd.f32 0.0, %v1152
      %v1154 = vpop.f32.mrb[0].mxu0
      %v1155 = vadd.f32 0.0, %v1154
      %1156 = vmatprep.mubr.f32.mxu0 0.0
      %1157 = vmatmul.mubr.f32.gmra.mrb[0].mxu0 %v1018
      %v1158 = vpop.f32.mrb[0].mxu0
      %v1159 = vadd.f32 0.0, %v1158
      %v1160 = vpop.f32.mrb[0].mxu0
      %v1161 = vadd.f32 0.0, %v1160
      %1162 = vmatprep.mubr.f32.mxu0 0.0
      %1163 = vmatmul.mubr.f32.gmra.mrb[0].mxu0 %v1021
      %v1164 = vpop.f32.mrb[0].mxu0
      %v1165 = vadd.f32 0.0, %v1164
      %v1166 = vpop.f32.mrb[0].mxu0
      %v1167 = vadd.f32 0.0, %v1166
      %1168 = vmatprep.mubr.f32.mxu0 0.0
      %1169 = vmatmul.mubr.f32.gmra.mrb[0].mxu0 %v1024
      %v1170 = vpop.f32.mrb[0].mxu0
      %v1171 = vadd.f32 0.0, %v1170
      %v1172 = vpop.f32.mrb[0].mxu0
      %v1173 = vadd.f32 0.0, %v1172
      %1174 = vmatprep.mubr.f32.mxu0 0.0
      %1175 = vmatmul.mubr.f32.gmra.mrb[0].mxu0 %v1027
      %v1176 = vpop.f32.mrb[0].mxu0
      %v1177 = vadd.f32 0.0, %v1176
      %v1178 = vpop.f32.mrb[0].mxu0
      %v1179 = vadd.f32 0.0, %v1178
      %1180 = vmatprep.mubr.f32.mxu0 0.0
      %1181 = vmatmul.mubr.f32.gmra.mrb[0].mxu0 %v1030
      %v1182 = vpop.f32.mrb[0].mxu0
      %v1183 = vadd.f32 0.0, %v1182
      %v1184 = vpop.f32.mrb[0].mxu0
      %v1185 = vadd.f32 0.0, %v1184
      %1186 = vmatprep.mubr.f32.mxu0 0.0
      %1187 = vmatmul.mubr.f32.gmra.mrb[0].mxu0 %v1033
      %v1188 = vpop.f32.mrb[0].mxu0
      %v1189 = vadd.f32 0.0, %v1188
      %v1190 = vpop.f32.mrb[0].mxu0
      %v1191 = vadd.f32 0.0, %v1190
      %1192 = vmatprep.mubr.f32.mxu0 0.0
      %1193 = vmatmul.mubr.f32.gmra.mrb[0].mxu0 %v1036
      %v1194 = vpop.f32.mrb[0].mxu0
      %v1195 = vadd.f32 0.0, %v1194
      %v1196 = vpop.f32.mrb[0].mxu0
      %v1197 = vadd.f32 0.0, %v1196
      %1198 = vdwg.mxu0
      %1199 = vmatprep.subr.mxu0 %v984
      %1200 = vmatpush1.msra.mxu0 %v983
      %1201 = vmatprep.subr.mxu0 %v988
      %1202 = vmatpush1.msra.mxu0 %v987
      %1203 = vmatprep.subr.mxu0 0.0
      %1204 = vmatpush1.msra.mxu0 0.0
      %1205 = vmatprep.subr.mxu0 0.0
      %1206 = vmatpush1.msra.mxu0 0.0
      %1207 = vmatprep.subr.mxu0 0.0
      %1208 = vmatpush1.msra.mxu0 0.0
      %1209 = vmatprep.subr.mxu0 0.0
      %1210 = vmatpush1.msra.mxu0 0.0
      %1211 = vmatprep.subr.mxu0 0.0
      %1212 = vmatpush1.msra.mxu0 0.0
      %1213 = vmatprep.subr.mxu0 0.0
      %1214 = vmatpush1.msra.mxu0 0.0
      %1215 = vmatprep.subr.mxu0 0.0
      %1216 = vmatpush1.msra.mxu0 0.0
      %1217 = vmatprep.subr.mxu0 0.0
      %1218 = vmatpush1.msra.mxu0 0.0
      %1219 = vmatprep.subr.mxu0 0.0
      %1220 = vmatpush1.msra.mxu0 0.0
      %1221 = vmatprep.subr.mxu0 0.0
      %1222 = vmatpush1.msra.mxu0 0.0
      %1223 = vmatprep.subr.mxu0 0.0
      %1224 = vmatpush1.msra.mxu0 0.0
      %1225 = vmatprep.subr.mxu0 0.0
      %1226 = vmatpush1.msra.mxu0 0.0
      %1227 = vmatprep.subr.mxu0 0.0
      %1228 = vmatpush1.msra.mxu0 0.0
      %1229 = vmatprep.subr.mxu0 0.0
      %1230 = vmatpush1.msra.mxu0 0.0
      %1231 = vmatprep.subr.mxu0 0.0
      %1232 = vmatpush1.msra.mxu0 0.0
      %1233 = vmatprep.subr.mxu0 0.0
      %1234 = vmatpush1.msra.mxu0 0.0
      %1235 = vmatprep.subr.mxu0 0.0
      %1236 = vmatpush1.msra.mxu0 0.0
      %1237 = vmatprep.subr.mxu0 0.0
      %1238 = vmatpush1.msra.mxu0 0.0
      %1239 = vmatprep.subr.mxu0 0.0
      %1240 = vmatpush1.msra.mxu0 0.0
      %1241 = vmatprep.subr.mxu0 0.0
      %1242 = vmatpush1.msra.mxu0 0.0
      %1243 = vmatprep.subr.mxu0 0.0
      %1244 = vmatpush1.msra.mxu0 0.0
      %1245 = vmatprep.subr.mxu0 0.0
      %1246 = vmatpush1.msra.mxu0 0.0
      %1247 = vmatprep.subr.mxu0 0.0
      %1248 = vmatpush1.msra.mxu0 0.0
      %1249 = vmatprep.subr.mxu0 0.0
      %1250 = vmatpush1.msra.mxu0 0.0
      %1251 = vmatprep.subr.mxu0 0.0
      %1252 = vmatpush1.msra.mxu0 0.0
      %1253 = vmatprep.subr.mxu0 0.0
      %1254 = vmatpush1.msra.mxu0 0.0
      %1255 = vmatprep.subr.mxu0 0.0
      %1256 = vmatpush1.msra.mxu0 0.0
      %1257 = vmatprep.subr.mxu0 0.0
      %1258 = vmatpush1.msra.mxu0 0.0
      %1259 = vmatprep.subr.mxu0 0.0
      %1260 = vmatpush1.msra.mxu0 0.0
      %1261 = vmatprep.subr.mxu0 0.0
      %1262 = vmatpush1.msra.mxu0 0.0
      %1263 = vmatprep.mubr.f32.mxu0 0.0
      %1264 = vmatmul.mubr.f32.gmra.mrb[0].mxu0 %v991
      %v1265 = vpop.f32.mrb[0].mxu0
      %v1266 = vadd.f32 0.0, %v1265
      %v1267 = vpop.f32.mrb[0].mxu0
      %v1268 = vadd.f32 0.0, %v1267
      %1269 = vmatprep.mubr.f32.mxu0 0.0
      %1270 = vmatmul.mubr.f32.gmra.mrb[0].mxu0 %v994
      %v1271 = vpop.f32.mrb[0].mxu0
      %v1272 = vadd.f32 0.0, %v1271
      %v1273 = vpop.f32.mrb[0].mxu0
      %v1274 = vadd.f32 0.0, %v1273
      %1275 = vmatprep.mubr.f32.mxu0 0.0
      %1276 = vmatmul.mubr.f32.gmra.mrb[0].mxu0 %v997
      %v1277 = vpop.f32.mrb[0].mxu0
      %v1278 = vadd.f32 0.0, %v1277
      %v1279 = vpop.f32.mrb[0].mxu0
      %v1280 = vadd.f32 0.0, %v1279
      %1281 = vmatprep.mubr.f32.mxu0 0.0
      %1282 = vmatmul.mubr.f32.gmra.mrb[0].mxu0 %v1000
      %v1283 = vpop.f32.mrb[0].mxu0
      %v1284 = vadd.f32 0.0, %v1283
      %v1285 = vpop.f32.mrb[0].mxu0
      %v1286 = vadd.f32 0.0, %v1285
      %1287 = vmatprep.mubr.f32.mxu0 0.0
      %1288 = vmatmul.mubr.f32.gmra.mrb[0].mxu0 %v1003
      %v1289 = vpop.f32.mrb[0].mxu0
      %v1290 = vadd.f32 0.0, %v1289
      %v1291 = vpop.f32.mrb[0].mxu0
      %v1292 = vadd.f32 0.0, %v1291
      %1293 = vmatprep.mubr.f32.mxu0 0.0
      %1294 = vmatmul.mubr.f32.gmra.mrb[0].mxu0 %v1006
      %v1295 = vpop.f32.mrb[0].mxu0
      %v1296 = vadd.f32 0.0, %v1295
      %v1297 = vpop.f32.mrb[0].mxu0
      %v1298 = vadd.f32 0.0, %v1297
      %1299 = vmatprep.mubr.f32.mxu0 0.0
      %1300 = vmatmul.mubr.f32.gmra.mrb[0].mxu0 %v1009
      %v1301 = vpop.f32.mrb[0].mxu0
      %v1302 = vadd.f32 0.0, %v1301
      %v1303 = vpop.f32.mrb[0].mxu0
      %v1304 = vadd.f32 0.0, %v1303
      %1305 = vmatprep.mubr.f32.mxu0 0.0
      %1306 = vmatmul.mubr.f32.gmra.mrb[0].mxu0 %v1012
      %v1307 = vpop.f32.mrb[0].mxu0
      %v1308 = vadd.f32 0.0, %v1307
      %v1309 = vpop.f32.mrb[0].mxu0
      %v1310 = vadd.f32 0.0, %v1309
      %1311 = vmatprep.mubr.f32.mxu0 0.0
      %1312 = vmatmul.mubr.f32.gmra.mrb[0].mxu0 %v1015
      %v1313 = vpop.f32.mrb[0].mxu0
      %v1314 = vadd.f32 0.0, %v1313
      %v1315 = vpop.f32.mrb[0].mxu0
      %v1316 = vadd.f32 0.0, %v1315
      %1317 = vmatprep.mubr.f32.mxu0 0.0
      %1318 = vmatmul.mubr.f32.gmra.mrb[0].mxu0 %v1018
      %v1319 = vpop.f32.mrb[0].mxu0
      %v1320 = vadd.f32 0.0, %v1319
      %v1321 = vpop.f32.mrb[0].mxu0
      %v1322 = vadd.f32 0.0, %v1321
      %1323 = vmatprep.mubr.f32.mxu0 0.0
      %1324 = vmatmul.mubr.f32.gmra.mrb[0].mxu0 %v1021
      %v1325 = vpop.f32.mrb[0].mxu0
      %v1326 = vadd.f32 0.0, %v1325
      %v1327 = vpop.f32.mrb[0].mxu0
      %v1328 = vadd.f32 0.0, %v1327
      %1329 = vmatprep.mubr.f32.mxu0 0.0
      %1330 = vmatmul.mubr.f32.gmra.mrb[0].mxu0 %v1024
      %v1331 = vpop.f32.mrb[0].mxu0
      %v1332 = vadd.f32 0.0, %v1331
      %v1333 = vpop.f32.mrb[0].mxu0
      %v1334 = vadd.f32 0.0, %v1333
      %1335 = vmatprep.mubr.f32.mxu0 0.0
      %1336 = vmatmul.mubr.f32.gmra.mrb[0].mxu0 %v1027
      %v1337 = vpop.f32.mrb[0].mxu0
      %v1338 = vadd.f32 0.0, %v1337
      %v1339 = vpop.f32.mrb[0].mxu0
      %v1340 = vadd.f32 0.0, %v1339
      %1341 = vmatprep.mubr.f32.mxu0 0.0
      %1342 = vmatmul.mubr.f32.gmra.mrb[0].mxu0 %v1030
      %v1343 = vpop.f32.mrb[0].mxu0
      %v1344 = vadd.f32 0.0, %v1343
      %v1345 = vpop.f32.mrb[0].mxu0
      %v1346 = vadd.f32 0.0, %v1345
      %1347 = vmatprep.mubr.f32.mxu0 0.0
      %1348 = vmatmul.mubr.f32.gmra.mrb[0].mxu0 %v1033
      %v1349 = vpop.f32.mrb[0].mxu0
      %v1350 = vadd.f32 0.0, %v1349
      %v1351 = vpop.f32.mrb[0].mxu0
      %v1352 = vadd.f32 0.0, %v1351
      %1353 = vmatprep.mubr.f32.mxu0 0.0
      %1354 = vmatmul.mubr.f32.gmra.mrb[0].mxu0 %v1036
      %v1355 = vpop.f32.mrb[0].mxu0
      %v1356 = vadd.f32 0.0, %v1355
      %v1357 = vpop.f32.mrb[0].mxu0
      %v1358 = vadd.f32 0.0, %v1357
      %1359 = vdwg.mxu0
      %v1360 = vld [vmem:[%s7] sm:$0xff]
      %v1361 = vld [vmem:[%s7 + $0x8] sm:$0xff]
      %v1362 = vld [vmem:[%s7 + $0x10] sm:$0xff]
      %v1363 = vld [vmem:[%s7 + $0x18] sm:$0xff]
      %v1364 = vld [vmem:[%s7 + $0x20] sm:$0xff]
      %v1365 = vld [vmem:[%s7 + $0x28] sm:$0xff]
      %v1366 = vld [vmem:[%s7 + $0x30] sm:$0xff]
      %v1367 = vld [vmem:[%s7 + $0x38] sm:$0xff]
      %v1368 = vld [vmem:[%s7 + $0x40] sm:$0xff]
      %v1369 = vld [vmem:[%s7 + $0x48] sm:$0xff]
      %v1370 = vld [vmem:[%s7 + $0x50] sm:$0xff]
      %v1371 = vld [vmem:[%s7 + $0x58] sm:$0xff]
      %v1372 = vld [vmem:[%s7 + $0x60] sm:$0xff]
      %v1373 = vld [vmem:[%s7 + $0x68] sm:$0xff]
      %v1374 = vld [vmem:[%s7 + $0x70] sm:$0xff]
      %vm1375 = vcmask 195584
      %v1377 = vsel %vm1375, %v949, 0
      %v1380 = vsel %vm1375, %v950, 0
      %v1383 = vsel %vm1375, %v951, 0
      %v1386 = vsel %vm1375, %v952, 0
      %v1389 = vsel %vm1375, %v953, 0
      %v1392 = vsel %vm1375, %v954, 0
      %v1395 = vsel %vm1375, %v955, 0
      %v1398 = vsel %vm1375, %v956, 0
      %v1401 = vsel %vm1375, %v957, 0
      %v1404 = vsel %vm1375, %v958, 0
      %v1407 = vsel %vm1375, %v959, 0
      %v1410 = vsel %vm1375, %v960, 0
      %v1413 = vsel %vm1375, %v961, 0
      %v1416 = vsel %vm1375, %v962, 0
      %v1419 = vsel %vm1375, %v963, 0
      %v1422 = vsel %vm1375, %v964, 0
      %1424 = vmatprep.subr.mxu0 %v1361
      %1425 = vmatpush1.msra.mxu0 %v1360
      %1426 = vmatprep.subr.mxu0 %v1366
      %1427 = vmatpush1.msra.mxu0 %v1365
      %1428 = vmatprep.subr.mxu0 %v1371
      %1429 = vmatpush1.msra.mxu0 %v1370
      %1430 = vmatprep.subr.mxu0 0.0
      %1431 = vmatpush1.msra.mxu0 0.0
      %1432 = vmatprep.subr.mxu0 0.0
      %1433 = vmatpush1.msra.mxu0 0.0
      %1434 = vmatprep.subr.mxu0 0.0
      %1435 = vmatpush1.msra.mxu0 0.0
      %1436 = vmatprep.subr.mxu0 0.0
      %1437 = vmatpush1.msra.mxu0 0.0
      %1438 = vmatprep.subr.mxu0 0.0
      %1439 = vmatpush1.msra.mxu0 0.0
      %1440 = vmatprep.subr.mxu0 0.0
      %1441 = vmatpush1.msra.mxu0 0.0
      %1442 = vmatprep.subr.mxu0 0.0
      %1443 = vmatpush1.msra.mxu0 0.0
      %1444 = vmatprep.subr.mxu0 0.0
      %1445 = vmatpush1.msra.mxu0 0.0
      %1446 = vmatprep.subr.mxu0 0.0
      %1447 = vmatpush1.msra.mxu0 0.0
      %1448 = vmatprep.subr.mxu0 0.0
      %1449 = vmatpush1.msra.mxu0 0.0
      %1450 = vmatprep.subr.mxu0 0.0
      %1451 = vmatpush1.msra.mxu0 0.0
      %1452 = vmatprep.subr.mxu0 0.0
      %1453 = vmatpush1.msra.mxu0 0.0
      %1454 = vmatprep.subr.mxu0 0.0
      %1455 = vmatpush1.msra.mxu0 0.0
      %1456 = vmatprep.subr.mxu0 0.0
      %1457 = vmatpush1.msra.mxu0 0.0
      %1458 = vmatprep.subr.mxu0 0.0
      %1459 = vmatpush1.msra.mxu0 0.0
      %1460 = vmatprep.subr.mxu0 0.0
      %1461 = vmatpush1.msra.mxu0 0.0
      %1462 = vmatprep.subr.mxu0 0.0
      %1463 = vmatpush1.msra.mxu0 0.0
      %1464 = vmatprep.subr.mxu0 0.0
      %1465 = vmatpush1.msra.mxu0 0.0
      %1466 = vmatprep.subr.mxu0 0.0
      %1467 = vmatpush1.msra.mxu0 0.0
      %1468 = vmatprep.subr.mxu0 0.0
      %1469 = vmatpush1.msra.mxu0 0.0
      %1470 = vmatprep.subr.mxu0 0.0
      %1471 = vmatpush1.msra.mxu0 0.0
      %1472 = vmatprep.subr.mxu0 0.0
      %1473 = vmatpush1.msra.mxu0 0.0
      %1474 = vmatprep.subr.mxu0 0.0
      %1475 = vmatpush1.msra.mxu0 0.0
      %1476 = vmatprep.subr.mxu0 0.0
      %1477 = vmatpush1.msra.mxu0 0.0
      %1478 = vmatprep.subr.mxu0 0.0
      %1479 = vmatpush1.msra.mxu0 0.0
      %1480 = vmatprep.subr.mxu0 0.0
      %1481 = vmatpush1.msra.mxu0 0.0
      %1482 = vmatprep.subr.mxu0 0.0
      %1483 = vmatpush1.msra.mxu0 0.0
      %1484 = vmatprep.subr.mxu0 0.0
      %1485 = vmatpush1.msra.mxu0 0.0
      %1486 = vmatprep.subr.mxu0 0.0
      %1487 = vmatpush1.msra.mxu0 0.0
      %1488 = vmatprep.mubr.f32.mxu0 0.0
      %1489 = vmatmul.mubr.f32.gmra.mrb[0].mxu0 %v1377
      %v1490 = vpop.f32.mrb[0].mxu0
      %v1491 = vadd.f32 0.0, %v1490
      %v1492 = vpop.f32.mrb[0].mxu0
      %v1493 = vadd.f32 0.0, %v1492
      %1494 = vmatprep.mubr.f32.mxu0 0.0
      %1495 = vmatmul.mubr.f32.gmra.mrb[0].mxu0 %v1380
      %v1496 = vpop.f32.mrb[0].mxu0
      %v1497 = vadd.f32 0.0, %v1496
      %v1498 = vpop.f32.mrb[0].mxu0
      %v1499 = vadd.f32 0.0, %v1498
      %1500 = vmatprep.mubr.f32.mxu0 0.0
      %1501 = vmatmul.mubr.f32.gmra.mrb[0].mxu0 %v1383
      %v1502 = vpop.f32.mrb[0].mxu0
      %v1503 = vadd.f32 0.0, %v1502
      %v1504 = vpop.f32.mrb[0].mxu0
      %v1505 = vadd.f32 0.0, %v1504
      %1506 = vmatprep.mubr.f32.mxu0 0.0
      %1507 = vmatmul.mubr.f32.gmra.mrb[0].mxu0 %v1386
      %v1508 = vpop.f32.mrb[0].mxu0
      %v1509 = vadd.f32 0.0, %v1508
      %v1510 = vpop.f32.mrb[0].mxu0
      %v1511 = vadd.f32 0.0, %v1510
      %1512 = vmatprep.mubr.f32.mxu0 0.0
      %1513 = vmatmul.mubr.f32.gmra.mrb[0].mxu0 %v1389
      %v1514 = vpop.f32.mrb[0].mxu0
      %v1515 = vadd.f32 0.0, %v1514
      %v1516 = vpop.f32.mrb[0].mxu0
      %v1517 = vadd.f32 0.0, %v1516
      %1518 = vmatprep.mubr.f32.mxu0 0.0
      %1519 = vmatmul.mubr.f32.gmra.mrb[0].mxu0 %v1392
      %v1520 = vpop.f32.mrb[0].mxu0
      %v1521 = vadd.f32 0.0, %v1520
      %v1522 = vpop.f32.mrb[0].mxu0
      %v1523 = vadd.f32 0.0, %v1522
      %1524 = vmatprep.mubr.f32.mxu0 0.0
      %1525 = vmatmul.mubr.f32.gmra.mrb[0].mxu0 %v1395
      %v1526 = vpop.f32.mrb[0].mxu0
      %v1527 = vadd.f32 0.0, %v1526
      %v1528 = vpop.f32.mrb[0].mxu0
      %v1529 = vadd.f32 0.0, %v1528
      %1530 = vmatprep.mubr.f32.mxu0 0.0
      %1531 = vmatmul.mubr.f32.gmra.mrb[0].mxu0 %v1398
      %v1532 = vpop.f32.mrb[0].mxu0
      %v1533 = vadd.f32 0.0, %v1532
      %v1534 = vpop.f32.mrb[0].mxu0
      %v1535 = vadd.f32 0.0, %v1534
      %1536 = vmatprep.mubr.f32.mxu0 0.0
      %1537 = vmatmul.mubr.f32.gmra.mrb[0].mxu0 %v1401
      %v1538 = vpop.f32.mrb[0].mxu0
      %v1539 = vadd.f32 0.0, %v1538
      %v1540 = vpop.f32.mrb[0].mxu0
      %v1541 = vadd.f32 0.0, %v1540
      %1542 = vmatprep.mubr.f32.mxu0 0.0
      %1543 = vmatmul.mubr.f32.gmra.mrb[0].mxu0 %v1404
      %v1544 = vpop.f32.mrb[0].mxu0
      %v1545 = vadd.f32 0.0, %v1544
      %v1546 = vpop.f32.mrb[0].mxu0
      %v1547 = vadd.f32 0.0, %v1546
      %1548 = vmatprep.mubr.f32.mxu0 0.0
      %1549 = vmatmul.mubr.f32.gmra.mrb[0].mxu0 %v1407
      %v1550 = vpop.f32.mrb[0].mxu0
      %v1551 = vadd.f32 0.0, %v1550
      %v1552 = vpop.f32.mrb[0].mxu0
      %v1553 = vadd.f32 0.0, %v1552
      %1554 = vmatprep.mubr.f32.mxu0 0.0
      %1555 = vmatmul.mubr.f32.gmra.mrb[0].mxu0 %v1410
      %v1556 = vpop.f32.mrb[0].mxu0
      %v1557 = vadd.f32 0.0, %v1556
      %v1558 = vpop.f32.mrb[0].mxu0
      %v1559 = vadd.f32 0.0, %v1558
      %1560 = vmatprep.mubr.f32.mxu0 0.0
      %1561 = vmatmul.mubr.f32.gmra.mrb[0].mxu0 %v1413
      %v1562 = vpop.f32.mrb[0].mxu0
      %v1563 = vadd.f32 0.0, %v1562
      %v1564 = vpop.f32.mrb[0].mxu0
      %v1565 = vadd.f32 0.0, %v1564
      %1566 = vmatprep.mubr.f32.mxu0 0.0
      %1567 = vmatmul.mubr.f32.gmra.mrb[0].mxu0 %v1416
      %v1568 = vpop.f32.mrb[0].mxu0
      %v1569 = vadd.f32 0.0, %v1568
      %v1570 = vpop.f32.mrb[0].mxu0
      %v1571 = vadd.f32 0.0, %v1570
      %1572 = vmatprep.mubr.f32.mxu0 0.0
      %1573 = vmatmul.mubr.f32.gmra.mrb[0].mxu0 %v1419
      %v1574 = vpop.f32.mrb[0].mxu0
      %v1575 = vadd.f32 0.0, %v1574
      %v1576 = vpop.f32.mrb[0].mxu0
      %v1577 = vadd.f32 0.0, %v1576
      %1578 = vmatprep.mubr.f32.mxu0 0.0
      %1579 = vmatmul.mubr.f32.gmra.mrb[0].mxu0 %v1422
      %v1580 = vpop.f32.mrb[0].mxu0
      %v1581 = vadd.f32 0.0, %v1580
      %v1582 = vpop.f32.mrb[0].mxu0
      %v1583 = vadd.f32 0.0, %v1582
      %1584 = vdwg.mxu0
      %1585 = vmatprep.subr.mxu0 %v1363
      %1586 = vmatpush1.msra.mxu0 %v1362
      %1587 = vmatprep.subr.mxu0 %v1368
      %1588 = vmatpush1.msra.mxu0 %v1367
      %1589 = vmatprep.subr.mxu0 %v1373
      %1590 = vmatpush1.msra.mxu0 %v1372
      %1591 = vmatprep.subr.mxu0 0.0
      %1592 = vmatpush1.msra.mxu0 0.0
      %1593 = vmatprep.subr.mxu0 0.0
      %1594 = vmatpush1.msra.mxu0 0.0
      %1595 = vmatprep.subr.mxu0 0.0
      %1596 = vmatpush1.msra.mxu0 0.0
      %1597 = vmatprep.subr.mxu0 0.0
      %1598 = vmatpush1.msra.mxu0 0.0
      %1599 = vmatprep.subr.mxu0 0.0
      %1600 = vmatpush1.msra.mxu0 0.0
      %1601 = vmatprep.subr.mxu0 0.0
      %1602 = vmatpush1.msra.mxu0 0.0
      %1603 = vmatprep.subr.mxu0 0.0
      %1604 = vmatpush1.msra.mxu0 0.0
      %1605 = vmatprep.subr.mxu0 0.0
      %1606 = vmatpush1.msra.mxu0 0.0
      %1607 = vmatprep.subr.mxu0 0.0
      %1608 = vmatpush1.msra.mxu0 0.0
      %1609 = vmatprep.subr.mxu0 0.0
      %1610 = vmatpush1.msra.mxu0 0.0
      %1611 = vmatprep.subr.mxu0 0.0
      %1612 = vmatpush1.msra.mxu0 0.0
      %1613 = vmatprep.subr.mxu0 0.0
      %1614 = vmatpush1.msra.mxu0 0.0
      %1615 = vmatprep.subr.mxu0 0.0
      %1616 = vmatpush1.msra.mxu0 0.0
      %1617 = vmatprep.subr.mxu0 0.0
      %1618 = vmatpush1.msra.mxu0 0.0
      %1619 = vmatprep.subr.mxu0 0.0
      %1620 = vmatpush1.msra.mxu0 0.0
      %1621 = vmatprep.subr.mxu0 0.0
      %1622 = vmatpush1.msra.mxu0 0.0
      %1623 = vmatprep.subr.mxu0 0.0
      %1624 = vmatpush1.msra.mxu0 0.0
      %1625 = vmatprep.subr.mxu0 0.0
      %1626 = vmatpush1.msra.mxu0 0.0
      %1627 = vmatprep.subr.mxu0 0.0
      %1628 = vmatpush1.msra.mxu0 0.0
      %1629 = vmatprep.subr.mxu0 0.0
      %1630 = vmatpush1.msra.mxu0 0.0
      %1631 = vmatprep.subr.mxu0 0.0
      %1632 = vmatpush1.msra.mxu0 0.0
      %1633 = vmatprep.subr.mxu0 0.0
      %1634 = vmatpush1.msra.mxu0 0.0
      %1635 = vmatprep.subr.mxu0 0.0
      %1636 = vmatpush1.msra.mxu0 0.0
      %1637 = vmatprep.subr.mxu0 0.0
      %1638 = vmatpush1.msra.mxu0 0.0
      %1639 = vmatprep.subr.mxu0 0.0
      %1640 = vmatpush1.msra.mxu0 0.0
      %1641 = vmatprep.subr.mxu0 0.0
      %1642 = vmatpush1.msra.mxu0 0.0
      %1643 = vmatprep.subr.mxu0 0.0
      %1644 = vmatpush1.msra.mxu0 0.0
      %1645 = vmatprep.subr.mxu0 0.0
      %1646 = vmatpush1.msra.mxu0 0.0
      %1647 = vmatprep.subr.mxu0 0.0
      %1648 = vmatpush1.msra.mxu0 0.0
      %1649 = vmatprep.mubr.f32.mxu0 0.0
      %1650 = vmatmul.mubr.f32.gmra.mrb[0].mxu0 %v1377
      %v1651 = vpop.f32.mrb[0].mxu0
      %v1652 = vadd.f32 0.0, %v1651
      %v1653 = vpop.f32.mrb[0].mxu0
      %v1654 = vadd.f32 0.0, %v1653
      %1655 = vmatprep.mubr.f32.mxu0 0.0
      %1656 = vmatmul.mubr.f32.gmra.mrb[0].mxu0 %v1380
      %v1657 = vpop.f32.mrb[0].mxu0
      %v1658 = vadd.f32 0.0, %v1657
      %v1659 = vpop.f32.mrb[0].mxu0
      %v1660 = vadd.f32 0.0, %v1659
      %1661 = vmatprep.mubr.f32.mxu0 0.0
      %1662 = vmatmul.mubr.f32.gmra.mrb[0].mxu0 %v1383
      %v1663 = vpop.f32.mrb[0].mxu0
      %v1664 = vadd.f32 0.0, %v1663
      %v1665 = vpop.f32.mrb[0].mxu0
      %v1666 = vadd.f32 0.0, %v1665
      %1667 = vmatprep.mubr.f32.mxu0 0.0
      %1668 = vmatmul.mubr.f32.gmra.mrb[0].mxu0 %v1386
      %v1669 = vpop.f32.mrb[0].mxu0
      %v1670 = vadd.f32 0.0, %v1669
      %v1671 = vpop.f32.mrb[0].mxu0
      %v1672 = vadd.f32 0.0, %v1671
      %1673 = vmatprep.mubr.f32.mxu0 0.0
      %1674 = vmatmul.mubr.f32.gmra.mrb[0].mxu0 %v1389
      %v1675 = vpop.f32.mrb[0].mxu0
      %v1676 = vadd.f32 0.0, %v1675
      %v1677 = vpop.f32.mrb[0].mxu0
      %v1678 = vadd.f32 0.0, %v1677
      %1679 = vmatprep.mubr.f32.mxu0 0.0
      %1680 = vmatmul.mubr.f32.gmra.mrb[0].mxu0 %v1392
      %v1681 = vpop.f32.mrb[0].mxu0
      %v1682 = vadd.f32 0.0, %v1681
      %v1683 = vpop.f32.mrb[0].mxu0
      %v1684 = vadd.f32 0.0, %v1683
      %1685 = vmatprep.mubr.f32.mxu0 0.0
      %1686 = vmatmul.mubr.f32.gmra.mrb[0].mxu0 %v1395
      %v1687 = vpop.f32.mrb[0].mxu0
      %v1688 = vadd.f32 0.0, %v1687
      %v1689 = vpop.f32.mrb[0].mxu0
      %v1690 = vadd.f32 0.0, %v1689
      %1691 = vmatprep.mubr.f32.mxu0 0.0
      %1692 = vmatmul.mubr.f32.gmra.mrb[0].mxu0 %v1398
      %v1693 = vpop.f32.mrb[0].mxu0
      %v1694 = vadd.f32 0.0, %v1693
      %v1695 = vpop.f32.mrb[0].mxu0
      %v1696 = vadd.f32 0.0, %v1695
      %1697 = vmatprep.mubr.f32.mxu0 0.0
      %1698 = vmatmul.mubr.f32.gmra.mrb[0].mxu0 %v1401
      %v1699 = vpop.f32.mrb[0].mxu0
      %v1700 = vadd.f32 0.0, %v1699
      %v1701 = vpop.f32.mrb[0].mxu0
      %v1702 = vadd.f32 0.0, %v1701
      %1703 = vmatprep.mubr.f32.mxu0 0.0
      %1704 = vmatmul.mubr.f32.gmra.mrb[0].mxu0 %v1404
      %v1705 = vpop.f32.mrb[0].mxu0
      %v1706 = vadd.f32 0.0, %v1705
      %v1707 = vpop.f32.mrb[0].mxu0
      %v1708 = vadd.f32 0.0, %v1707
      %1709 = vmatprep.mubr.f32.mxu0 0.0
      %1710 = vmatmul.mubr.f32.gmra.mrb[0].mxu0 %v1407
      %v1711 = vpop.f32.mrb[0].mxu0
      %v1712 = vadd.f32 0.0, %v1711
      %v1713 = vpop.f32.mrb[0].mxu0
      %v1714 = vadd.f32 0.0, %v1713
      %1715 = vmatprep.mubr.f32.mxu0 0.0
      %1716 = vmatmul.mubr.f32.gmra.mrb[0].mxu0 %v1410
      %v1717 = vpop.f32.mrb[0].mxu0
      %v1718 = vadd.f32 0.0, %v1717
      %v1719 = vpop.f32.mrb[0].mxu0
      %v1720 = vadd.f32 0.0, %v1719
      %1721 = vmatprep.mubr.f32.mxu0 0.0
      %1722 = vmatmul.mubr.f32.gmra.mrb[0].mxu0 %v1413
      %v1723 = vpop.f32.mrb[0].mxu0
      %v1724 = vadd.f32 0.0, %v1723
      %v1725 = vpop.f32.mrb[0].mxu0
      %v1726 = vadd.f32 0.0, %v1725
      %1727 = vmatprep.mubr.f32.mxu0 0.0
      %1728 = vmatmul.mubr.f32.gmra.mrb[0].mxu0 %v1416
      %v1729 = vpop.f32.mrb[0].mxu0
      %v1730 = vadd.f32 0.0, %v1729
      %v1731 = vpop.f32.mrb[0].mxu0
      %v1732 = vadd.f32 0.0, %v1731
      %1733 = vmatprep.mubr.f32.mxu0 0.0
      %1734 = vmatmul.mubr.f32.gmra.mrb[0].mxu0 %v1419
      %v1735 = vpop.f32.mrb[0].mxu0
      %v1736 = vadd.f32 0.0, %v1735
      %v1737 = vpop.f32.mrb[0].mxu0
      %v1738 = vadd.f32 0.0, %v1737
      %1739 = vmatprep.mubr.f32.mxu0 0.0
      %1740 = vmatmul.mubr.f32.gmra.mrb[0].mxu0 %v1422
      %v1741 = vpop.f32.mrb[0].mxu0
      %v1742 = vadd.f32 0.0, %v1741
      %v1743 = vpop.f32.mrb[0].mxu0
      %v1744 = vadd.f32 0.0, %v1743
      %1745 = vdwg.mxu0
      %1746 = vmatprep.subr.mxu0 0.0
      %1747 = vmatpush1.msra.mxu0 %v1364
      %1748 = vmatprep.subr.mxu0 0.0
      %1749 = vmatpush1.msra.mxu0 %v1369
      %1750 = vmatprep.subr.mxu0 0.0
      %1751 = vmatpush1.msra.mxu0 %v1374
      %1752 = vmatprep.subr.mxu0 0.0
      %1753 = vmatpush1.msra.mxu0 0.0
      %1754 = vmatprep.subr.mxu0 0.0
      %1755 = vmatpush1.msra.mxu0 0.0
      %1756 = vmatprep.subr.mxu0 0.0
      %1757 = vmatpush1.msra.mxu0 0.0
      %1758 = vmatprep.subr.mxu0 0.0
      %1759 = vmatpush1.msra.mxu0 0.0
      %1760 = vmatprep.subr.mxu0 0.0
      %1761 = vmatpush1.msra.mxu0 0.0
      %1762 = vmatprep.subr.mxu0 0.0
      %1763 = vmatpush1.msra.mxu0 0.0
      %1764 = vmatprep.subr.mxu0 0.0
      %1765 = vmatpush1.msra.mxu0 0.0
      %1766 = vmatprep.subr.mxu0 0.0
      %1767 = vmatpush1.msra.mxu0 0.0
      %1768 = vmatprep.subr.mxu0 0.0
      %1769 = vmatpush1.msra.mxu0 0.0
      %1770 = vmatprep.subr.mxu0 0.0
      %1771 = vmatpush1.msra.mxu0 0.0
      %1772 = vmatprep.subr.mxu0 0.0
      %1773 = vmatpush1.msra.mxu0 0.0
      %1774 = vmatprep.subr.mxu0 0.0
      %1775 = vmatpush1.msra.mxu0 0.0
      %1776 = vmatprep.subr.mxu0 0.0
      %1777 = vmatpush1.msra.mxu0 0.0
      %1778 = vmatprep.subr.mxu0 0.0
      %1779 = vmatpush1.msra.mxu0 0.0
      %1780 = vmatprep.subr.mxu0 0.0
      %1781 = vmatpush1.msra.mxu0 0.0
      %1782 = vmatprep.subr.mxu0 0.0
      %1783 = vmatpush1.msra.mxu0 0.0
      %1784 = vmatprep.subr.mxu0 0.0
      %1785 = vmatpush1.msra.mxu0 0.0
      %1786 = vmatprep.subr.mxu0 0.0
      %1787 = vmatpush1.msra.mxu0 0.0
      %1788 = vmatprep.subr.mxu0 0.0
      %1789 = vmatpush1.msra.mxu0 0.0
      %1790 = vmatprep.subr.mxu0 0.0
      %1791 = vmatpush1.msra.mxu0 0.0
      %1792 = vmatprep.subr.mxu0 0.0
      %1793 = vmatpush1.msra.mxu0 0.0
      %1794 = vmatprep.subr.mxu0 0.0
      %1795 = vmatpush1.msra.mxu0 0.0
      %1796 = vmatprep.subr.mxu0 0.0
      %1797 = vmatpush1.msra.mxu0 0.0
      %1798 = vmatprep.subr.mxu0 0.0
      %1799 = vmatpush1.msra.mxu0 0.0
      %1800 = vmatprep.subr.mxu0 0.0
      %1801 = vmatpush1.msra.mxu0 0.0
      %1802 = vmatprep.subr.mxu0 0.0
      %1803 = vmatpush1.msra.mxu0 0.0
      %1804 = vmatprep.subr.mxu0 0.0
      %1805 = vmatpush1.msra.mxu0 0.0
      %1806 = vmatprep.subr.mxu0 0.0
      %1807 = vmatpush1.msra.mxu0 0.0
      %1808 = vmatprep.subr.mxu0 0.0
      %1809 = vmatpush1.msra.mxu0 0.0
      %1810 = vmatprep.mubr.f32.mxu0 0.0
      %1811 = vmatmul.mubr.f32.gmra.mrb[0].mxu0 %v1377
      %v1812 = vpop.f32.mrb[0].mxu0
      %v1813 = vadd.f32 0.0, %v1812
      %v1814 = vpop.f32.mrb[0].mxu0
      %1815 = vmatprep.mubr.f32.mxu0 0.0
      %1816 = vmatmul.mubr.f32.gmra.mrb[0].mxu0 %v1380
      %v1817 = vpop.f32.mrb[0].mxu0
      %v1818 = vadd.f32 0.0, %v1817
      %v1819 = vpop.f32.mrb[0].mxu0
      %1820 = vmatprep.mubr.f32.mxu0 0.0
      %1821 = vmatmul.mubr.f32.gmra.mrb[0].mxu0 %v1383
      %v1822 = vpop.f32.mrb[0].mxu0
      %v1823 = vadd.f32 0.0, %v1822
      %v1824 = vpop.f32.mrb[0].mxu0
      %1825 = vmatprep.mubr.f32.mxu0 0.0
      %1826 = vmatmul.mubr.f32.gmra.mrb[0].mxu0 %v1386
      %v1827 = vpop.f32.mrb[0].mxu0
      %v1828 = vadd.f32 0.0, %v1827
      %v1829 = vpop.f32.mrb[0].mxu0
      %1830 = vmatprep.mubr.f32.mxu0 0.0
      %1831 = vmatmul.mubr.f32.gmra.mrb[0].mxu0 %v1389
      %v1832 = vpop.f32.mrb[0].mxu0
      %v1833 = vadd.f32 0.0, %v1832
      %v1834 = vpop.f32.mrb[0].mxu0
      %1835 = vmatprep.mubr.f32.mxu0 0.0
      %1836 = vmatmul.mubr.f32.gmra.mrb[0].mxu0 %v1392
      %v1837 = vpop.f32.mrb[0].mxu0
      %v1838 = vadd.f32 0.0, %v1837
      %v1839 = vpop.f32.mrb[0].mxu0
      %1840 = vmatprep.mubr.f32.mxu0 0.0
      %1841 = vmatmul.mubr.f32.gmra.mrb[0].mxu0 %v1395
      %v1842 = vpop.f32.mrb[0].mxu0
      %v1843 = vadd.f32 0.0, %v1842
      %v1844 = vpop.f32.mrb[0].mxu0
      %1845 = vmatprep.mubr.f32.mxu0 0.0
      %1846 = vmatmul.mubr.f32.gmra.mrb[0].mxu0 %v1398
      %v1847 = vpop.f32.mrb[0].mxu0
      %v1848 = vadd.f32 0.0, %v1847
      %v1849 = vpop.f32.mrb[0].mxu0
      %1850 = vmatprep.mubr.f32.mxu0 0.0
      %1851 = vmatmul.mubr.f32.gmra.mrb[0].mxu0 %v1401
      %v1852 = vpop.f32.mrb[0].mxu0
      %v1853 = vadd.f32 0.0, %v1852
      %v1854 = vpop.f32.mrb[0].mxu0
      %1855 = vmatprep.mubr.f32.mxu0 0.0
      %1856 = vmatmul.mubr.f32.gmra.mrb[0].mxu0 %v1404
      %v1857 = vpop.f32.mrb[0].mxu0
      %v1858 = vadd.f32 0.0, %v1857
      %v1859 = vpop.f32.mrb[0].mxu0
      %1860 = vmatprep.mubr.f32.mxu0 0.0
      %1861 = vmatmul.mubr.f32.gmra.mrb[0].mxu0 %v1407
      %v1862 = vpop.f32.mrb[0].mxu0
      %v1863 = vadd.f32 0.0, %v1862
      %v1864 = vpop.f32.mrb[0].mxu0
      %1865 = vmatprep.mubr.f32.mxu0 0.0
      %1866 = vmatmul.mubr.f32.gmra.mrb[0].mxu0 %v1410
      %v1867 = vpop.f32.mrb[0].mxu0
      %v1868 = vadd.f32 0.0, %v1867
      %v1869 = vpop.f32.mrb[0].mxu0
      %1870 = vmatprep.mubr.f32.mxu0 0.0
      %1871 = vmatmul.mubr.f32.gmra.mrb[0].mxu0 %v1413
      %v1872 = vpop.f32.mrb[0].mxu0
      %v1873 = vadd.f32 0.0, %v1872
      %v1874 = vpop.f32.mrb[0].mxu0
      %1875 = vmatprep.mubr.f32.mxu0 0.0
      %1876 = vmatmul.mubr.f32.gmra.mrb[0].mxu0 %v1416
      %v1877 = vpop.f32.mrb[0].mxu0
      %v1878 = vadd.f32 0.0, %v1877
      %v1879 = vpop.f32.mrb[0].mxu0
      %1880 = vmatprep.mubr.f32.mxu0 0.0
      %1881 = vmatmul.mubr.f32.gmra.mrb[0].mxu0 %v1419
      %v1882 = vpop.f32.mrb[0].mxu0
      %v1883 = vadd.f32 0.0, %v1882
      %v1884 = vpop.f32.mrb[0].mxu0
      %1885 = vmatprep.mubr.f32.mxu0 0.0
      %1886 = vmatmul.mubr.f32.gmra.mrb[0].mxu0 %v1422
      %v1887 = vpop.f32.mrb[0].mxu0
      %v1888 = vadd.f32 0.0, %v1887
      %v1889 = vpop.f32.mrb[0].mxu0
      %1890 = vdwg.mxu0
      %v1891 = vld [vmem:[%s8] sm:$0xff]
      %v1892 = vld [vmem:[%s8 + $0x8] sm:$0xf]
      %v1895 = vcombine.high %v1891, %v1891
      %vm1896 = vcmask 31744
      %v1898 = vsel %vm1896, %v933, 0
      %v1901 = vsel %vm1896, %v934, 0
      %v1904 = vsel %vm1896, %v935, 0
      %v1907 = vsel %vm1896, %v936, 0
      %v1910 = vsel %vm1896, %v937, 0
      %v1913 = vsel %vm1896, %v938, 0
      %v1916 = vsel %vm1896, %v939, 0
      %v1919 = vsel %vm1896, %v940, 0
      %v1922 = vsel %vm1896, %v941, 0
      %v1925 = vsel %vm1896, %v942, 0
      %v1928 = vsel %vm1896, %v943, 0
      %v1931 = vsel %vm1896, %v944, 0
      %v1934 = vsel %vm1896, %v945, 0
      %v1937 = vsel %vm1896, %v946, 0
      %v1940 = vsel %vm1896, %v947, 0
      %v1943 = vsel %vm1896, %v948, 0
      %vm1945 = vcmask 1043456
      %v1946 = vsel %vm1945, %v1891, 0
      %v1948 = vsel %vm1945, %v1895, 0
      %v1950 = vsel %vm1945, %v1892, 0
      %1952 = vmatprep.subr.mxu0 %v1948
      %1953 = vmatpush1.msra.mxu0 %v1946
      %1954 = vmatprep.subr.mxu0 0.0
      %1955 = vmatpush1.msra.mxu0 0.0
      %1956 = vmatprep.subr.mxu0 0.0
      %1957 = vmatpush1.msra.mxu0 0.0
      %1958 = vmatprep.subr.mxu0 0.0
      %1959 = vmatpush1.msra.mxu0 0.0
      %1960 = vmatprep.subr.mxu0 0.0
      %1961 = vmatpush1.msra.mxu0 0.0
      %1962 = vmatprep.subr.mxu0 0.0
      %1963 = vmatpush1.msra.mxu0 0.0
      %1964 = vmatprep.subr.mxu0 0.0
      %1965 = vmatpush1.msra.mxu0 0.0
      %1966 = vmatprep.subr.mxu0 0.0
      %1967 = vmatpush1.msra.mxu0 0.0
      %1968 = vmatprep.subr.mxu0 0.0
      %1969 = vmatpush1.msra.mxu0 0.0
      %1970 = vmatprep.subr.mxu0 0.0
      %1971 = vmatpush1.msra.mxu0 0.0
      %1972 = vmatprep.subr.mxu0 0.0
      %1973 = vmatpush1.msra.mxu0 0.0
      %1974 = vmatprep.subr.mxu0 0.0
      %1975 = vmatpush1.msra.mxu0 0.0
      %1976 = vmatprep.subr.mxu0 0.0
      %1977 = vmatpush1.msra.mxu0 0.0
      %1978 = vmatprep.subr.mxu0 0.0
      %1979 = vmatpush1.msra.mxu0 0.0
      %1980 = vmatprep.subr.mxu0 0.0
      %1981 = vmatpush1.msra.mxu0 0.0
      %1982 = vmatprep.subr.mxu0 0.0
      %1983 = vmatpush1.msra.mxu0 0.0
      %1984 = vmatprep.subr.mxu0 0.0
      %1985 = vmatpush1.msra.mxu0 0.0
      %1986 = vmatprep.subr.mxu0 0.0
      %1987 = vmatpush1.msra.mxu0 0.0
      %1988 = vmatprep.subr.mxu0 0.0
      %1989 = vmatpush1.msra.mxu0 0.0
      %1990 = vmatprep.subr.mxu0 0.0
      %1991 = vmatpush1.msra.mxu0 0.0
      %1992 = vmatprep.subr.mxu0 0.0
      %1993 = vmatpush1.msra.mxu0 0.0
      %1994 = vmatprep.subr.mxu0 0.0
      %1995 = vmatpush1.msra.mxu0 0.0
      %1996 = vmatprep.subr.mxu0 0.0
      %1997 = vmatpush1.msra.mxu0 0.0
      %1998 = vmatprep.subr.mxu0 0.0
      %1999 = vmatpush1.msra.mxu0 0.0
      %2000 = vmatprep.subr.mxu0 0.0
      %2001 = vmatpush1.msra.mxu0 0.0
      %2002 = vmatprep.subr.mxu0 0.0
      %2003 = vmatpush1.msra.mxu0 0.0
      %2004 = vmatprep.subr.mxu0 0.0
      %2005 = vmatpush1.msra.mxu0 0.0
      %2006 = vmatprep.subr.mxu0 0.0
      %2007 = vmatpush1.msra.mxu0 0.0
      %2008 = vmatprep.subr.mxu0 0.0
      %2009 = vmatpush1.msra.mxu0 0.0
      %2010 = vmatprep.subr.mxu0 0.0
      %2011 = vmatpush1.msra.mxu0 0.0
      %2012 = vmatprep.subr.mxu0 0.0
      %2013 = vmatpush1.msra.mxu0 0.0
      %2014 = vmatprep.subr.mxu0 0.0
      %2015 = vmatpush1.msra.mxu0 0.0
      %2016 = vmatprep.mubr.f32.mxu0 0.0
      %2017 = vmatmul.mubr.f32.gmra.mrb[0].mxu0 %v1898
      %v2018 = vpop.f32.mrb[0].mxu0
      %v2019 = vadd.f32 0.0, %v2018
      %v2020 = vpop.f32.mrb[0].mxu0
      %v2021 = vadd.f32 0.0, %v2020
      %2022 = vmatprep.mubr.f32.mxu0 0.0
      %2023 = vmatmul.mubr.f32.gmra.mrb[0].mxu0 %v1901
      %v2024 = vpop.f32.mrb[0].mxu0
      %v2025 = vadd.f32 0.0, %v2024
      %v2026 = vpop.f32.mrb[0].mxu0
      %v2027 = vadd.f32 0.0, %v2026
      %2028 = vmatprep.mubr.f32.mxu0 0.0
      %2029 = vmatmul.mubr.f32.gmra.mrb[0].mxu0 %v1904
      %v2030 = vpop.f32.mrb[0].mxu0
      %v2031 = vadd.f32 0.0, %v2030
      %v2032 = vpop.f32.mrb[0].mxu0
      %v2033 = vadd.f32 0.0, %v2032
      %2034 = vmatprep.mubr.f32.mxu0 0.0
      %2035 = vmatmul.mubr.f32.gmra.mrb[0].mxu0 %v1907
      %v2036 = vpop.f32.mrb[0].mxu0
      %v2037 = vadd.f32 0.0, %v2036
      %v2038 = vpop.f32.mrb[0].mxu0
      %v2039 = vadd.f32 0.0, %v2038
      %2040 = vmatprep.mubr.f32.mxu0 0.0
      %2041 = vmatmul.mubr.f32.gmra.mrb[0].mxu0 %v1910
      %v2042 = vpop.f32.mrb[0].mxu0
      %v2043 = vadd.f32 0.0, %v2042
      %v2044 = vpop.f32.mrb[0].mxu0
      %v2045 = vadd.f32 0.0, %v2044
      %2046 = vmatprep.mubr.f32.mxu0 0.0
      %2047 = vmatmul.mubr.f32.gmra.mrb[0].mxu0 %v1913
      %v2048 = vpop.f32.mrb[0].mxu0
      %v2049 = vadd.f32 0.0, %v2048
      %v2050 = vpop.f32.mrb[0].mxu0
      %v2051 = vadd.f32 0.0, %v2050
      %2052 = vmatprep.mubr.f32.mxu0 0.0
      %2053 = vmatmul.mubr.f32.gmra.mrb[0].mxu0 %v1916
      %v2054 = vpop.f32.mrb[0].mxu0
      %v2055 = vadd.f32 0.0, %v2054
      %v2056 = vpop.f32.mrb[0].mxu0
      %v2057 = vadd.f32 0.0, %v2056
      %2058 = vmatprep.mubr.f32.mxu0 0.0
      %2059 = vmatmul.mubr.f32.gmra.mrb[0].mxu0 %v1919
      %v2060 = vpop.f32.mrb[0].mxu0
      %v2061 = vadd.f32 0.0, %v2060
      %v2062 = vpop.f32.mrb[0].mxu0
      %v2063 = vadd.f32 0.0, %v2062
      %2064 = vmatprep.mubr.f32.mxu0 0.0
      %2065 = vmatmul.mubr.f32.gmra.mrb[0].mxu0 %v1922
      %v2066 = vpop.f32.mrb[0].mxu0
      %v2067 = vadd.f32 0.0, %v2066
      %v2068 = vpop.f32.mrb[0].mxu0
      %v2069 = vadd.f32 0.0, %v2068
      %2070 = vmatprep.mubr.f32.mxu0 0.0
      %2071 = vmatmul.mubr.f32.gmra.mrb[0].mxu0 %v1925
      %v2072 = vpop.f32.mrb[0].mxu0
      %v2073 = vadd.f32 0.0, %v2072
      %v2074 = vpop.f32.mrb[0].mxu0
      %v2075 = vadd.f32 0.0, %v2074
      %2076 = vmatprep.mubr.f32.mxu0 0.0
      %2077 = vmatmul.mubr.f32.gmra.mrb[0].mxu0 %v1928
      %v2078 = vpop.f32.mrb[0].mxu0
      %v2079 = vadd.f32 0.0, %v2078
      %v2080 = vpop.f32.mrb[0].mxu0
      %v2081 = vadd.f32 0.0, %v2080
      %2082 = vmatprep.mubr.f32.mxu0 0.0
      %2083 = vmatmul.mubr.f32.gmra.mrb[0].mxu0 %v1931
      %v2084 = vpop.f32.mrb[0].mxu0
      %v2085 = vadd.f32 0.0, %v2084
      %v2086 = vpop.f32.mrb[0].mxu0
      %v2087 = vadd.f32 0.0, %v2086
      %2088 = vmatprep.mubr.f32.mxu0 0.0
      %2089 = vmatmul.mubr.f32.gmra.mrb[0].mxu0 %v1934
      %v2090 = vpop.f32.mrb[0].mxu0
      %v2091 = vadd.f32 0.0, %v2090
      %v2092 = vpop.f32.mrb[0].mxu0
      %v2093 = vadd.f32 0.0, %v2092
      %2094 = vmatprep.mubr.f32.mxu0 0.0
      %2095 = vmatmul.mubr.f32.gmra.mrb[0].mxu0 %v1937
      %v2096 = vpop.f32.mrb[0].mxu0
      %v2097 = vadd.f32 0.0, %v2096
      %v2098 = vpop.f32.mrb[0].mxu0
      %v2099 = vadd.f32 0.0, %v2098
      %2100 = vmatprep.mubr.f32.mxu0 0.0
      %2101 = vmatmul.mubr.f32.gmra.mrb[0].mxu0 %v1940
      %v2102 = vpop.f32.mrb[0].mxu0
      %v2103 = vadd.f32 0.0, %v2102
      %v2104 = vpop.f32.mrb[0].mxu0
      %v2105 = vadd.f32 0.0, %v2104
      %2106 = vmatprep.mubr.f32.mxu0 0.0
      %2107 = vmatmul.mubr.f32.gmra.mrb[0].mxu0 %v1943
      %v2108 = vpop.f32.mrb[0].mxu0
      %v2109 = vadd.f32 0.0, %v2108
      %v2110 = vpop.f32.mrb[0].mxu0
      %v2111 = vadd.f32 0.0, %v2110
      %2112 = vdwg.mxu0
      %2113 = vmatprep.subr.mxu0 0.0
      %2114 = vmatpush1.msra.mxu0 %v1950
      %2115 = vmatprep.subr.mxu0 0.0
      %2116 = vmatpush1.msra.mxu0 0.0
      %2117 = vmatprep.subr.mxu0 0.0
      %2118 = vmatpush1.msra.mxu0 0.0
      %2119 = vmatprep.subr.mxu0 0.0
      %2120 = vmatpush1.msra.mxu0 0.0
      %2121 = vmatprep.subr.mxu0 0.0
      %2122 = vmatpush1.msra.mxu0 0.0
      %2123 = vmatprep.subr.mxu0 0.0
      %2124 = vmatpush1.msra.mxu0 0.0
      %2125 = vmatprep.subr.mxu0 0.0
      %2126 = vmatpush1.msra.mxu0 0.0
      %2127 = vmatprep.subr.mxu0 0.0
      %2128 = vmatpush1.msra.mxu0 0.0
      %2129 = vmatprep.subr.mxu0 0.0
      %2130 = vmatpush1.msra.mxu0 0.0
      %2131 = vmatprep.subr.mxu0 0.0
      %2132 = vmatpush1.msra.mxu0 0.0
      %2133 = vmatprep.subr.mxu0 0.0
      %2134 = vmatpush1.msra.mxu0 0.0
      %2135 = vmatprep.subr.mxu0 0.0
      %2136 = vmatpush1.msra.mxu0 0.0
      %2137 = vmatprep.subr.mxu0 0.0
      %2138 = vmatpush1.msra.mxu0 0.0
      %2139 = vmatprep.subr.mxu0 0.0
      %2140 = vmatpush1.msra.mxu0 0.0
      %2141 = vmatprep.subr.mxu0 0.0
      %2142 = vmatpush1.msra.mxu0 0.0
      %2143 = vmatprep.subr.mxu0 0.0
      %2144 = vmatpush1.msra.mxu0 0.0
      %2145 = vmatprep.subr.mxu0 0.0
      %2146 = vmatpush1.msra.mxu0 0.0
      %2147 = vmatprep.subr.mxu0 0.0
      %2148 = vmatpush1.msra.mxu0 0.0
      %2149 = vmatprep.subr.mxu0 0.0
      %2150 = vmatpush1.msra.mxu0 0.0
      %2151 = vmatprep.subr.mxu0 0.0
      %2152 = vmatpush1.msra.mxu0 0.0
      %2153 = vmatprep.subr.mxu0 0.0
      %2154 = vmatpush1.msra.mxu0 0.0
      %2155 = vmatprep.subr.mxu0 0.0
      %2156 = vmatpush1.msra.mxu0 0.0
      %2157 = vmatprep.subr.mxu0 0.0
      %2158 = vmatpush1.msra.mxu0 0.0
      %2159 = vmatprep.subr.mxu0 0.0
      %2160 = vmatpush1.msra.mxu0 0.0
      %2161 = vmatprep.subr.mxu0 0.0
      %2162 = vmatpush1.msra.mxu0 0.0
      %2163 = vmatprep.subr.mxu0 0.0
      %2164 = vmatpush1.msra.mxu0 0.0
      %2165 = vmatprep.subr.mxu0 0.0
      %2166 = vmatpush1.msra.mxu0 0.0
      %2167 = vmatprep.subr.mxu0 0.0
      %2168 = vmatpush1.msra.mxu0 0.0
      %2169 = vmatprep.subr.mxu0 0.0
      %2170 = vmatpush1.msra.mxu0 0.0
      %2171 = vmatprep.subr.mxu0 0.0
      %2172 = vmatpush1.msra.mxu0 0.0
      %2173 = vmatprep.subr.mxu0 0.0
      %2174 = vmatpush1.msra.mxu0 0.0
      %2175 = vmatprep.subr.mxu0 0.0
      %2176 = vmatpush1.msra.mxu0 0.0
      %2177 = vmatprep.mubr.f32.mxu0 0.0
      %2178 = vmatmul.mubr.f32.gmra.mrb[0].mxu0 %v1898
      %v2179 = vpop.f32.mrb[0].mxu0
      %v2180 = vadd.f32 0.0, %v2179
      %v2181 = vpop.f32.mrb[0].mxu0
      %2182 = vmatprep.mubr.f32.mxu0 0.0
      %2183 = vmatmul.mubr.f32.gmra.mrb[0].mxu0 %v1901
      %v2184 = vpop.f32.mrb[0].mxu0
      %v2185 = vadd.f32 0.0, %v2184
      %v2186 = vpop.f32.mrb[0].mxu0
      %2187 = vmatprep.mubr.f32.mxu0 0.0
      %2188 = vmatmul.mubr.f32.gmra.mrb[0].mxu0 %v1904
      %v2189 = vpop.f32.mrb[0].mxu0
      %v2190 = vadd.f32 0.0, %v2189
      %v2191 = vpop.f32.mrb[0].mxu0
      %2192 = vmatprep.mubr.f32.mxu0 0.0
      %2193 = vmatmul.mubr.f32.gmra.mrb[0].mxu0 %v1907
      %v2194 = vpop.f32.mrb[0].mxu0
      %v2195 = vadd.f32 0.0, %v2194
      %v2196 = vpop.f32.mrb[0].mxu0
      %2197 = vmatprep.mubr.f32.mxu0 0.0
      %2198 = vmatmul.mubr.f32.gmra.mrb[0].mxu0 %v1910
      %v2199 = vpop.f32.mrb[0].mxu0
      %v2200 = vadd.f32 0.0, %v2199
      %v2201 = vpop.f32.mrb[0].mxu0
      %2202 = vmatprep.mubr.f32.mxu0 0.0
      %2203 = vmatmul.mubr.f32.gmra.mrb[0].mxu0 %v1913
      %v2204 = vpop.f32.mrb[0].mxu0
      %v2205 = vadd.f32 0.0, %v2204
      %v2206 = vpop.f32.mrb[0].mxu0
      %2207 = vmatprep.mubr.f32.mxu0 0.0
      %2208 = vmatmul.mubr.f32.gmra.mrb[0].mxu0 %v1916
      %v2209 = vpop.f32.mrb[0].mxu0
      %v2210 = vadd.f32 0.0, %v2209
      %v2211 = vpop.f32.mrb[0].mxu0
      %2212 = vmatprep.mubr.f32.mxu0 0.0
      %2213 = vmatmul.mubr.f32.gmra.mrb[0].mxu0 %v1919
      %v2214 = vpop.f32.mrb[0].mxu0
      %v2215 = vadd.f32 0.0, %v2214
      %v2216 = vpop.f32.mrb[0].mxu0
      %2217 = vmatprep.mubr.f32.mxu0 0.0
      %2218 = vmatmul.mubr.f32.gmra.mrb[0].mxu0 %v1922
      %v2219 = vpop.f32.mrb[0].mxu0
      %v2220 = vadd.f32 0.0, %v2219
      %v2221 = vpop.f32.mrb[0].mxu0
      %2222 = vmatprep.mubr.f32.mxu0 0.0
      %2223 = vmatmul.mubr.f32.gmra.mrb[0].mxu0 %v1925
      %v2224 = vpop.f32.mrb[0].mxu0
      %v2225 = vadd.f32 0.0, %v2224
      %v2226 = vpop.f32.mrb[0].mxu0
      %2227 = vmatprep.mubr.f32.mxu0 0.0
      %2228 = vmatmul.mubr.f32.gmra.mrb[0].mxu0 %v1928
      %v2229 = vpop.f32.mrb[0].mxu0
      %v2230 = vadd.f32 0.0, %v2229
      %v2231 = vpop.f32.mrb[0].mxu0
      %2232 = vmatprep.mubr.f32.mxu0 0.0
      %2233 = vmatmul.mubr.f32.gmra.mrb[0].mxu0 %v1931
      %v2234 = vpop.f32.mrb[0].mxu0
      %v2235 = vadd.f32 0.0, %v2234
      %v2236 = vpop.f32.mrb[0].mxu0
      %2237 = vmatprep.mubr.f32.mxu0 0.0
      %2238 = vmatmul.mubr.f32.gmra.mrb[0].mxu0 %v1934
      %v2239 = vpop.f32.mrb[0].mxu0
      %v2240 = vadd.f32 0.0, %v2239
      %v2241 = vpop.f32.mrb[0].mxu0
      %2242 = vmatprep.mubr.f32.mxu0 0.0
      %2243 = vmatmul.mubr.f32.gmra.mrb[0].mxu0 %v1937
      %v2244 = vpop.f32.mrb[0].mxu0
      %v2245 = vadd.f32 0.0, %v2244
      %v2246 = vpop.f32.mrb[0].mxu0
      %2247 = vmatprep.mubr.f32.mxu0 0.0
      %2248 = vmatmul.mubr.f32.gmra.mrb[0].mxu0 %v1940
      %v2249 = vpop.f32.mrb[0].mxu0
      %v2250 = vadd.f32 0.0, %v2249
      %v2251 = vpop.f32.mrb[0].mxu0
      %2252 = vmatprep.mubr.f32.mxu0 0.0
      %2253 = vmatmul.mubr.f32.gmra.mrb[0].mxu0 %v1943
      %v2254 = vpop.f32.mrb[0].mxu0
      %v2255 = vadd.f32 0.0, %v2254
      %v2256 = vpop.f32.mrb[0].mxu0
      %2257 = vdwg.mxu0
      %v2258 = vld [vmem:[%s16] sm:$0x3]
      %v2260 = vlaneseq
      %v2261 = vshrl.u32 %v2260, 7
      %v2262 = vsub.s32 0, %v2261
      %v2263 = vrot.slane %v2258, %v2262
      %v2264 = vlaneseq
      %v2265 = vshrl.u32 %v2264, 7
      %v2266 = vsub.s32 1, %v2265
      %v2267 = vrot.slane %v2258, %v2266
      %v2270 = vadd.f32 %v1105, %v2263
      %v2271 = vadd.f32 %v1107, %v2267
      %v2272 = vadd.f32 %v1111, %v2263
      %v2273 = vadd.f32 %v1113, %v2267
      %v2274 = vadd.f32 %v1117, %v2263
      %v2275 = vadd.f32 %v1119, %v2267
      %v2276 = vadd.f32 %v1123, %v2263
      %v2277 = vadd.f32 %v1125, %v2267
      %v2278 = vadd.f32 %v1129, %v2263
      %v2279 = vadd.f32 %v1131, %v2267
      %v2280 = vadd.f32 %v1135, %v2263
      %v2281 = vadd.f32 %v1137, %v2267
      %v2282 = vadd.f32 %v1141, %v2263
      %v2283 = vadd.f32 %v1143, %v2267
      %v2284 = vadd.f32 %v1147, %v2263
      %v2285 = vadd.f32 %v1149, %v2267
      %v2286 = vadd.f32 %v1153, %v2263
      %v2287 = vadd.f32 %v1155, %v2267
      %v2288 = vadd.f32 %v1159, %v2263
      %v2289 = vadd.f32 %v1161, %v2267
      %v2290 = vadd.f32 %v1165, %v2263
      %v2291 = vadd.f32 %v1167, %v2267
      %v2292 = vadd.f32 %v1171, %v2263
      %v2293 = vadd.f32 %v1173, %v2267
      %v2294 = vadd.f32 %v1177, %v2263
      %v2295 = vadd.f32 %v1179, %v2267
      %v2296 = vadd.f32 %v1183, %v2263
      %v2297 = vadd.f32 %v1185, %v2267
      %v2298 = vadd.f32 %v1189, %v2263
      %v2299 = vadd.f32 %v1191, %v2267
      %v2300 = vadd.f32 %v1195, %v2263
      %v2301 = vadd.f32 %v1197, %v2267
      %v2302 = vmax.f32 %v2270, 0.0
      %v2303 = vmax.f32 %v2271, 0.0
      %v2304 = vmax.f32 %v2272, 0.0
      %v2305 = vmax.f32 %v2273, 0.0
      %v2306 = vmax.f32 %v2274, 0.0
      %v2307 = vmax.f32 %v2275, 0.0
      %v2308 = vmax.f32 %v2276, 0.0
      %v2309 = vmax.f32 %v2277, 0.0
      %v2310 = vmax.f32 %v2278, 0.0
      %v2311 = vmax.f32 %v2279, 0.0
      %v2312 = vmax.f32 %v2280, 0.0
      %v2313 = vmax.f32 %v2281, 0.0
      %v2314 = vmax.f32 %v2282, 0.0
      %v2315 = vmax.f32 %v2283, 0.0
      %v2316 = vmax.f32 %v2284, 0.0
      %v2317 = vmax.f32 %v2285, 0.0
      %v2318 = vmax.f32 %v2286, 0.0
      %v2319 = vmax.f32 %v2287, 0.0
      %v2320 = vmax.f32 %v2288, 0.0
      %v2321 = vmax.f32 %v2289, 0.0
      %v2322 = vmax.f32 %v2290, 0.0
      %v2323 = vmax.f32 %v2291, 0.0
      %v2324 = vmax.f32 %v2292, 0.0
      %v2325 = vmax.f32 %v2293, 0.0
      %v2326 = vmax.f32 %v2294, 0.0
      %v2327 = vmax.f32 %v2295, 0.0
      %v2328 = vmax.f32 %v2296, 0.0
      %v2329 = vmax.f32 %v2297, 0.0
      %v2330 = vmax.f32 %v2298, 0.0
      %v2331 = vmax.f32 %v2299, 0.0
      %v2332 = vmax.f32 %v2300, 0.0
      %v2333 = vmax.f32 %v2301, 0.0
      %v2334 = vld [vmem:[%s5] sm:$0xff]
      %v2335 = vld [vmem:[%s5 + $0x8] sm:$0xff]
      %v2336 = vld [vmem:[%s5 + $0x10] sm:$0xff]
      %v2337 = vld [vmem:[%s5 + $0x18] sm:$0xff]
      %v2338 = vld [vmem:[%s5 + $0x20] sm:$0xff]
      %v2339 = vld [vmem:[%s5 + $0x28] sm:$0xff]
      %v2340 = vld [vmem:[%s5 + $0x30] sm:$0xff]
      %v2341 = vld [vmem:[%s5 + $0x38] sm:$0xff]
      %v2342 = vld [vmem:[%s5 + $0x40] sm:$0xff]
      %v2343 = vld [vmem:[%s5 + $0x48] sm:$0xff]
      %v2344 = vld [vmem:[%s5 + $0x50] sm:$0xff]
      %v2345 = vld [vmem:[%s5 + $0x58] sm:$0xff]
      %v2346 = vld [vmem:[%s5 + $0x60] sm:$0xff]
      %v2347 = vld [vmem:[%s5 + $0x68] sm:$0xff]
      %v2348 = vld [vmem:[%s5 + $0x70] sm:$0xff]
      %v2349 = vld [vmem:[%s5 + $0x78] sm:$0xff]
      %v2350 = vld [vmem:[%s5 + $0x80] sm:$0xff]
      %v2351 = vld [vmem:[%s5 + $0x88] sm:$0xff]
      %v2352 = vld [vmem:[%s5 + $0x90] sm:$0xff]
      %v2353 = vld [vmem:[%s5 + $0x98] sm:$0xff]
      %v2354 = vld [vmem:[%s5 + $0xa0] sm:$0xff]
      %v2355 = vld [vmem:[%s5 + $0xa8] sm:$0xff]
      %v2356 = vld [vmem:[%s5 + $0xb0] sm:$0xff]
      %v2357 = vld [vmem:[%s5 + $0xb8] sm:$0xff]
      %v2358 = vld [vmem:[%s5 + $0xc0] sm:$0xff]
      %v2359 = vld [vmem:[%s5 + $0xc8] sm:$0xff]
      %v2360 = vld [vmem:[%s5 + $0xd0] sm:$0xff]
      %v2361 = vld [vmem:[%s5 + $0xd8] sm:$0xff]
      %v2362 = vld [vmem:[%s5 + $0xe0] sm:$0xff]
      %v2363 = vld [vmem:[%s5 + $0xe8] sm:$0xff]
      %v2364 = vld [vmem:[%s5 + $0xf0] sm:$0xff]
      %v2365 = vld [vmem:[%s5 + $0xf8] sm:$0xff]
      %v2366 = vld [vmem:[%s5 + $0x100] sm:$0xff]
      %v2367 = vld [vmem:[%s5 + $0x108] sm:$0xff]
      %v2368 = vld [vmem:[%s5 + $0x110] sm:$0xff]
      %v2369 = vld [vmem:[%s5 + $0x118] sm:$0xff]
      %v2370 = vld [vmem:[%s5 + $0x120] sm:$0xff]
      %v2371 = vld [vmem:[%s5 + $0x128] sm:$0xff]
      %v2372 = vld [vmem:[%s5 + $0x130] sm:$0xff]
      %v2373 = vld [vmem:[%s5 + $0x138] sm:$0xff]
      %v2374 = vld [vmem:[%s5 + $0x140] sm:$0xff]
      %v2375 = vld [vmem:[%s5 + $0x148] sm:$0xff]
      %v2376 = vld [vmem:[%s5 + $0x150] sm:$0xff]
      %v2377 = vld [vmem:[%s5 + $0x158] sm:$0xff]
      %v2378 = vld [vmem:[%s5 + $0x160] sm:$0xff]
      %v2379 = vld [vmem:[%s5 + $0x168] sm:$0xff]
      %v2380 = vld [vmem:[%s5 + $0x170] sm:$0xff]
      %v2381 = vld [vmem:[%s5 + $0x178] sm:$0xff]
      %v2382 = vld [vmem:[%s5 + $0x180] sm:$0xff]
      %v2383 = vld [vmem:[%s5 + $0x188] sm:$0xff]
      %v2384 = vld [vmem:[%s5 + $0x190] sm:$0xff]
      %v2385 = vld [vmem:[%s5 + $0x198] sm:$0xff]
      %v2386 = vld [vmem:[%s5 + $0x1a0] sm:$0xff]
      %v2387 = vld [vmem:[%s5 + $0x1a8] sm:$0xff]
      %v2388 = vld [vmem:[%s5 + $0x1b0] sm:$0xff]
      %v2389 = vld [vmem:[%s5 + $0x1b8] sm:$0xff]
      %v2390 = vld [vmem:[%s5 + $0x1c0] sm:$0xff]
      %v2391 = vld [vmem:[%s5 + $0x1c8] sm:$0xff]
      %v2392 = vld [vmem:[%s5 + $0x1d0] sm:$0xff]
      %v2393 = vld [vmem:[%s5 + $0x1d8] sm:$0xff]
      %v2394 = vld [vmem:[%s5 + $0x1e0] sm:$0xff]
      %v2395 = vld [vmem:[%s5 + $0x1e8] sm:$0xff]
      %v2396 = vld [vmem:[%s5 + $0x1f0] sm:$0xff]
      %v2397 = vld [vmem:[%s5 + $0x1f8] sm:$0xff]
      %v2398 = vld [vmem:[%s17] sm:$0x3]
      %v2400 = vlaneseq
      %v2401 = vshrl.u32 %v2400, 7
      %v2402 = vsub.s32 0, %v2401
      %v2403 = vrot.slane %v2398, %v2402
      %v2404 = vlaneseq
      %v2405 = vshrl.u32 %v2404, 7
      %v2406 = vsub.s32 1, %v2405
      %v2407 = vrot.slane %v2398, %v2406
      %2410 = vmatprep.subr.mxu0 %v2335
      %2411 = vmatpush1.msra.mxu0 %v2334
      %2412 = vmatprep.subr.mxu0 %v2337
      %2413 = vmatpush1.msra.mxu0 %v2336
      %2414 = vmatprep.subr.mxu0 %v2339
      %2415 = vmatpush1.msra.mxu0 %v2338
      %2416 = vmatprep.subr.mxu0 %v2341
      %2417 = vmatpush1.msra.mxu0 %v2340
      %2418 = vmatprep.subr.mxu0 %v2343
      %2419 = vmatpush1.msra.mxu0 %v2342
      %2420 = vmatprep.subr.mxu0 %v2345
      %2421 = vmatpush1.msra.mxu0 %v2344
      %2422 = vmatprep.subr.mxu0 %v2347
      %2423 = vmatpush1.msra.mxu0 %v2346
      %2424 = vmatprep.subr.mxu0 %v2349
      %2425 = vmatpush1.msra.mxu0 %v2348
      %2426 = vmatprep.subr.mxu0 %v2351
      %2427 = vmatpush1.msra.mxu0 %v2350
      %2428 = vmatprep.subr.mxu0 %v2353
      %2429 = vmatpush1.msra.mxu0 %v2352
      %2430 = vmatprep.subr.mxu0 %v2355
      %2431 = vmatpush1.msra.mxu0 %v2354
      %2432 = vmatprep.subr.mxu0 %v2357
      %2433 = vmatpush1.msra.mxu0 %v2356
      %2434 = vmatprep.subr.mxu0 %v2359
      %2435 = vmatpush1.msra.mxu0 %v2358
      %2436 = vmatprep.subr.mxu0 %v2361
      %2437 = vmatpush1.msra.mxu0 %v2360
      %2438 = vmatprep.subr.mxu0 %v2363
      %2439 = vmatpush1.msra.mxu0 %v2362
      %2440 = vmatprep.subr.mxu0 %v2365
      %2441 = vmatpush1.msra.mxu0 %v2364
      %2442 = vmatprep.subr.mxu0 %v2367
      %2443 = vmatpush1.msra.mxu0 %v2366
      %2444 = vmatprep.subr.mxu0 %v2369
      %2445 = vmatpush1.msra.mxu0 %v2368
      %2446 = vmatprep.subr.mxu0 %v2371
      %2447 = vmatpush1.msra.mxu0 %v2370
      %2448 = vmatprep.subr.mxu0 %v2373
      %2449 = vmatpush1.msra.mxu0 %v2372
      %2450 = vmatprep.subr.mxu0 %v2375
      %2451 = vmatpush1.msra.mxu0 %v2374
      %2452 = vmatprep.subr.mxu0 %v2377
      %2453 = vmatpush1.msra.mxu0 %v2376
      %2454 = vmatprep.subr.mxu0 %v2379
      %2455 = vmatpush1.msra.mxu0 %v2378
      %2456 = vmatprep.subr.mxu0 %v2381
      %2457 = vmatpush1.msra.mxu0 %v2380
      %2458 = vmatprep.subr.mxu0 %v2383
      %2459 = vmatpush1.msra.mxu0 %v2382
      %2460 = vmatprep.subr.mxu0 %v2385
      %2461 = vmatpush1.msra.mxu0 %v2384
      %2462 = vmatprep.subr.mxu0 %v2387
      %2463 = vmatpush1.msra.mxu0 %v2386
      %2464 = vmatprep.subr.mxu0 %v2389
      %2465 = vmatpush1.msra.mxu0 %v2388
      %2466 = vmatprep.subr.mxu0 %v2391
      %2467 = vmatpush1.msra.mxu0 %v2390
      %2468 = vmatprep.subr.mxu0 %v2393
      %2469 = vmatpush1.msra.mxu0 %v2392
      %2470 = vmatprep.subr.mxu0 %v2395
      %2471 = vmatpush1.msra.mxu0 %v2394
      %2472 = vmatprep.subr.mxu0 %v2397
      %2473 = vmatpush1.msra.mxu0 %v2396
      %2474 = vmatprep.mubr.f32.mxu0 %v2303
      %2475 = vmatmul.mubr.f32.gmra.mrb[0].mxu0 %v2302
      %v2476 = vpop.f32.mrb[0].mxu0
      %v2477 = vadd.f32 %v2403, %v2476
      %v2478 = vpop.f32.mrb[0].mxu0
      %v2479 = vadd.f32 %v2407, %v2478
      %2480 = vmatprep.mubr.f32.mxu0 %v2305
      %2481 = vmatmul.mubr.f32.gmra.mrb[0].mxu0 %v2304
      %v2482 = vpop.f32.mrb[0].mxu0
      %v2483 = vadd.f32 %v2403, %v2482
      %v2484 = vpop.f32.mrb[0].mxu0
      %v2485 = vadd.f32 %v2407, %v2484
      %2486 = vmatprep.mubr.f32.mxu0 %v2307
      %2487 = vmatmul.mubr.f32.gmra.mrb[0].mxu0 %v2306
      %v2488 = vpop.f32.mrb[0].mxu0
      %v2489 = vadd.f32 %v2403, %v2488
      %v2490 = vpop.f32.mrb[0].mxu0
      %v2491 = vadd.f32 %v2407, %v2490
      %2492 = vmatprep.mubr.f32.mxu0 %v2309
      %2493 = vmatmul.mubr.f32.gmra.mrb[0].mxu0 %v2308
      %v2494 = vpop.f32.mrb[0].mxu0
      %v2495 = vadd.f32 %v2403, %v2494
      %v2496 = vpop.f32.mrb[0].mxu0
      %v2497 = vadd.f32 %v2407, %v2496
      %2498 = vmatprep.mubr.f32.mxu0 %v2311
      %2499 = vmatmul.mubr.f32.gmra.mrb[0].mxu0 %v2310
      %v2500 = vpop.f32.mrb[0].mxu0
      %v2501 = vadd.f32 %v2403, %v2500
      %v2502 = vpop.f32.mrb[0].mxu0
      %v2503 = vadd.f32 %v2407, %v2502
      %2504 = vmatprep.mubr.f32.mxu0 %v2313
      %2505 = vmatmul.mubr.f32.gmra.mrb[0].mxu0 %v2312
      %v2506 = vpop.f32.mrb[0].mxu0
      %v2507 = vadd.f32 %v2403, %v2506
      %v2508 = vpop.f32.mrb[0].mxu0
      %v2509 = vadd.f32 %v2407, %v2508
      %2510 = vmatprep.mubr.f32.mxu0 %v2315
      %2511 = vmatmul.mubr.f32.gmra.mrb[0].mxu0 %v2314
      %v2512 = vpop.f32.mrb[0].mxu0
      %v2513 = vadd.f32 %v2403, %v2512
      %v2514 = vpop.f32.mrb[0].mxu0
      %v2515 = vadd.f32 %v2407, %v2514
      %2516 = vmatprep.mubr.f32.mxu0 %v2317
      %2517 = vmatmul.mubr.f32.gmra.mrb[0].mxu0 %v2316
      %v2518 = vpop.f32.mrb[0].mxu0
      %v2519 = vadd.f32 %v2403, %v2518
      %v2520 = vpop.f32.mrb[0].mxu0
      %v2521 = vadd.f32 %v2407, %v2520
      %2522 = vmatprep.mubr.f32.mxu0 %v2319
      %2523 = vmatmul.mubr.f32.gmra.mrb[0].mxu0 %v2318
      %v2524 = vpop.f32.mrb[0].mxu0
      %v2525 = vadd.f32 %v2403, %v2524
      %v2526 = vpop.f32.mrb[0].mxu0
      %v2527 = vadd.f32 %v2407, %v2526
      %2528 = vmatprep.mubr.f32.mxu0 %v2321
      %2529 = vmatmul.mubr.f32.gmra.mrb[0].mxu0 %v2320
      %v2530 = vpop.f32.mrb[0].mxu0
      %v2531 = vadd.f32 %v2403, %v2530
      %v2532 = vpop.f32.mrb[0].mxu0
      %v2533 = vadd.f32 %v2407, %v2532
      %2534 = vmatprep.mubr.f32.mxu0 %v2323
      %2535 = vmatmul.mubr.f32.gmra.mrb[0].mxu0 %v2322
      %v2536 = vpop.f32.mrb[0].mxu0
      %v2537 = vadd.f32 %v2403, %v2536
      %v2538 = vpop.f32.mrb[0].mxu0
      %v2539 = vadd.f32 %v2407, %v2538
      %2540 = vmatprep.mubr.f32.mxu0 %v2325
      %2541 = vmatmul.mubr.f32.gmra.mrb[0].mxu0 %v2324
      %v2542 = vpop.f32.mrb[0].mxu0
      %v2543 = vadd.f32 %v2403, %v2542
      %v2544 = vpop.f32.mrb[0].mxu0
      %v2545 = vadd.f32 %v2407, %v2544
      %2546 = vmatprep.mubr.f32.mxu0 %v2327
      %2547 = vmatmul.mubr.f32.gmra.mrb[0].mxu0 %v2326
      %v2548 = vpop.f32.mrb[0].mxu0
      %v2549 = vadd.f32 %v2403, %v2548
      %v2550 = vpop.f32.mrb[0].mxu0
      %v2551 = vadd.f32 %v2407, %v2550
      %2552 = vmatprep.mubr.f32.mxu0 %v2329
      %2553 = vmatmul.mubr.f32.gmra.mrb[0].mxu0 %v2328
      %v2554 = vpop.f32.mrb[0].mxu0
      %v2555 = vadd.f32 %v2403, %v2554
      %v2556 = vpop.f32.mrb[0].mxu0
      %v2557 = vadd.f32 %v2407, %v2556
      %2558 = vmatprep.mubr.f32.mxu0 %v2331
      %2559 = vmatmul.mubr.f32.gmra.mrb[0].mxu0 %v2330
      %v2560 = vpop.f32.mrb[0].mxu0
      %v2561 = vadd.f32 %v2403, %v2560
      %v2562 = vpop.f32.mrb[0].mxu0
      %v2563 = vadd.f32 %v2407, %v2562
      %2564 = vmatprep.mubr.f32.mxu0 %v2333
      %2565 = vmatmul.mubr.f32.gmra.mrb[0].mxu0 %v2332
      %v2566 = vpop.f32.mrb[0].mxu0
      %v2567 = vadd.f32 %v2403, %v2566
      %v2568 = vpop.f32.mrb[0].mxu0
      %v2569 = vadd.f32 %v2407, %v2568
      %2570 = vdwg.mxu0
      %v2571 = vmax.f32 %v2477, 0.0
      %v2572 = vmax.f32 %v2479, 0.0
      %v2573 = vmax.f32 %v2483, 0.0
      %v2574 = vmax.f32 %v2485, 0.0
      %v2575 = vmax.f32 %v2489, 0.0
      %v2576 = vmax.f32 %v2491, 0.0
      %v2577 = vmax.f32 %v2495, 0.0
      %v2578 = vmax.f32 %v2497, 0.0
      %v2579 = vmax.f32 %v2501, 0.0
      %v2580 = vmax.f32 %v2503, 0.0
      %v2581 = vmax.f32 %v2507, 0.0
      %v2582 = vmax.f32 %v2509, 0.0
      %v2583 = vmax.f32 %v2513, 0.0
      %v2584 = vmax.f32 %v2515, 0.0
      %v2585 = vmax.f32 %v2519, 0.0
      %v2586 = vmax.f32 %v2521, 0.0
      %v2587 = vmax.f32 %v2525, 0.0
      %v2588 = vmax.f32 %v2527, 0.0
      %v2589 = vmax.f32 %v2531, 0.0
      %v2590 = vmax.f32 %v2533, 0.0
      %v2591 = vmax.f32 %v2537, 0.0
      %v2592 = vmax.f32 %v2539, 0.0
      %v2593 = vmax.f32 %v2543, 0.0
      %v2594 = vmax.f32 %v2545, 0.0
      %v2595 = vmax.f32 %v2549, 0.0
      %v2596 = vmax.f32 %v2551, 0.0
      %v2597 = vmax.f32 %v2555, 0.0
      %v2598 = vmax.f32 %v2557, 0.0
      %v2599 = vmax.f32 %v2561, 0.0
      %v2600 = vmax.f32 %v2563, 0.0
      %v2601 = vmax.f32 %v2567, 0.0
      %v2602 = vmax.f32 %v2569, 0.0
      %v2603 = vld [vmem:[%s6] sm:$0xff]
      %v2604 = vld [vmem:[%s6 + $0x8] sm:$0xff]
      %v2605 = vld [vmem:[%s6 + $0x10] sm:$0xff]
      %v2606 = vld [vmem:[%s6 + $0x18] sm:$0xff]
      %v2607 = vld [vmem:[%s6 + $0x20] sm:$0xff]
      %v2608 = vld [vmem:[%s6 + $0x28] sm:$0xff]
      %v2609 = vld [vmem:[%s6 + $0x30] sm:$0xff]
      %v2610 = vld [vmem:[%s6 + $0x38] sm:$0xff]
      %v2611 = vld [vmem:[%s6 + $0x40] sm:$0xff]
      %v2612 = vld [vmem:[%s6 + $0x48] sm:$0xff]
      %v2613 = vld [vmem:[%s6 + $0x50] sm:$0xff]
      %v2614 = vld [vmem:[%s6 + $0x58] sm:$0xff]
      %v2615 = vld [vmem:[%s6 + $0x60] sm:$0xff]
      %v2616 = vld [vmem:[%s6 + $0x68] sm:$0xff]
      %v2617 = vld [vmem:[%s6 + $0x70] sm:$0xff]
      %v2618 = vld [vmem:[%s6 + $0x78] sm:$0xff]
      %v2619 = vld [vmem:[%s6 + $0x80] sm:$0xff]
      %v2620 = vld [vmem:[%s6 + $0x88] sm:$0xff]
      %v2621 = vld [vmem:[%s6 + $0x90] sm:$0xff]
      %v2622 = vld [vmem:[%s6 + $0x98] sm:$0xff]
      %v2623 = vld [vmem:[%s6 + $0xa0] sm:$0xff]
      %v2624 = vld [vmem:[%s6 + $0xa8] sm:$0xff]
      %v2625 = vld [vmem:[%s6 + $0xb0] sm:$0xff]
      %v2626 = vld [vmem:[%s6 + $0xb8] sm:$0xff]
      %v2627 = vld [vmem:[%s6 + $0xc0] sm:$0xff]
      %v2628 = vld [vmem:[%s6 + $0xc8] sm:$0xff]
      %v2629 = vld [vmem:[%s6 + $0xd0] sm:$0xff]
      %v2630 = vld [vmem:[%s6 + $0xd8] sm:$0xff]
      %v2631 = vld [vmem:[%s6 + $0xe0] sm:$0xff]
      %v2632 = vld [vmem:[%s6 + $0xe8] sm:$0xff]
      %v2633 = vld [vmem:[%s6 + $0xf0] sm:$0xff]
      %v2634 = vld [vmem:[%s6 + $0xf8] sm:$0xff]
      %v2635 = vld [vmem:[%s18] sm:$0x1]
      %v2637 = vlaneseq
      %v2638 = vshrl.u32 %v2637, 7
      %v2639 = vsub.s32 0, %v2638
      %v2640 = vrot.slane %v2635, %v2639
      %2642 = vmatprep.subr.mxu0 0.0
      %2643 = vmatpush1.msra.mxu0 %v2603
      %2644 = vmatprep.subr.mxu0 0.0
      %2645 = vmatpush1.msra.mxu0 %v2604
      %2646 = vmatprep.subr.mxu0 0.0
      %2647 = vmatpush1.msra.mxu0 %v2605
      %2648 = vmatprep.subr.mxu0 0.0
      %2649 = vmatpush1.msra.mxu0 %v2606
      %2650 = vmatprep.subr.mxu0 0.0
      %2651 = vmatpush1.msra.mxu0 %v2607
      %2652 = vmatprep.subr.mxu0 0.0
      %2653 = vmatpush1.msra.mxu0 %v2608
      %2654 = vmatprep.subr.mxu0 0.0
      %2655 = vmatpush1.msra.mxu0 %v2609
      %2656 = vmatprep.subr.mxu0 0.0
      %2657 = vmatpush1.msra.mxu0 %v2610
      %2658 = vmatprep.subr.mxu0 0.0
      %2659 = vmatpush1.msra.mxu0 %v2611
      %2660 = vmatprep.subr.mxu0 0.0
      %2661 = vmatpush1.msra.mxu0 %v2612
      %2662 = vmatprep.subr.mxu0 0.0
      %2663 = vmatpush1.msra.mxu0 %v2613
      %2664 = vmatprep.subr.mxu0 0.0
      %2665 = vmatpush1.msra.mxu0 %v2614
      %2666 = vmatprep.subr.mxu0 0.0
      %2667 = vmatpush1.msra.mxu0 %v2615
      %2668 = vmatprep.subr.mxu0 0.0
      %2669 = vmatpush1.msra.mxu0 %v2616
      %2670 = vmatprep.subr.mxu0 0.0
      %2671 = vmatpush1.msra.mxu0 %v2617
      %2672 = vmatprep.subr.mxu0 0.0
      %2673 = vmatpush1.msra.mxu0 %v2618
      %2674 = vmatprep.subr.mxu0 0.0
      %2675 = vmatpush1.msra.mxu0 %v2619
      %2676 = vmatprep.subr.mxu0 0.0
      %2677 = vmatpush1.msra.mxu0 %v2620
      %2678 = vmatprep.subr.mxu0 0.0
      %2679 = vmatpush1.msra.mxu0 %v2621
      %2680 = vmatprep.subr.mxu0 0.0
      %2681 = vmatpush1.msra.mxu0 %v2622
      %2682 = vmatprep.subr.mxu0 0.0
      %2683 = vmatpush1.msra.mxu0 %v2623
      %2684 = vmatprep.subr.mxu0 0.0
      %2685 = vmatpush1.msra.mxu0 %v2624
      %2686 = vmatprep.subr.mxu0 0.0
      %2687 = vmatpush1.msra.mxu0 %v2625
      %2688 = vmatprep.subr.mxu0 0.0
      %2689 = vmatpush1.msra.mxu0 %v2626
      %2690 = vmatprep.subr.mxu0 0.0
      %2691 = vmatpush1.msra.mxu0 %v2627
      %2692 = vmatprep.subr.mxu0 0.0
      %2693 = vmatpush1.msra.mxu0 %v2628
      %2694 = vmatprep.subr.mxu0 0.0
      %2695 = vmatpush1.msra.mxu0 %v2629
      %2696 = vmatprep.subr.mxu0 0.0
      %2697 = vmatpush1.msra.mxu0 %v2630
      %2698 = vmatprep.subr.mxu0 0.0
      %2699 = vmatpush1.msra.mxu0 %v2631
      %2700 = vmatprep.subr.mxu0 0.0
      %2701 = vmatpush1.msra.mxu0 %v2632
      %2702 = vmatprep.subr.mxu0 0.0
      %2703 = vmatpush1.msra.mxu0 %v2633
      %2704 = vmatprep.subr.mxu0 0.0
      %2705 = vmatpush1.msra.mxu0 %v2634
      %2706 = vmatprep.mubr.f32.mxu0 %v2572
      %2707 = vmatmul.mubr.f32.gmra.mrb[0].mxu0 %v2571
      %v2708 = vpop.f32.mrb[0].mxu0
      %v2709 = vadd.f32 %v2640, %v2708
      %v2710 = vpop.f32.mrb[0].mxu0
      %2711 = vmatprep.mubr.f32.mxu0 %v2574
      %2712 = vmatmul.mubr.f32.gmra.mrb[0].mxu0 %v2573
      %v2713 = vpop.f32.mrb[0].mxu0
      %v2714 = vadd.f32 %v2640, %v2713
      %v2715 = vpop.f32.mrb[0].mxu0
      %2716 = vmatprep.mubr.f32.mxu0 %v2576
      %2717 = vmatmul.mubr.f32.gmra.mrb[0].mxu0 %v2575
      %v2718 = vpop.f32.mrb[0].mxu0
      %v2719 = vadd.f32 %v2640, %v2718
      %v2720 = vpop.f32.mrb[0].mxu0
      %2721 = vmatprep.mubr.f32.mxu0 %v2578
      %2722 = vmatmul.mubr.f32.gmra.mrb[0].mxu0 %v2577
      %v2723 = vpop.f32.mrb[0].mxu0
      %v2724 = vadd.f32 %v2640, %v2723
      %v2725 = vpop.f32.mrb[0].mxu0
      %2726 = vmatprep.mubr.f32.mxu0 %v2580
      %2727 = vmatmul.mubr.f32.gmra.mrb[0].mxu0 %v2579
      %v2728 = vpop.f32.mrb[0].mxu0
      %v2729 = vadd.f32 %v2640, %v2728
      %v2730 = vpop.f32.mrb[0].mxu0
      %2731 = vmatprep.mubr.f32.mxu0 %v2582
      %2732 = vmatmul.mubr.f32.gmra.mrb[0].mxu0 %v2581
      %v2733 = vpop.f32.mrb[0].mxu0
      %v2734 = vadd.f32 %v2640, %v2733
      %v2735 = vpop.f32.mrb[0].mxu0
      %2736 = vmatprep.mubr.f32.mxu0 %v2584
      %2737 = vmatmul.mubr.f32.gmra.mrb[0].mxu0 %v2583
      %v2738 = vpop.f32.mrb[0].mxu0
      %v2739 = vadd.f32 %v2640, %v2738
      %v2740 = vpop.f32.mrb[0].mxu0
      %2741 = vmatprep.mubr.f32.mxu0 %v2586
      %2742 = vmatmul.mubr.f32.gmra.mrb[0].mxu0 %v2585
      %v2743 = vpop.f32.mrb[0].mxu0
      %v2744 = vadd.f32 %v2640, %v2743
      %v2745 = vpop.f32.mrb[0].mxu0
      %2746 = vmatprep.mubr.f32.mxu0 %v2588
      %2747 = vmatmul.mubr.f32.gmra.mrb[0].mxu0 %v2587
      %v2748 = vpop.f32.mrb[0].mxu0
      %v2749 = vadd.f32 %v2640, %v2748
      %v2750 = vpop.f32.mrb[0].mxu0
      %2751 = vmatprep.mubr.f32.mxu0 %v2590
      %2752 = vmatmul.mubr.f32.gmra.mrb[0].mxu0 %v2589
      %v2753 = vpop.f32.mrb[0].mxu0
      %v2754 = vadd.f32 %v2640, %v2753
      %v2755 = vpop.f32.mrb[0].mxu0
      %2756 = vmatprep.mubr.f32.mxu0 %v2592
      %2757 = vmatmul.mubr.f32.gmra.mrb[0].mxu0 %v2591
      %v2758 = vpop.f32.mrb[0].mxu0
      %v2759 = vadd.f32 %v2640, %v2758
      %v2760 = vpop.f32.mrb[0].mxu0
      %2761 = vmatprep.mubr.f32.mxu0 %v2594
      %2762 = vmatmul.mubr.f32.gmra.mrb[0].mxu0 %v2593
      %v2763 = vpop.f32.mrb[0].mxu0
      %v2764 = vadd.f32 %v2640, %v2763
      %v2765 = vpop.f32.mrb[0].mxu0
      %2766 = vmatprep.mubr.f32.mxu0 %v2596
      %2767 = vmatmul.mubr.f32.gmra.mrb[0].mxu0 %v2595
      %v2768 = vpop.f32.mrb[0].mxu0
      %v2769 = vadd.f32 %v2640, %v2768
      %v2770 = vpop.f32.mrb[0].mxu0
      %2771 = vmatprep.mubr.f32.mxu0 %v2598
      %2772 = vmatmul.mubr.f32.gmra.mrb[0].mxu0 %v2597
      %v2773 = vpop.f32.mrb[0].mxu0
      %v2774 = vadd.f32 %v2640, %v2773
      %v2775 = vpop.f32.mrb[0].mxu0
      %2776 = vmatprep.mubr.f32.mxu0 %v2600
      %2777 = vmatmul.mubr.f32.gmra.mrb[0].mxu0 %v2599
      %v2778 = vpop.f32.mrb[0].mxu0
      %v2779 = vadd.f32 %v2640, %v2778
      %v2780 = vpop.f32.mrb[0].mxu0
      %2781 = vmatprep.mubr.f32.mxu0 %v2602
      %2782 = vmatmul.mubr.f32.gmra.mrb[0].mxu0 %v2601
      %v2783 = vpop.f32.mrb[0].mxu0
      %v2784 = vadd.f32 %v2640, %v2783
      %v2785 = vpop.f32.mrb[0].mxu0
      %2786 = vdwg.mxu0
      %v2787 = vld [vmem:[%s9] sm:$0xff]
      %v2788 = vld [vmem:[%s9 + $0x8] sm:$0xff]
      %vm2789 = vcmask 64512
      %v2791 = vsel %vm2789, %v2709, 0
      %v2794 = vsel %vm2789, %v2714, 0
      %v2797 = vsel %vm2789, %v2719, 0
      %v2800 = vsel %vm2789, %v2724, 0
      %v2803 = vsel %vm2789, %v2729, 0
      %v2806 = vsel %vm2789, %v2734, 0
      %v2809 = vsel %vm2789, %v2739, 0
      %v2812 = vsel %vm2789, %v2744, 0
      %v2815 = vsel %vm2789, %v2749, 0
      %v2818 = vsel %vm2789, %v2754, 0
      %v2821 = vsel %vm2789, %v2759, 0
      %v2824 = vsel %vm2789, %v2764, 0
      %v2827 = vsel %vm2789, %v2769, 0
      %v2830 = vsel %vm2789, %v2774, 0
      %v2833 = vsel %vm2789, %v2779, 0
      %v2836 = vsel %vm2789, %v2784, 0
      %2838 = vmatprep.subr.mxu0 %v2788
      %2839 = vmatpush1.msra.mxu0 %v2787
      %2840 = vmatprep.subr.mxu0 0.0
      %2841 = vmatpush1.msra.mxu0 0.0
      %2842 = vmatprep.subr.mxu0 0.0
      %2843 = vmatpush1.msra.mxu0 0.0
      %2844 = vmatprep.subr.mxu0 0.0
      %2845 = vmatpush1.msra.mxu0 0.0
      %2846 = vmatprep.subr.mxu0 0.0
      %2847 = vmatpush1.msra.mxu0 0.0
      %2848 = vmatprep.subr.mxu0 0.0
      %2849 = vmatpush1.msra.mxu0 0.0
      %2850 = vmatprep.subr.mxu0 0.0
      %2851 = vmatpush1.msra.mxu0 0.0
      %2852 = vmatprep.subr.mxu0 0.0
      %2853 = vmatpush1.msra.mxu0 0.0
      %2854 = vmatprep.subr.mxu0 0.0
      %2855 = vmatpush1.msra.mxu0 0.0
      %2856 = vmatprep.subr.mxu0 0.0
      %2857 = vmatpush1.msra.mxu0 0.0
      %2858 = vmatprep.subr.mxu0 0.0
      %2859 = vmatpush1.msra.mxu0 0.0
      %2860 = vmatprep.subr.mxu0 0.0
      %2861 = vmatpush1.msra.mxu0 0.0
      %2862 = vmatprep.subr.mxu0 0.0
      %2863 = vmatpush1.msra.mxu0 0.0
      %2864 = vmatprep.subr.mxu0 0.0
      %2865 = vmatpush1.msra.mxu0 0.0
      %2866 = vmatprep.subr.mxu0 0.0
      %2867 = vmatpush1.msra.mxu0 0.0
      %2868 = vmatprep.subr.mxu0 0.0
      %2869 = vmatpush1.msra.mxu0 0.0
      %2870 = vmatprep.subr.mxu0 0.0
      %2871 = vmatpush1.msra.mxu0 0.0
      %2872 = vmatprep.subr.mxu0 0.0
      %2873 = vmatpush1.msra.mxu0 0.0
      %2874 = vmatprep.subr.mxu0 0.0
      %2875 = vmatpush1.msra.mxu0 0.0
      %2876 = vmatprep.subr.mxu0 0.0
      %2877 = vmatpush1.msra.mxu0 0.0
      %2878 = vmatprep.subr.mxu0 0.0
      %2879 = vmatpush1.msra.mxu0 0.0
      %2880 = vmatprep.subr.mxu0 0.0
      %2881 = vmatpush1.msra.mxu0 0.0
      %2882 = vmatprep.subr.mxu0 0.0
      %2883 = vmatpush1.msra.mxu0 0.0
      %2884 = vmatprep.subr.mxu0 0.0
      %2885 = vmatpush1.msra.mxu0 0.0
      %2886 = vmatprep.subr.mxu0 0.0
      %2887 = vmatpush1.msra.mxu0 0.0
      %2888 = vmatprep.subr.mxu0 0.0
      %2889 = vmatpush1.msra.mxu0 0.0
      %2890 = vmatprep.subr.mxu0 0.0
      %2891 = vmatpush1.msra.mxu0 0.0
      %2892 = vmatprep.subr.mxu0 0.0
      %2893 = vmatpush1.msra.mxu0 0.0
      %2894 = vmatprep.subr.mxu0 0.0
      %2895 = vmatpush1.msra.mxu0 0.0
      %2896 = vmatprep.subr.mxu0 0.0
      %2897 = vmatpush1.msra.mxu0 0.0
      %2898 = vmatprep.subr.mxu0 0.0
      %2899 = vmatpush1.msra.mxu0 0.0
      %2900 = vmatprep.subr.mxu0 0.0
      %2901 = vmatpush1.msra.mxu0 0.0
      %2902 = vmatprep.mubr.f32.mxu0 0.0
      %2903 = vmatmul.mubr.f32.gmra.mrb[0].mxu0 %v2791
      %v2904 = vpop.f32.mrb[0].mxu0
      %v2905 = vadd.f32 0.0, %v2904
      %v2906 = vpop.f32.mrb[0].mxu0
      %v2907 = vadd.f32 0.0, %v2906
      %2908 = vmatprep.mubr.f32.mxu0 0.0
      %2909 = vmatmul.mubr.f32.gmra.mrb[0].mxu0 %v2794
      %v2910 = vpop.f32.mrb[0].mxu0
      %v2911 = vadd.f32 0.0, %v2910
      %v2912 = vpop.f32.mrb[0].mxu0
      %v2913 = vadd.f32 0.0, %v2912
      %2914 = vmatprep.mubr.f32.mxu0 0.0
      %2915 = vmatmul.mubr.f32.gmra.mrb[0].mxu0 %v2797
      %v2916 = vpop.f32.mrb[0].mxu0
      %v2917 = vadd.f32 0.0, %v2916
      %v2918 = vpop.f32.mrb[0].mxu0
      %v2919 = vadd.f32 0.0, %v2918
      %2920 = vmatprep.mubr.f32.mxu0 0.0
      %2921 = vmatmul.mubr.f32.gmra.mrb[0].mxu0 %v2800
      %v2922 = vpop.f32.mrb[0].mxu0
      %v2923 = vadd.f32 0.0, %v2922
      %v2924 = vpop.f32.mrb[0].mxu0
      %v2925 = vadd.f32 0.0, %v2924
      %2926 = vmatprep.mubr.f32.mxu0 0.0
      %2927 = vmatmul.mubr.f32.gmra.mrb[0].mxu0 %v2803
      %v2928 = vpop.f32.mrb[0].mxu0
      %v2929 = vadd.f32 0.0, %v2928
      %v2930 = vpop.f32.mrb[0].mxu0
      %v2931 = vadd.f32 0.0, %v2930
      %2932 = vmatprep.mubr.f32.mxu0 0.0
      %2933 = vmatmul.mubr.f32.gmra.mrb[0].mxu0 %v2806
      %v2934 = vpop.f32.mrb[0].mxu0
      %v2935 = vadd.f32 0.0, %v2934
      %v2936 = vpop.f32.mrb[0].mxu0
      %v2937 = vadd.f32 0.0, %v2936
      %2938 = vmatprep.mubr.f32.mxu0 0.0
      %2939 = vmatmul.mubr.f32.gmra.mrb[0].mxu0 %v2809
      %v2940 = vpop.f32.mrb[0].mxu0
      %v2941 = vadd.f32 0.0, %v2940
      %v2942 = vpop.f32.mrb[0].mxu0
      %v2943 = vadd.f32 0.0, %v2942
      %2944 = vmatprep.mubr.f32.mxu0 0.0
      %2945 = vmatmul.mubr.f32.gmra.mrb[0].mxu0 %v2812
      %v2946 = vpop.f32.mrb[0].mxu0
      %v2947 = vadd.f32 0.0, %v2946
      %v2948 = vpop.f32.mrb[0].mxu0
      %v2949 = vadd.f32 0.0, %v2948
      %2950 = vmatprep.mubr.f32.mxu0 0.0
      %2951 = vmatmul.mubr.f32.gmra.mrb[0].mxu0 %v2815
      %v2952 = vpop.f32.mrb[0].mxu0
      %v2953 = vadd.f32 0.0, %v2952
      %v2954 = vpop.f32.mrb[0].mxu0
      %v2955 = vadd.f32 0.0, %v2954
      %2956 = vmatprep.mubr.f32.mxu0 0.0
      %2957 = vmatmul.mubr.f32.gmra.mrb[0].mxu0 %v2818
      %v2958 = vpop.f32.mrb[0].mxu0
      %v2959 = vadd.f32 0.0, %v2958
      %v2960 = vpop.f32.mrb[0].mxu0
      %v2961 = vadd.f32 0.0, %v2960
      %2962 = vmatprep.mubr.f32.mxu0 0.0
      %2963 = vmatmul.mubr.f32.gmra.mrb[0].mxu0 %v2821
      %v2964 = vpop.f32.mrb[0].mxu0
      %v2965 = vadd.f32 0.0, %v2964
      %v2966 = vpop.f32.mrb[0].mxu0
      %v2967 = vadd.f32 0.0, %v2966
      %2968 = vmatprep.mubr.f32.mxu0 0.0
      %2969 = vmatmul.mubr.f32.gmra.mrb[0].mxu0 %v2824
      %v2970 = vpop.f32.mrb[0].mxu0
      %v2971 = vadd.f32 0.0, %v2970
      %v2972 = vpop.f32.mrb[0].mxu0
      %v2973 = vadd.f32 0.0, %v2972
      %2974 = vmatprep.mubr.f32.mxu0 0.0
      %2975 = vmatmul.mubr.f32.gmra.mrb[0].mxu0 %v2827
      %v2976 = vpop.f32.mrb[0].mxu0
      %v2977 = vadd.f32 0.0, %v2976
      %v2978 = vpop.f32.mrb[0].mxu0
      %v2979 = vadd.f32 0.0, %v2978
      %2980 = vmatprep.mubr.f32.mxu0 0.0
      %2981 = vmatmul.mubr.f32.gmra.mrb[0].mxu0 %v2830
      %v2982 = vpop.f32.mrb[0].mxu0
      %v2983 = vadd.f32 0.0, %v2982
      %v2984 = vpop.f32.mrb[0].mxu0
      %v2985 = vadd.f32 0.0, %v2984
      %2986 = vmatprep.mubr.f32.mxu0 0.0
      %2987 = vmatmul.mubr.f32.gmra.mrb[0].mxu0 %v2833
      %v2988 = vpop.f32.mrb[0].mxu0
      %v2989 = vadd.f32 0.0, %v2988
      %v2990 = vpop.f32.mrb[0].mxu0
      %v2991 = vadd.f32 0.0, %v2990
      %2992 = vmatprep.mubr.f32.mxu0 0.0
      %2993 = vmatmul.mubr.f32.gmra.mrb[0].mxu0 %v2836
      %v2994 = vpop.f32.mrb[0].mxu0
      %v2995 = vadd.f32 0.0, %v2994
      %v2996 = vpop.f32.mrb[0].mxu0
      %v2997 = vadd.f32 0.0, %v2996
      %2998 = vdwg.mxu0
      %v2999 = vadd.f32 %v1491, %v2905
      %v3000 = vadd.f32 %v1493, %v2907
      %v3001 = vadd.f32 %v1497, %v2911
      %v3002 = vadd.f32 %v1499, %v2913
      %v3003 = vadd.f32 %v1503, %v2917
      %v3004 = vadd.f32 %v1505, %v2919
      %v3005 = vadd.f32 %v1509, %v2923
      %v3006 = vadd.f32 %v1511, %v2925
      %v3007 = vadd.f32 %v1515, %v2929
      %v3008 = vadd.f32 %v1517, %v2931
      %v3009 = vadd.f32 %v1521, %v2935
      %v3010 = vadd.f32 %v1523, %v2937
      %v3011 = vadd.f32 %v1527, %v2941
      %v3012 = vadd.f32 %v1529, %v2943
      %v3013 = vadd.f32 %v1533, %v2947
      %v3014 = vadd.f32 %v1535, %v2949
      %v3015 = vadd.f32 %v1539, %v2953
      %v3016 = vadd.f32 %v1541, %v2955
      %v3017 = vadd.f32 %v1545, %v2959
      %v3018 = vadd.f32 %v1547, %v2961
      %v3019 = vadd.f32 %v1551, %v2965
      %v3020 = vadd.f32 %v1553, %v2967
      %v3021 = vadd.f32 %v1557, %v2971
      %v3022 = vadd.f32 %v1559, %v2973
      %v3023 = vadd.f32 %v1563, %v2977
      %v3024 = vadd.f32 %v1565, %v2979
      %v3025 = vadd.f32 %v1569, %v2983
      %v3026 = vadd.f32 %v1571, %v2985
      %v3027 = vadd.f32 %v1575, %v2989
      %v3028 = vadd.f32 %v1577, %v2991
      %v3029 = vadd.f32 %v1581, %v2995
      %v3030 = vadd.f32 %v1583, %v2997
      %v3031 = vld [vmem:[%s19] sm:$0x3]
      %v3033 = vlaneseq
      %v3034 = vshrl.u32 %v3033, 7
      %v3035 = vsub.s32 0, %v3034
      %v3036 = vrot.slane %v3031, %v3035
      %v3037 = vlaneseq
      %v3038 = vshrl.u32 %v3037, 7
      %v3039 = vsub.s32 1, %v3038
      %v3040 = vrot.slane %v3031, %v3039
      %v3043 = vadd.f32 %v2999, %v3036
      %v3044 = vadd.f32 %v3000, %v3040
      %v3045 = vadd.f32 %v3001, %v3036
      %v3046 = vadd.f32 %v3002, %v3040
      %v3047 = vadd.f32 %v3003, %v3036
      %v3048 = vadd.f32 %v3004, %v3040
      %v3049 = vadd.f32 %v3005, %v3036
      %v3050 = vadd.f32 %v3006, %v3040
      %v3051 = vadd.f32 %v3007, %v3036
      %v3052 = vadd.f32 %v3008, %v3040
      %v3053 = vadd.f32 %v3009, %v3036
      %v3054 = vadd.f32 %v3010, %v3040
      %v3055 = vadd.f32 %v3011, %v3036
      %v3056 = vadd.f32 %v3012, %v3040
      %v3057 = vadd.f32 %v3013, %v3036
      %v3058 = vadd.f32 %v3014, %v3040
      %v3059 = vadd.f32 %v3015, %v3036
      %v3060 = vadd.f32 %v3016, %v3040
      %v3061 = vadd.f32 %v3017, %v3036
      %v3062 = vadd.f32 %v3018, %v3040
      %v3063 = vadd.f32 %v3019, %v3036
      %v3064 = vadd.f32 %v3020, %v3040
      %v3065 = vadd.f32 %v3021, %v3036
      %v3066 = vadd.f32 %v3022, %v3040
      %v3067 = vadd.f32 %v3023, %v3036
      %v3068 = vadd.f32 %v3024, %v3040
      %v3069 = vadd.f32 %v3025, %v3036
      %v3070 = vadd.f32 %v3026, %v3040
      %v3071 = vadd.f32 %v3027, %v3036
      %v3072 = vadd.f32 %v3028, %v3040
      %v3073 = vadd.f32 %v3029, %v3036
      %v3074 = vadd.f32 %v3030, %v3040
      %v3075 = vmax.f32 %v3043, 0.0
      %v3076 = vmax.f32 %v3044, 0.0
      %v3077 = vmax.f32 %v3045, 0.0
      %v3078 = vmax.f32 %v3046, 0.0
      %v3079 = vmax.f32 %v3047, 0.0
      %v3080 = vmax.f32 %v3048, 0.0
      %v3081 = vmax.f32 %v3049, 0.0
      %v3082 = vmax.f32 %v3050, 0.0
      %v3083 = vmax.f32 %v3051, 0.0
      %v3084 = vmax.f32 %v3052, 0.0
      %v3085 = vmax.f32 %v3053, 0.0
      %v3086 = vmax.f32 %v3054, 0.0
      %v3087 = vmax.f32 %v3055, 0.0
      %v3088 = vmax.f32 %v3056, 0.0
      %v3089 = vmax.f32 %v3057, 0.0
      %v3090 = vmax.f32 %v3058, 0.0
      %v3091 = vmax.f32 %v3059, 0.0
      %v3092 = vmax.f32 %v3060, 0.0
      %v3093 = vmax.f32 %v3061, 0.0
      %v3094 = vmax.f32 %v3062, 0.0
      %v3095 = vmax.f32 %v3063, 0.0
      %v3096 = vmax.f32 %v3064, 0.0
      %v3097 = vmax.f32 %v3065, 0.0
      %v3098 = vmax.f32 %v3066, 0.0
      %v3099 = vmax.f32 %v3067, 0.0
      %v3100 = vmax.f32 %v3068, 0.0
      %v3101 = vmax.f32 %v3069, 0.0
      %v3102 = vmax.f32 %v3070, 0.0
      %v3103 = vmax.f32 %v3071, 0.0
      %v3104 = vmax.f32 %v3072, 0.0
      %v3105 = vmax.f32 %v3073, 0.0
      %v3106 = vmax.f32 %v3074, 0.0
      %v3107 = vld [vmem:[%s10] sm:$0xff]
      %v3108 = vld [vmem:[%s10 + $0x8] sm:$0xff]
      %v3109 = vld [vmem:[%s10 + $0x10] sm:$0xff]
      %v3110 = vld [vmem:[%s10 + $0x18] sm:$0xff]
      %v3111 = vld [vmem:[%s10 + $0x20] sm:$0xff]
      %v3112 = vld [vmem:[%s10 + $0x28] sm:$0xff]
      %v3113 = vld [vmem:[%s10 + $0x30] sm:$0xff]
      %v3114 = vld [vmem:[%s10 + $0x38] sm:$0xff]
      %v3115 = vld [vmem:[%s10 + $0x40] sm:$0xff]
      %v3116 = vld [vmem:[%s10 + $0x48] sm:$0xff]
      %v3117 = vld [vmem:[%s10 + $0x50] sm:$0xff]
      %v3118 = vld [vmem:[%s10 + $0x58] sm:$0xff]
      %v3119 = vld [vmem:[%s10 + $0x60] sm:$0xff]
      %v3120 = vld [vmem:[%s10 + $0x68] sm:$0xff]
      %v3121 = vld [vmem:[%s10 + $0x70] sm:$0xff]
      %v3122 = vld [vmem:[%s10 + $0x78] sm:$0xff]
      %v3123 = vld [vmem:[%s10 + $0x80] sm:$0xff]
      %v3124 = vld [vmem:[%s10 + $0x88] sm:$0xff]
      %v3125 = vld [vmem:[%s10 + $0x90] sm:$0xff]
      %v3126 = vld [vmem:[%s10 + $0x98] sm:$0xff]
      %v3127 = vld [vmem:[%s10 + $0xa0] sm:$0xff]
      %v3128 = vld [vmem:[%s10 + $0xa8] sm:$0xff]
      %v3129 = vld [vmem:[%s10 + $0xb0] sm:$0xff]
      %v3130 = vld [vmem:[%s10 + $0xb8] sm:$0xff]
      %v3131 = vld [vmem:[%s10 + $0xc0] sm:$0xff]
      %v3132 = vld [vmem:[%s10 + $0xc8] sm:$0xff]
      %v3133 = vld [vmem:[%s10 + $0xd0] sm:$0xff]
      %v3134 = vld [vmem:[%s10 + $0xd8] sm:$0xff]
      %v3135 = vld [vmem:[%s10 + $0xe0] sm:$0xff]
      %v3136 = vld [vmem:[%s10 + $0xe8] sm:$0xff]
      %v3137 = vld [vmem:[%s10 + $0xf0] sm:$0xff]
      %v3138 = vld [vmem:[%s10 + $0xf8] sm:$0xff]
      %v3139 = vld [vmem:[%s21] sm:$0x1]
      %v3141 = vlaneseq
      %v3142 = vshrl.u32 %v3141, 7
      %v3143 = vsub.s32 0, %v3142
      %v3144 = vrot.slane %v3139, %v3143
      %3146 = vmatprep.subr.mxu0 0.0
      %3147 = vmatpush1.msra.mxu0 %v3107
      %3148 = vmatprep.subr.mxu0 0.0
      %3149 = vmatpush1.msra.mxu0 %v3108
      %3150 = vmatprep.subr.mxu0 0.0
      %3151 = vmatpush1.msra.mxu0 %v3109
      %3152 = vmatprep.subr.mxu0 0.0
      %3153 = vmatpush1.msra.mxu0 %v3110
      %3154 = vmatprep.subr.mxu0 0.0
      %3155 = vmatpush1.msra.mxu0 %v3111
      %3156 = vmatprep.subr.mxu0 0.0
      %3157 = vmatpush1.msra.mxu0 %v3112
      %3158 = vmatprep.subr.mxu0 0.0
      %3159 = vmatpush1.msra.mxu0 %v3113
      %3160 = vmatprep.subr.mxu0 0.0
      %3161 = vmatpush1.msra.mxu0 %v3114
      %3162 = vmatprep.subr.mxu0 0.0
      %3163 = vmatpush1.msra.mxu0 %v3115
      %3164 = vmatprep.subr.mxu0 0.0
      %3165 = vmatpush1.msra.mxu0 %v3116
      %3166 = vmatprep.subr.mxu0 0.0
      %3167 = vmatpush1.msra.mxu0 %v3117
      %3168 = vmatprep.subr.mxu0 0.0
      %3169 = vmatpush1.msra.mxu0 %v3118
      %3170 = vmatprep.subr.mxu0 0.0
      %3171 = vmatpush1.msra.mxu0 %v3119
      %3172 = vmatprep.subr.mxu0 0.0
      %3173 = vmatpush1.msra.mxu0 %v3120
      %3174 = vmatprep.subr.mxu0 0.0
      %3175 = vmatpush1.msra.mxu0 %v3121
      %3176 = vmatprep.subr.mxu0 0.0
      %3177 = vmatpush1.msra.mxu0 %v3122
      %3178 = vmatprep.subr.mxu0 0.0
      %3179 = vmatpush1.msra.mxu0 %v3123
      %3180 = vmatprep.subr.mxu0 0.0
      %3181 = vmatpush1.msra.mxu0 %v3124
      %3182 = vmatprep.subr.mxu0 0.0
      %3183 = vmatpush1.msra.mxu0 %v3125
      %3184 = vmatprep.subr.mxu0 0.0
      %3185 = vmatpush1.msra.mxu0 %v3126
      %3186 = vmatprep.subr.mxu0 0.0
      %3187 = vmatpush1.msra.mxu0 %v3127
      %3188 = vmatprep.subr.mxu0 0.0
      %3189 = vmatpush1.msra.mxu0 %v3128
      %3190 = vmatprep.subr.mxu0 0.0
      %3191 = vmatpush1.msra.mxu0 %v3129
      %3192 = vmatprep.subr.mxu0 0.0
      %3193 = vmatpush1.msra.mxu0 %v3130
      %3194 = vmatprep.subr.mxu0 0.0
      %3195 = vmatpush1.msra.mxu0 %v3131
      %3196 = vmatprep.subr.mxu0 0.0
      %3197 = vmatpush1.msra.mxu0 %v3132
      %3198 = vmatprep.subr.mxu0 0.0
      %3199 = vmatpush1.msra.mxu0 %v3133
      %3200 = vmatprep.subr.mxu0 0.0
      %3201 = vmatpush1.msra.mxu0 %v3134
      %3202 = vmatprep.subr.mxu0 0.0
      %3203 = vmatpush1.msra.mxu0 %v3135
      %3204 = vmatprep.subr.mxu0 0.0
      %3205 = vmatpush1.msra.mxu0 %v3136
      %3206 = vmatprep.subr.mxu0 0.0
      %3207 = vmatpush1.msra.mxu0 %v3137
      %3208 = vmatprep.subr.mxu0 0.0
      %3209 = vmatpush1.msra.mxu0 %v3138
      %3210 = vmatprep.mubr.f32.mxu0 %v3076
      %3211 = vmatmul.mubr.f32.gmra.mrb[0].mxu0 %v3075
      %v3212 = vpop.f32.mrb[0].mxu0
      %v3213 = vadd.f32 %v3144, %v3212
      %v3214 = vpop.f32.mrb[0].mxu0
      %3215 = vmatprep.mubr.f32.mxu0 %v3078
      %3216 = vmatmul.mubr.f32.gmra.mrb[0].mxu0 %v3077
      %v3217 = vpop.f32.mrb[0].mxu0
      %v3218 = vadd.f32 %v3144, %v3217
      %v3219 = vpop.f32.mrb[0].mxu0
      %3220 = vmatprep.mubr.f32.mxu0 %v3080
      %3221 = vmatmul.mubr.f32.gmra.mrb[0].mxu0 %v3079
      %v3222 = vpop.f32.mrb[0].mxu0
      %v3223 = vadd.f32 %v3144, %v3222
      %v3224 = vpop.f32.mrb[0].mxu0
      %3225 = vmatprep.mubr.f32.mxu0 %v3082
      %3226 = vmatmul.mubr.f32.gmra.mrb[0].mxu0 %v3081
      %v3227 = vpop.f32.mrb[0].mxu0
      %v3228 = vadd.f32 %v3144, %v3227
      %v3229 = vpop.f32.mrb[0].mxu0
      %3230 = vmatprep.mubr.f32.mxu0 %v3084
      %3231 = vmatmul.mubr.f32.gmra.mrb[0].mxu0 %v3083
      %v3232 = vpop.f32.mrb[0].mxu0
      %v3233 = vadd.f32 %v3144, %v3232
      %v3234 = vpop.f32.mrb[0].mxu0
      %3235 = vmatprep.mubr.f32.mxu0 %v3086
      %3236 = vmatmul.mubr.f32.gmra.mrb[0].mxu0 %v3085
      %v3237 = vpop.f32.mrb[0].mxu0
      %v3238 = vadd.f32 %v3144, %v3237
      %v3239 = vpop.f32.mrb[0].mxu0
      %3240 = vmatprep.mubr.f32.mxu0 %v3088
      %3241 = vmatmul.mubr.f32.gmra.mrb[0].mxu0 %v3087
      %v3242 = vpop.f32.mrb[0].mxu0
      %v3243 = vadd.f32 %v3144, %v3242
      %v3244 = vpop.f32.mrb[0].mxu0
      %3245 = vmatprep.mubr.f32.mxu0 %v3090
      %3246 = vmatmul.mubr.f32.gmra.mrb[0].mxu0 %v3089
      %v3247 = vpop.f32.mrb[0].mxu0
      %v3248 = vadd.f32 %v3144, %v3247
      %v3249 = vpop.f32.mrb[0].mxu0
      %3250 = vmatprep.mubr.f32.mxu0 %v3092
      %3251 = vmatmul.mubr.f32.gmra.mrb[0].mxu0 %v3091
      %v3252 = vpop.f32.mrb[0].mxu0
      %v3253 = vadd.f32 %v3144, %v3252
      %v3254 = vpop.f32.mrb[0].mxu0
      %3255 = vmatprep.mubr.f32.mxu0 %v3094
      %3256 = vmatmul.mubr.f32.gmra.mrb[0].mxu0 %v3093
      %v3257 = vpop.f32.mrb[0].mxu0
      %v3258 = vadd.f32 %v3144, %v3257
      %v3259 = vpop.f32.mrb[0].mxu0
      %3260 = vmatprep.mubr.f32.mxu0 %v3096
      %3261 = vmatmul.mubr.f32.gmra.mrb[0].mxu0 %v3095
      %v3262 = vpop.f32.mrb[0].mxu0
      %v3263 = vadd.f32 %v3144, %v3262
      %v3264 = vpop.f32.mrb[0].mxu0
      %3265 = vmatprep.mubr.f32.mxu0 %v3098
      %3266 = vmatmul.mubr.f32.gmra.mrb[0].mxu0 %v3097
      %v3267 = vpop.f32.mrb[0].mxu0
      %v3268 = vadd.f32 %v3144, %v3267
      %v3269 = vpop.f32.mrb[0].mxu0
      %3270 = vmatprep.mubr.f32.mxu0 %v3100
      %3271 = vmatmul.mubr.f32.gmra.mrb[0].mxu0 %v3099
      %v3272 = vpop.f32.mrb[0].mxu0
      %v3273 = vadd.f32 %v3144, %v3272
      %v3274 = vpop.f32.mrb[0].mxu0
      %3275 = vmatprep.mubr.f32.mxu0 %v3102
      %3276 = vmatmul.mubr.f32.gmra.mrb[0].mxu0 %v3101
      %v3277 = vpop.f32.mrb[0].mxu0
      %v3278 = vadd.f32 %v3144, %v3277
      %v3279 = vpop.f32.mrb[0].mxu0
      %3280 = vmatprep.mubr.f32.mxu0 %v3104
      %3281 = vmatmul.mubr.f32.gmra.mrb[0].mxu0 %v3103
      %v3282 = vpop.f32.mrb[0].mxu0
      %v3283 = vadd.f32 %v3144, %v3282
      %v3284 = vpop.f32.mrb[0].mxu0
      %3285 = vmatprep.mubr.f32.mxu0 %v3106
      %3286 = vmatmul.mubr.f32.gmra.mrb[0].mxu0 %v3105
      %v3287 = vpop.f32.mrb[0].mxu0
      %v3288 = vadd.f32 %v3144, %v3287
      %v3289 = vpop.f32.mrb[0].mxu0
      %3290 = vdwg.mxu0
      %v3291 = vadd.f32 %v1652, %v1266
      %v3292 = vadd.f32 %v1654, %v1268
      %v3293 = vadd.f32 %v1658, %v1272
      %v3294 = vadd.f32 %v1660, %v1274
      %v3295 = vadd.f32 %v1664, %v1278
      %v3296 = vadd.f32 %v1666, %v1280
      %v3297 = vadd.f32 %v1670, %v1284
      %v3298 = vadd.f32 %v1672, %v1286
      %v3299 = vadd.f32 %v1676, %v1290
      %v3300 = vadd.f32 %v1678, %v1292
      %v3301 = vadd.f32 %v1682, %v1296
      %v3302 = vadd.f32 %v1684, %v1298
      %v3303 = vadd.f32 %v1688, %v1302
      %v3304 = vadd.f32 %v1690, %v1304
      %v3305 = vadd.f32 %v1694, %v1308
      %v3306 = vadd.f32 %v1696, %v1310
      %v3307 = vadd.f32 %v1700, %v1314
      %v3308 = vadd.f32 %v1702, %v1316
      %v3309 = vadd.f32 %v1706, %v1320
      %v3310 = vadd.f32 %v1708, %v1322
      %v3311 = vadd.f32 %v1712, %v1326
      %v3312 = vadd.f32 %v1714, %v1328
      %v3313 = vadd.f32 %v1718, %v1332
      %v3314 = vadd.f32 %v1720, %v1334
      %v3315 = vadd.f32 %v1724, %v1338
      %v3316 = vadd.f32 %v1726, %v1340
      %v3317 = vadd.f32 %v1730, %v1344
      %v3318 = vadd.f32 %v1732, %v1346
      %v3319 = vadd.f32 %v1736, %v1350
      %v3320 = vadd.f32 %v1738, %v1352
      %v3321 = vadd.f32 %v1742, %v1356
      %v3322 = vadd.f32 %v1744, %v1358
      %v3323 = vadd.f32 %v3291, %v2019
      %v3324 = vadd.f32 %v3292, %v2021
      %v3325 = vadd.f32 %v3293, %v2025
      %v3326 = vadd.f32 %v3294, %v2027
      %v3327 = vadd.f32 %v3295, %v2031
      %v3328 = vadd.f32 %v3296, %v2033
      %v3329 = vadd.f32 %v3297, %v2037
      %v3330 = vadd.f32 %v3298, %v2039
      %v3331 = vadd.f32 %v3299, %v2043
      %v3332 = vadd.f32 %v3300, %v2045
      %v3333 = vadd.f32 %v3301, %v2049
      %v3334 = vadd.f32 %v3302, %v2051
      %v3335 = vadd.f32 %v3303, %v2055
      %v3336 = vadd.f32 %v3304, %v2057
      %v3337 = vadd.f32 %v3305, %v2061
      %v3338 = vadd.f32 %v3306, %v2063
      %v3339 = vadd.f32 %v3307, %v2067
      %v3340 = vadd.f32 %v3308, %v2069
      %v3341 = vadd.f32 %v3309, %v2073
      %v3342 = vadd.f32 %v3310, %v2075
      %v3343 = vadd.f32 %v3311, %v2079
      %v3344 = vadd.f32 %v3312, %v2081
      %v3345 = vadd.f32 %v3313, %v2085
      %v3346 = vadd.f32 %v3314, %v2087
      %v3347 = vadd.f32 %v3315, %v2091
      %v3348 = vadd.f32 %v3316, %v2093
      %v3349 = vadd.f32 %v3317, %v2097
      %v3350 = vadd.f32 %v3318, %v2099
      %v3351 = vadd.f32 %v3319, %v2103
      %v3352 = vadd.f32 %v3320, %v2105
      %v3353 = vadd.f32 %v3321, %v2109
      %v3354 = vadd.f32 %v3322, %v2111
      %v3355 = vld [vmem:[%s20] sm:$0x3]
      %v3357 = vlaneseq
      %v3358 = vshrl.u32 %v3357, 7
      %v3359 = vsub.s32 0, %v3358
      %v3360 = vrot.slane %v3355, %v3359
      %v3361 = vlaneseq
      %v3362 = vshrl.u32 %v3361, 7
      %v3363 = vsub.s32 1, %v3362
      %v3364 = vrot.slane %v3355, %v3363
      %v3367 = vadd.f32 %v3323, %v3360
      %v3368 = vadd.f32 %v3324, %v3364
      %v3369 = vadd.f32 %v3325, %v3360
      %v3370 = vadd.f32 %v3326, %v3364
      %v3371 = vadd.f32 %v3327, %v3360
      %v3372 = vadd.f32 %v3328, %v3364
      %v3373 = vadd.f32 %v3329, %v3360
      %v3374 = vadd.f32 %v3330, %v3364
      %v3375 = vadd.f32 %v3331, %v3360
      %v3376 = vadd.f32 %v3332, %v3364
      %v3377 = vadd.f32 %v3333, %v3360
      %v3378 = vadd.f32 %v3334, %v3364
      %v3379 = vadd.f32 %v3335, %v3360
      %v3380 = vadd.f32 %v3336, %v3364
      %v3381 = vadd.f32 %v3337, %v3360
      %v3382 = vadd.f32 %v3338, %v3364
      %v3383 = vadd.f32 %v3339, %v3360
      %v3384 = vadd.f32 %v3340, %v3364
      %v3385 = vadd.f32 %v3341, %v3360
      %v3386 = vadd.f32 %v3342, %v3364
      %v3387 = vadd.f32 %v3343, %v3360
      %v3388 = vadd.f32 %v3344, %v3364
      %v3389 = vadd.f32 %v3345, %v3360
      %v3390 = vadd.f32 %v3346, %v3364
      %v3391 = vadd.f32 %v3347, %v3360
      %v3392 = vadd.f32 %v3348, %v3364
      %v3393 = vadd.f32 %v3349, %v3360
      %v3394 = vadd.f32 %v3350, %v3364
      %v3395 = vadd.f32 %v3351, %v3360
      %v3396 = vadd.f32 %v3352, %v3364
      %v3397 = vadd.f32 %v3353, %v3360
      %v3398 = vadd.f32 %v3354, %v3364
      %v3399 = vmax.f32 %v3367, 0.0
      %v3400 = vmax.f32 %v3368, 0.0
      %v3401 = vmax.f32 %v3369, 0.0
      %v3402 = vmax.f32 %v3370, 0.0
      %v3403 = vmax.f32 %v3371, 0.0
      %v3404 = vmax.f32 %v3372, 0.0
      %v3405 = vmax.f32 %v3373, 0.0
      %v3406 = vmax.f32 %v3374, 0.0
      %v3407 = vmax.f32 %v3375, 0.0
      %v3408 = vmax.f32 %v3376, 0.0
      %v3409 = vmax.f32 %v3377, 0.0
      %v3410 = vmax.f32 %v3378, 0.0
      %v3411 = vmax.f32 %v3379, 0.0
      %v3412 = vmax.f32 %v3380, 0.0
      %v3413 = vmax.f32 %v3381, 0.0
      %v3414 = vmax.f32 %v3382, 0.0
      %v3415 = vmax.f32 %v3383, 0.0
      %v3416 = vmax.f32 %v3384, 0.0
      %v3417 = vmax.f32 %v3385, 0.0
      %v3418 = vmax.f32 %v3386, 0.0
      %v3419 = vmax.f32 %v3387, 0.0
      %v3420 = vmax.f32 %v3388, 0.0
      %v3421 = vmax.f32 %v3389, 0.0
      %v3422 = vmax.f32 %v3390, 0.0
      %v3423 = vmax.f32 %v3391, 0.0
      %v3424 = vmax.f32 %v3392, 0.0
      %v3425 = vmax.f32 %v3393, 0.0
      %v3426 = vmax.f32 %v3394, 0.0
      %v3427 = vmax.f32 %v3395, 0.0
      %v3428 = vmax.f32 %v3396, 0.0
      %v3429 = vmax.f32 %v3397, 0.0
      %v3430 = vmax.f32 %v3398, 0.0
      %v3431 = vld [vmem:[%s11] sm:$0xff]
      %v3432 = vld [vmem:[%s11 + $0x8] sm:$0xff]
      %v3433 = vld [vmem:[%s11 + $0x10] sm:$0xff]
      %v3434 = vld [vmem:[%s11 + $0x18] sm:$0xff]
      %v3435 = vld [vmem:[%s11 + $0x20] sm:$0xff]
      %v3436 = vld [vmem:[%s11 + $0x28] sm:$0xff]
      %v3437 = vld [vmem:[%s11 + $0x30] sm:$0xff]
      %v3438 = vld [vmem:[%s11 + $0x38] sm:$0xff]
      %v3439 = vld [vmem:[%s11 + $0x40] sm:$0xff]
      %v3440 = vld [vmem:[%s11 + $0x48] sm:$0xff]
      %v3441 = vld [vmem:[%s11 + $0x50] sm:$0xff]
      %v3442 = vld [vmem:[%s11 + $0x58] sm:$0xff]
      %v3443 = vld [vmem:[%s11 + $0x60] sm:$0xff]
      %v3444 = vld [vmem:[%s11 + $0x68] sm:$0xff]
      %v3445 = vld [vmem:[%s11 + $0x70] sm:$0xff]
      %v3446 = vld [vmem:[%s11 + $0x78] sm:$0xff]
      %v3447 = vld [vmem:[%s11 + $0x80] sm:$0xff]
      %v3448 = vld [vmem:[%s11 + $0x88] sm:$0xff]
      %v3449 = vld [vmem:[%s11 + $0x90] sm:$0xff]
      %v3450 = vld [vmem:[%s11 + $0x98] sm:$0xff]
      %v3451 = vld [vmem:[%s11 + $0xa0] sm:$0xff]
      %v3452 = vld [vmem:[%s11 + $0xa8] sm:$0xff]
      %v3453 = vld [vmem:[%s11 + $0xb0] sm:$0xff]
      %v3454 = vld [vmem:[%s11 + $0xb8] sm:$0xff]
      %v3455 = vld [vmem:[%s11 + $0xc0] sm:$0xff]
      %v3456 = vld [vmem:[%s11 + $0xc8] sm:$0xff]
      %v3457 = vld [vmem:[%s11 + $0xd0] sm:$0xff]
      %v3458 = vld [vmem:[%s11 + $0xd8] sm:$0xff]
      %v3459 = vld [vmem:[%s11 + $0xe0] sm:$0xff]
      %v3460 = vld [vmem:[%s11 + $0xe8] sm:$0xff]
      %v3461 = vld [vmem:[%s11 + $0xf0] sm:$0xff]
      %v3462 = vld [vmem:[%s11 + $0xf8] sm:$0xff]
      %v3463 = vld [vmem:[%s22] sm:$0x1]
      %v3465 = vlaneseq
      %v3466 = vshrl.u32 %v3465, 7
      %v3467 = vsub.s32 0, %v3466
      %v3468 = vrot.slane %v3463, %v3467
      %3470 = vmatprep.subr.mxu0 0.0
      %3471 = vmatpush1.msra.mxu0 %v3431
      %3472 = vmatprep.subr.mxu0 0.0
      %3473 = vmatpush1.msra.mxu0 %v3432
      %3474 = vmatprep.subr.mxu0 0.0
      %3475 = vmatpush1.msra.mxu0 %v3433
      %3476 = vmatprep.subr.mxu0 0.0
      %3477 = vmatpush1.msra.mxu0 %v3434
      %3478 = vmatprep.subr.mxu0 0.0
      %3479 = vmatpush1.msra.mxu0 %v3435
      %3480 = vmatprep.subr.mxu0 0.0
      %3481 = vmatpush1.msra.mxu0 %v3436
      %3482 = vmatprep.subr.mxu0 0.0
      %3483 = vmatpush1.msra.mxu0 %v3437
      %3484 = vmatprep.subr.mxu0 0.0
      %3485 = vmatpush1.msra.mxu0 %v3438
      %3486 = vmatprep.subr.mxu0 0.0
      %3487 = vmatpush1.msra.mxu0 %v3439
      %3488 = vmatprep.subr.mxu0 0.0
      %3489 = vmatpush1.msra.mxu0 %v3440
      %3490 = vmatprep.subr.mxu0 0.0
      %3491 = vmatpush1.msra.mxu0 %v3441
      %3492 = vmatprep.subr.mxu0 0.0
      %3493 = vmatpush1.msra.mxu0 %v3442
      %3494 = vmatprep.subr.mxu0 0.0
      %3495 = vmatpush1.msra.mxu0 %v3443
      %3496 = vmatprep.subr.mxu0 0.0
      %3497 = vmatpush1.msra.mxu0 %v3444
      %3498 = vmatprep.subr.mxu0 0.0
      %3499 = vmatpush1.msra.mxu0 %v3445
      %3500 = vmatprep.subr.mxu0 0.0
      %3501 = vmatpush1.msra.mxu0 %v3446
      %3502 = vmatprep.subr.mxu0 0.0
      %3503 = vmatpush1.msra.mxu0 %v3447
      %3504 = vmatprep.subr.mxu0 0.0
      %3505 = vmatpush1.msra.mxu0 %v3448
      %3506 = vmatprep.subr.mxu0 0.0
      %3507 = vmatpush1.msra.mxu0 %v3449
      %3508 = vmatprep.subr.mxu0 0.0
      %3509 = vmatpush1.msra.mxu0 %v3450
      %3510 = vmatprep.subr.mxu0 0.0
      %3511 = vmatpush1.msra.mxu0 %v3451
      %3512 = vmatprep.subr.mxu0 0.0
      %3513 = vmatpush1.msra.mxu0 %v3452
      %3514 = vmatprep.subr.mxu0 0.0
      %3515 = vmatpush1.msra.mxu0 %v3453
      %3516 = vmatprep.subr.mxu0 0.0
      %3517 = vmatpush1.msra.mxu0 %v3454
      %3518 = vmatprep.subr.mxu0 0.0
      %3519 = vmatpush1.msra.mxu0 %v3455
      %3520 = vmatprep.subr.mxu0 0.0
      %3521 = vmatpush1.msra.mxu0 %v3456
      %3522 = vmatprep.subr.mxu0 0.0
      %3523 = vmatpush1.msra.mxu0 %v3457
      %3524 = vmatprep.subr.mxu0 0.0
      %3525 = vmatpush1.msra.mxu0 %v3458
      %3526 = vmatprep.subr.mxu0 0.0
      %3527 = vmatpush1.msra.mxu0 %v3459
      %3528 = vmatprep.subr.mxu0 0.0
      %3529 = vmatpush1.msra.mxu0 %v3460
      %3530 = vmatprep.subr.mxu0 0.0
      %3531 = vmatpush1.msra.mxu0 %v3461
      %3532 = vmatprep.subr.mxu0 0.0
      %3533 = vmatpush1.msra.mxu0 %v3462
      %3534 = vmatprep.mubr.f32.mxu0 %v3400
      %3535 = vmatmul.mubr.f32.gmra.mrb[0].mxu0 %v3399
      %v3536 = vpop.f32.mrb[0].mxu0
      %v3537 = vadd.f32 %v3468, %v3536
      %v3538 = vpop.f32.mrb[0].mxu0
      %3539 = vmatprep.mubr.f32.mxu0 %v3402
      %3540 = vmatmul.mubr.f32.gmra.mrb[0].mxu0 %v3401
      %v3541 = vpop.f32.mrb[0].mxu0
      %v3542 = vadd.f32 %v3468, %v3541
      %v3543 = vpop.f32.mrb[0].mxu0
      %3544 = vmatprep.mubr.f32.mxu0 %v3404
      %3545 = vmatmul.mubr.f32.gmra.mrb[0].mxu0 %v3403
      %v3546 = vpop.f32.mrb[0].mxu0
      %v3547 = vadd.f32 %v3468, %v3546
      %v3548 = vpop.f32.mrb[0].mxu0
      %3549 = vmatprep.mubr.f32.mxu0 %v3406
      %3550 = vmatmul.mubr.f32.gmra.mrb[0].mxu0 %v3405
      %v3551 = vpop.f32.mrb[0].mxu0
      %v3552 = vadd.f32 %v3468, %v3551
      %v3553 = vpop.f32.mrb[0].mxu0
      %3554 = vmatprep.mubr.f32.mxu0 %v3408
      %3555 = vmatmul.mubr.f32.gmra.mrb[0].mxu0 %v3407
      %v3556 = vpop.f32.mrb[0].mxu0
      %v3557 = vadd.f32 %v3468, %v3556
      %v3558 = vpop.f32.mrb[0].mxu0
      %3559 = vmatprep.mubr.f32.mxu0 %v3410
      %3560 = vmatmul.mubr.f32.gmra.mrb[0].mxu0 %v3409
      %v3561 = vpop.f32.mrb[0].mxu0
      %v3562 = vadd.f32 %v3468, %v3561
      %v3563 = vpop.f32.mrb[0].mxu0
      %3564 = vmatprep.mubr.f32.mxu0 %v3412
      %3565 = vmatmul.mubr.f32.gmra.mrb[0].mxu0 %v3411
      %v3566 = vpop.f32.mrb[0].mxu0
      %v3567 = vadd.f32 %v3468, %v3566
      %v3568 = vpop.f32.mrb[0].mxu0
      %3569 = vmatprep.mubr.f32.mxu0 %v3414
      %3570 = vmatmul.mubr.f32.gmra.mrb[0].mxu0 %v3413
      %v3571 = vpop.f32.mrb[0].mxu0
      %v3572 = vadd.f32 %v3468, %v3571
      %v3573 = vpop.f32.mrb[0].mxu0
      %3574 = vmatprep.mubr.f32.mxu0 %v3416
      %3575 = vmatmul.mubr.f32.gmra.mrb[0].mxu0 %v3415
      %v3576 = vpop.f32.mrb[0].mxu0
      %v3577 = vadd.f32 %v3468, %v3576
      %v3578 = vpop.f32.mrb[0].mxu0
      %3579 = vmatprep.mubr.f32.mxu0 %v3418
      %3580 = vmatmul.mubr.f32.gmra.mrb[0].mxu0 %v3417
      %v3581 = vpop.f32.mrb[0].mxu0
      %v3582 = vadd.f32 %v3468, %v3581
      %v3583 = vpop.f32.mrb[0].mxu0
      %3584 = vmatprep.mubr.f32.mxu0 %v3420
      %3585 = vmatmul.mubr.f32.gmra.mrb[0].mxu0 %v3419
      %v3586 = vpop.f32.mrb[0].mxu0
      %v3587 = vadd.f32 %v3468, %v3586
      %v3588 = vpop.f32.mrb[0].mxu0
      %3589 = vmatprep.mubr.f32.mxu0 %v3422
      %3590 = vmatmul.mubr.f32.gmra.mrb[0].mxu0 %v3421
      %v3591 = vpop.f32.mrb[0].mxu0
      %v3592 = vadd.f32 %v3468, %v3591
      %v3593 = vpop.f32.mrb[0].mxu0
      %3594 = vmatprep.mubr.f32.mxu0 %v3424
      %3595 = vmatmul.mubr.f32.gmra.mrb[0].mxu0 %v3423
      %v3596 = vpop.f32.mrb[0].mxu0
      %v3597 = vadd.f32 %v3468, %v3596
      %v3598 = vpop.f32.mrb[0].mxu0
      %3599 = vmatprep.mubr.f32.mxu0 %v3426
      %3600 = vmatmul.mubr.f32.gmra.mrb[0].mxu0 %v3425
      %v3601 = vpop.f32.mrb[0].mxu0
      %v3602 = vadd.f32 %v3468, %v3601
      %v3603 = vpop.f32.mrb[0].mxu0
      %3604 = vmatprep.mubr.f32.mxu0 %v3428
      %3605 = vmatmul.mubr.f32.gmra.mrb[0].mxu0 %v3427
      %v3606 = vpop.f32.mrb[0].mxu0
      %v3607 = vadd.f32 %v3468, %v3606
      %v3608 = vpop.f32.mrb[0].mxu0
      %3609 = vmatprep.mubr.f32.mxu0 %v3430
      %3610 = vmatmul.mubr.f32.gmra.mrb[0].mxu0 %v3429
      %v3611 = vpop.f32.mrb[0].mxu0
      %v3612 = vadd.f32 %v3468, %v3611
      %v3613 = vpop.f32.mrb[0].mxu0
      %3614 = vdwg.mxu0
      %v3615 = vmul.f32 %v3537, 0.5
      %v3616 = vmul.f32 %v3542, 0.5
      %v3617 = vmul.f32 %v3547, 0.5
      %v3618 = vmul.f32 %v3552, 0.5
      %v3619 = vmul.f32 %v3557, 0.5
      %v3620 = vmul.f32 %v3562, 0.5
      %v3621 = vmul.f32 %v3567, 0.5
      %v3622 = vmul.f32 %v3572, 0.5
      %v3623 = vmul.f32 %v3577, 0.5
      %v3624 = vmul.f32 %v3582, 0.5
      %v3625 = vmul.f32 %v3587, 0.5
      %v3626 = vmul.f32 %v3592, 0.5
      %v3627 = vmul.f32 %v3597, 0.5
      %v3628 = vmul.f32 %v3602, 0.5
      %v3629 = vmul.f32 %v3607, 0.5
      %v3630 = vmul.f32 %v3612, 0.5
      %v3631 = vmul.f32 %v3615, 1.442695
      %v3632 = vpow.pop %v3631
      %v3633 = vmul.f32 %v3616, 1.442695
      %v3634 = vpow.pop %v3633
      %v3635 = vmul.f32 %v3617, 1.442695
      %v3636 = vpow.pop %v3635
      %v3637 = vmul.f32 %v3618, 1.442695
      %v3638 = vpow.pop %v3637
      %v3639 = vmul.f32 %v3619, 1.442695
      %v3640 = vpow.pop %v3639
      %v3641 = vmul.f32 %v3620, 1.442695
      %v3642 = vpow.pop %v3641
      %v3643 = vmul.f32 %v3621, 1.442695
      %v3644 = vpow.pop %v3643
      %v3645 = vmul.f32 %v3622, 1.442695
      %v3646 = vpow.pop %v3645
      %v3647 = vmul.f32 %v3623, 1.442695
      %v3648 = vpow.pop %v3647
      %v3649 = vmul.f32 %v3624, 1.442695
      %v3650 = vpow.pop %v3649
      %v3651 = vmul.f32 %v3625, 1.442695
      %v3652 = vpow.pop %v3651
      %v3653 = vmul.f32 %v3626, 1.442695
      %v3654 = vpow.pop %v3653
      %v3655 = vmul.f32 %v3627, 1.442695
      %v3656 = vpow.pop %v3655
      %v3657 = vmul.f32 %v3628, 1.442695
      %v3658 = vpow.pop %v3657
      %v3659 = vmul.f32 %v3629, 1.442695
      %v3660 = vpow.pop %v3659
      %v3661 = vmul.f32 %v3630, 1.442695
      %v3662 = vpow.pop %v3661
      %3679 = vrot.lane.b32.xlu0 %v3632, 108
      %v3680 = vpop.permute.xlu0 %3679
      %3681 = vrot.lane.b32.xlu0 %v3634, 108
      %v3682 = vpop.permute.xlu0 %3681
      %3683 = vrot.lane.b32.xlu0 %v3636, 108
      %v3684 = vpop.permute.xlu0 %3683
      %3685 = vrot.lane.b32.xlu0 %v3638, 108
      %v3686 = vpop.permute.xlu0 %3685
      %3687 = vrot.lane.b32.xlu0 %v3640, 108
      %v3688 = vpop.permute.xlu0 %3687
      %3689 = vrot.lane.b32.xlu0 %v3642, 108
      %v3690 = vpop.permute.xlu0 %3689
      %3691 = vrot.lane.b32.xlu0 %v3644, 108
      %v3692 = vpop.permute.xlu0 %3691
      %3693 = vrot.lane.b32.xlu0 %v3646, 108
      %v3694 = vpop.permute.xlu0 %3693
      %3695 = vrot.lane.b32.xlu0 %v3648, 108
      %v3696 = vpop.permute.xlu0 %3695
      %3697 = vrot.lane.b32.xlu0 %v3650, 108
      %v3698 = vpop.permute.xlu0 %3697
      %3699 = vrot.lane.b32.xlu0 %v3652, 108
      %v3700 = vpop.permute.xlu0 %3699
      %3701 = vrot.lane.b32.xlu0 %v3654, 108
      %v3702 = vpop.permute.xlu0 %3701
      %3703 = vrot.lane.b32.xlu0 %v3656, 108
      %v3704 = vpop.permute.xlu0 %3703
      %3705 = vrot.lane.b32.xlu0 %v3658, 108
      %v3706 = vpop.permute.xlu0 %3705
      %3707 = vrot.lane.b32.xlu0 %v3660, 108
      %v3708 = vpop.permute.xlu0 %3707
      %3709 = vrot.lane.b32.xlu0 %v3662, 108
      %v3710 = vpop.permute.xlu0 %3709
      %v3727 = vmul.f32 %v965, %v3680
      %v3728 = vmul.f32 %v966, %v3682
      %v3729 = vmul.f32 %v967, %v3684
      %v3730 = vmul.f32 %v968, %v3686
      %v3731 = vmul.f32 %v969, %v3688
      %v3732 = vmul.f32 %v970, %v3690
      %v3733 = vmul.f32 %v971, %v3692
      %v3734 = vmul.f32 %v972, %v3694
      %v3735 = vmul.f32 %v973, %v3696
      %v3736 = vmul.f32 %v974, %v3698
      %v3737 = vmul.f32 %v975, %v3700
      %v3738 = vmul.f32 %v976, %v3702
      %v3739 = vmul.f32 %v977, %v3704
      %v3740 = vmul.f32 %v978, %v3706
      %v3741 = vmul.f32 %v979, %v3708
      %v3742 = vmul.f32 %v980, %v3710
      %v3743 = vadd.f32 %v3537, %v3727
      %v3744 = vadd.f32 %v3542, %v3728
      %v3745 = vadd.f32 %v3547, %v3729
      %v3746 = vadd.f32 %v3552, %v3730
      %v3747 = vadd.f32 %v3557, %v3731
      %v3748 = vadd.f32 %v3562, %v3732
      %v3749 = vadd.f32 %v3567, %v3733
      %v3750 = vadd.f32 %v3572, %v3734
      %v3751 = vadd.f32 %v3577, %v3735
      %v3752 = vadd.f32 %v3582, %v3736
      %v3753 = vadd.f32 %v3587, %v3737
      %v3754 = vadd.f32 %v3592, %v3738
      %v3755 = vadd.f32 %v3597, %v3739
      %v3756 = vadd.f32 %v3602, %v3740
      %v3757 = vadd.f32 %v3607, %v3741
      %v3758 = vadd.f32 %v3612, %v3742
      %v3759 = vld [vmem:[%s12] sm:$0xff]
      %v3760 = vld [vmem:[%s12 + $0x8] sm:$0xff]
      %v3761 = vld [vmem:[%s12 + $0x10] sm:$0xff]
      %v3762 = vld [vmem:[%s12 + $0x18] sm:$0xff]
      %v3763 = vld [vmem:[%s12 + $0x20] sm:$0xff]
      %v3764 = vld [vmem:[%s12 + $0x28] sm:$0xff]
      %v3765 = vld [vmem:[%s12 + $0x30] sm:$0xf]
      %v3766 = vld [vmem:[%s12 + $0x38] sm:$0xf]
      %v3767 = vld [vmem:[%s12 + $0x40] sm:$0xf]
      %vm3768 = vcmask 162816
      %v3770 = vsel %vm3768, %v3743, 0
      %v3773 = vsel %vm3768, %v3744, 0
      %v3776 = vsel %vm3768, %v3745, 0
      %v3779 = vsel %vm3768, %v3746, 0
      %v3782 = vsel %vm3768, %v3747, 0
      %v3785 = vsel %vm3768, %v3748, 0
      %v3788 = vsel %vm3768, %v3749, 0
      %v3791 = vsel %vm3768, %v3750, 0
      %v3794 = vsel %vm3768, %v3751, 0
      %v3797 = vsel %vm3768, %v3752, 0
      %v3800 = vsel %vm3768, %v3753, 0
      %v3803 = vsel %vm3768, %v3754, 0
      %v3806 = vsel %vm3768, %v3755, 0
      %v3809 = vsel %vm3768, %v3756, 0
      %v3812 = vsel %vm3768, %v3757, 0
      %v3815 = vsel %vm3768, %v3758, 0
      %v3818 = vsel %vm1945, %v3765, 0
      %v3821 = vsel %vm1945, %v3766, 0
      %v3824 = vsel %vm1945, %v3767, 0
      %3826 = vmatprep.subr.mxu0 %v3760
      %3827 = vmatpush1.msra.mxu0 %v3759
      %3828 = vmatprep.subr.mxu0 %v3763
      %3829 = vmatpush1.msra.mxu0 %v3762
      %3830 = vmatprep.subr.mxu0 %v3821
      %3831 = vmatpush1.msra.mxu0 %v3818
      %3832 = vmatprep.subr.mxu0 0.0
      %3833 = vmatpush1.msra.mxu0 0.0
      %3834 = vmatprep.subr.mxu0 0.0
      %3835 = vmatpush1.msra.mxu0 0.0
      %3836 = vmatprep.subr.mxu0 0.0
      %3837 = vmatpush1.msra.mxu0 0.0
      %3838 = vmatprep.subr.mxu0 0.0
      %3839 = vmatpush1.msra.mxu0 0.0
      %3840 = vmatprep.subr.mxu0 0.0
      %3841 = vmatpush1.msra.mxu0 0.0
      %3842 = vmatprep.subr.mxu0 0.0
      %3843 = vmatpush1.msra.mxu0 0.0
      %3844 = vmatprep.subr.mxu0 0.0
      %3845 = vmatpush1.msra.mxu0 0.0
      %3846 = vmatprep.subr.mxu0 0.0
      %3847 = vmatpush1.msra.mxu0 0.0
      %3848 = vmatprep.subr.mxu0 0.0
      %3849 = vmatpush1.msra.mxu0 0.0
      %3850 = vmatprep.subr.mxu0 0.0
      %3851 = vmatpush1.msra.mxu0 0.0
      %3852 = vmatprep.subr.mxu0 0.0
      %3853 = vmatpush1.msra.mxu0 0.0
      %3854 = vmatprep.subr.mxu0 0.0
      %3855 = vmatpush1.msra.mxu0 0.0
      %3856 = vmatprep.subr.mxu0 0.0
      %3857 = vmatpush1.msra.mxu0 0.0
      %3858 = vmatprep.subr.mxu0 0.0
      %3859 = vmatpush1.msra.mxu0 0.0
      %3860 = vmatprep.subr.mxu0 0.0
      %3861 = vmatpush1.msra.mxu0 0.0
      %3862 = vmatprep.subr.mxu0 0.0
      %3863 = vmatpush1.msra.mxu0 0.0
      %3864 = vmatprep.subr.mxu0 0.0
      %3865 = vmatpush1.msra.mxu0 0.0
      %3866 = vmatprep.subr.mxu0 0.0
      %3867 = vmatpush1.msra.mxu0 0.0
      %3868 = vmatprep.subr.mxu0 0.0
      %3869 = vmatpush1.msra.mxu0 0.0
      %3870 = vmatprep.subr.mxu0 0.0
      %3871 = vmatpush1.msra.mxu0 0.0
      %3872 = vmatprep.subr.mxu0 0.0
      %3873 = vmatpush1.msra.mxu0 0.0
      %3874 = vmatprep.subr.mxu0 0.0
      %3875 = vmatpush1.msra.mxu0 0.0
      %3876 = vmatprep.subr.mxu0 0.0
      %3877 = vmatpush1.msra.mxu0 0.0
      %3878 = vmatprep.subr.mxu0 0.0
      %3879 = vmatpush1.msra.mxu0 0.0
      %3880 = vmatprep.subr.mxu0 0.0
      %3881 = vmatpush1.msra.mxu0 0.0
      %3882 = vmatprep.subr.mxu0 0.0
      %3883 = vmatpush1.msra.mxu0 0.0
      %3884 = vmatprep.subr.mxu0 0.0
      %3885 = vmatpush1.msra.mxu0 0.0
      %3886 = vmatprep.subr.mxu0 0.0
      %3887 = vmatpush1.msra.mxu0 0.0
      %3888 = vmatprep.subr.mxu0 0.0
      %3889 = vmatpush1.msra.mxu0 0.0
      %3890 = vmatprep.mubr.f32.mxu0 0.0
      %3891 = vmatmul.mubr.f32.gmra.mrb[0].mxu0 %v3770
      %v3892 = vpop.f32.mrb[0].mxu0
      %v3893 = vadd.f32 0.0, %v3892
      %v3894 = vpop.f32.mrb[0].mxu0
      %v3895 = vadd.f32 0.0, %v3894
      %3896 = vmatprep.mubr.f32.mxu0 0.0
      %3897 = vmatmul.mubr.f32.gmra.mrb[0].mxu0 %v3773
      %v3898 = vpop.f32.mrb[0].mxu0
      %v3899 = vadd.f32 0.0, %v3898
      %v3900 = vpop.f32.mrb[0].mxu0
      %v3901 = vadd.f32 0.0, %v3900
      %3902 = vmatprep.mubr.f32.mxu0 0.0
      %3903 = vmatmul.mubr.f32.gmra.mrb[0].mxu0 %v3776
      %v3904 = vpop.f32.mrb[0].mxu0
      %v3905 = vadd.f32 0.0, %v3904
      %v3906 = vpop.f32.mrb[0].mxu0
      %v3907 = vadd.f32 0.0, %v3906
      %3908 = vmatprep.mubr.f32.mxu0 0.0
      %3909 = vmatmul.mubr.f32.gmra.mrb[0].mxu0 %v3779
      %v3910 = vpop.f32.mrb[0].mxu0
      %v3911 = vadd.f32 0.0, %v3910
      %v3912 = vpop.f32.mrb[0].mxu0
      %v3913 = vadd.f32 0.0, %v3912
      %3914 = vmatprep.mubr.f32.mxu0 0.0
      %3915 = vmatmul.mubr.f32.gmra.mrb[0].mxu0 %v3782
      %v3916 = vpop.f32.mrb[0].mxu0
      %v3917 = vadd.f32 0.0, %v3916
      %v3918 = vpop.f32.mrb[0].mxu0
      %v3919 = vadd.f32 0.0, %v3918
      %3920 = vmatprep.mubr.f32.mxu0 0.0
      %3921 = vmatmul.mubr.f32.gmra.mrb[0].mxu0 %v3785
      %v3922 = vpop.f32.mrb[0].mxu0
      %v3923 = vadd.f32 0.0, %v3922
      %v3924 = vpop.f32.mrb[0].mxu0
      %v3925 = vadd.f32 0.0, %v3924
      %3926 = vmatprep.mubr.f32.mxu0 0.0
      %3927 = vmatmul.mubr.f32.gmra.mrb[0].mxu0 %v3788
      %v3928 = vpop.f32.mrb[0].mxu0
      %v3929 = vadd.f32 0.0, %v3928
      %v3930 = vpop.f32.mrb[0].mxu0
      %v3931 = vadd.f32 0.0, %v3930
      %3932 = vmatprep.mubr.f32.mxu0 0.0
      %3933 = vmatmul.mubr.f32.gmra.mrb[0].mxu0 %v3791
      %v3934 = vpop.f32.mrb[0].mxu0
      %v3935 = vadd.f32 0.0, %v3934
      %v3936 = vpop.f32.mrb[0].mxu0
      %v3937 = vadd.f32 0.0, %v3936
      %3938 = vmatprep.mubr.f32.mxu0 0.0
      %3939 = vmatmul.mubr.f32.gmra.mrb[0].mxu0 %v3794
      %v3940 = vpop.f32.mrb[0].mxu0
      %v3941 = vadd.f32 0.0, %v3940
      %v3942 = vpop.f32.mrb[0].mxu0
      %v3943 = vadd.f32 0.0, %v3942
      %3944 = vmatprep.mubr.f32.mxu0 0.0
      %3945 = vmatmul.mubr.f32.gmra.mrb[0].mxu0 %v3797
      %v3946 = vpop.f32.mrb[0].mxu0
      %v3947 = vadd.f32 0.0, %v3946
      %v3948 = vpop.f32.mrb[0].mxu0
      %v3949 = vadd.f32 0.0, %v3948
      %3950 = vmatprep.mubr.f32.mxu0 0.0
      %3951 = vmatmul.mubr.f32.gmra.mrb[0].mxu0 %v3800
      %v3952 = vpop.f32.mrb[0].mxu0
      %v3953 = vadd.f32 0.0, %v3952
      %v3954 = vpop.f32.mrb[0].mxu0
      %v3955 = vadd.f32 0.0, %v3954
      %3956 = vmatprep.mubr.f32.mxu0 0.0
      %3957 = vmatmul.mubr.f32.gmra.mrb[0].mxu0 %v3803
      %v3958 = vpop.f32.mrb[0].mxu0
      %v3959 = vadd.f32 0.0, %v3958
      %v3960 = vpop.f32.mrb[0].mxu0
      %v3961 = vadd.f32 0.0, %v3960
      %3962 = vmatprep.mubr.f32.mxu0 0.0
      %3963 = vmatmul.mubr.f32.gmra.mrb[0].mxu0 %v3806
      %v3964 = vpop.f32.mrb[0].mxu0
      %v3965 = vadd.f32 0.0, %v3964
      %v3966 = vpop.f32.mrb[0].mxu0
      %v3967 = vadd.f32 0.0, %v3966
      %3968 = vmatprep.mubr.f32.mxu0 0.0
      %3969 = vmatmul.mubr.f32.gmra.mrb[0].mxu0 %v3809
      %v3970 = vpop.f32.mrb[0].mxu0
      %v3971 = vadd.f32 0.0, %v3970
      %v3972 = vpop.f32.mrb[0].mxu0
      %v3973 = vadd.f32 0.0, %v3972
      %3974 = vmatprep.mubr.f32.mxu0 0.0
      %3975 = vmatmul.mubr.f32.gmra.mrb[0].mxu0 %v3812
      %v3976 = vpop.f32.mrb[0].mxu0
      %v3977 = vadd.f32 0.0, %v3976
      %v3978 = vpop.f32.mrb[0].mxu0
      %v3979 = vadd.f32 0.0, %v3978
      %3980 = vmatprep.mubr.f32.mxu0 0.0
      %3981 = vmatmul.mubr.f32.gmra.mrb[0].mxu0 %v3815
      %v3982 = vpop.f32.mrb[0].mxu0
      %v3983 = vadd.f32 0.0, %v3982
      %v3984 = vpop.f32.mrb[0].mxu0
      %v3985 = vadd.f32 0.0, %v3984
      %3986 = vdwg.mxu0
      %3987 = vmatprep.subr.mxu0 0.0
      %3988 = vmatpush1.msra.mxu0 %v3761
      %3989 = vmatprep.subr.mxu0 0.0
      %3990 = vmatpush1.msra.mxu0 %v3764
      %3991 = vmatprep.subr.mxu0 0.0
      %3992 = vmatpush1.msra.mxu0 %v3824
      %3993 = vmatprep.subr.mxu0 0.0
      %3994 = vmatpush1.msra.mxu0 0.0
      %3995 = vmatprep.subr.mxu0 0.0
      %3996 = vmatpush1.msra.mxu0 0.0
      %3997 = vmatprep.subr.mxu0 0.0
      %3998 = vmatpush1.msra.mxu0 0.0
      %3999 = vmatprep.subr.mxu0 0.0
      %4000 = vmatpush1.msra.mxu0 0.0
      %4001 = vmatprep.subr.mxu0 0.0
      %4002 = vmatpush1.msra.mxu0 0.0
      %4003 = vmatprep.subr.mxu0 0.0
      %4004 = vmatpush1.msra.mxu0 0.0
      %4005 = vmatprep.subr.mxu0 0.0
      %4006 = vmatpush1.msra.mxu0 0.0
      %4007 = vmatprep.subr.mxu0 0.0
      %4008 = vmatpush1.msra.mxu0 0.0
      %4009 = vmatprep.subr.mxu0 0.0
      %4010 = vmatpush1.msra.mxu0 0.0
      %4011 = vmatprep.subr.mxu0 0.0
      %4012 = vmatpush1.msra.mxu0 0.0
      %4013 = vmatprep.subr.mxu0 0.0
      %4014 = vmatpush1.msra.mxu0 0.0
      %4015 = vmatprep.subr.mxu0 0.0
      %4016 = vmatpush1.msra.mxu0 0.0
      %4017 = vmatprep.subr.mxu0 0.0
      %4018 = vmatpush1.msra.mxu0 0.0
      %4019 = vmatprep.subr.mxu0 0.0
      %4020 = vmatpush1.msra.mxu0 0.0
      %4021 = vmatprep.subr.mxu0 0.0
      %4022 = vmatpush1.msra.mxu0 0.0
      %4023 = vmatprep.subr.mxu0 0.0
      %4024 = vmatpush1.msra.mxu0 0.0
      %4025 = vmatprep.subr.mxu0 0.0
      %4026 = vmatpush1.msra.mxu0 0.0
      %4027 = vmatprep.subr.mxu0 0.0
      %4028 = vmatpush1.msra.mxu0 0.0
      %4029 = vmatprep.subr.mxu0 0.0
      %4030 = vmatpush1.msra.mxu0 0.0
      %4031 = vmatprep.subr.mxu0 0.0
      %4032 = vmatpush1.msra.mxu0 0.0
      %4033 = vmatprep.subr.mxu0 0.0
      %4034 = vmatpush1.msra.mxu0 0.0
      %4035 = vmatprep.subr.mxu0 0.0
      %4036 = vmatpush1.msra.mxu0 0.0
      %4037 = vmatprep.subr.mxu0 0.0
      %4038 = vmatpush1.msra.mxu0 0.0
      %4039 = vmatprep.subr.mxu0 0.0
      %4040 = vmatpush1.msra.mxu0 0.0
      %4041 = vmatprep.subr.mxu0 0.0
      %4042 = vmatpush1.msra.mxu0 0.0
      %4043 = vmatprep.subr.mxu0 0.0
      %4044 = vmatpush1.msra.mxu0 0.0
      %4045 = vmatprep.subr.mxu0 0.0
      %4046 = vmatpush1.msra.mxu0 0.0
      %4047 = vmatprep.subr.mxu0 0.0
      %4048 = vmatpush1.msra.mxu0 0.0
      %4049 = vmatprep.subr.mxu0 0.0
      %4050 = vmatpush1.msra.mxu0 0.0
      %4051 = vmatprep.mubr.f32.mxu0 0.0
      %4052 = vmatmul.mubr.f32.gmra.mrb[0].mxu0 %v3770
      %v4053 = vpop.f32.mrb[0].mxu0
      %v4054 = vadd.f32 0.0, %v4053
      %v4055 = vpop.f32.mrb[0].mxu0
      %4056 = vmatprep.mubr.f32.mxu0 0.0
      %4057 = vmatmul.mubr.f32.gmra.mrb[0].mxu0 %v3773
      %v4058 = vpop.f32.mrb[0].mxu0
      %v4059 = vadd.f32 0.0, %v4058
      %v4060 = vpop.f32.mrb[0].mxu0
      %4061 = vmatprep.mubr.f32.mxu0 0.0
      %4062 = vmatmul.mubr.f32.gmra.mrb[0].mxu0 %v3776
      %v4063 = vpop.f32.mrb[0].mxu0
      %v4064 = vadd.f32 0.0, %v4063
      %v4065 = vpop.f32.mrb[0].mxu0
      %4066 = vmatprep.mubr.f32.mxu0 0.0
      %4067 = vmatmul.mubr.f32.gmra.mrb[0].mxu0 %v3779
      %v4068 = vpop.f32.mrb[0].mxu0
      %v4069 = vadd.f32 0.0, %v4068
      %v4070 = vpop.f32.mrb[0].mxu0
      %4071 = vmatprep.mubr.f32.mxu0 0.0
      %4072 = vmatmul.mubr.f32.gmra.mrb[0].mxu0 %v3782
      %v4073 = vpop.f32.mrb[0].mxu0
      %v4074 = vadd.f32 0.0, %v4073
      %v4075 = vpop.f32.mrb[0].mxu0
      %4076 = vmatprep.mubr.f32.mxu0 0.0
      %4077 = vmatmul.mubr.f32.gmra.mrb[0].mxu0 %v3785
      %v4078 = vpop.f32.mrb[0].mxu0
      %v4079 = vadd.f32 0.0, %v4078
      %v4080 = vpop.f32.mrb[0].mxu0
      %4081 = vmatprep.mubr.f32.mxu0 0.0
      %4082 = vmatmul.mubr.f32.gmra.mrb[0].mxu0 %v3788
      %v4083 = vpop.f32.mrb[0].mxu0
      %v4084 = vadd.f32 0.0, %v4083
      %v4085 = vpop.f32.mrb[0].mxu0
      %4086 = vmatprep.mubr.f32.mxu0 0.0
      %4087 = vmatmul.mubr.f32.gmra.mrb[0].mxu0 %v3791
      %v4088 = vpop.f32.mrb[0].mxu0
      %v4089 = vadd.f32 0.0, %v4088
      %v4090 = vpop.f32.mrb[0].mxu0
      %4091 = vmatprep.mubr.f32.mxu0 0.0
      %4092 = vmatmul.mubr.f32.gmra.mrb[0].mxu0 %v3794
      %v4093 = vpop.f32.mrb[0].mxu0
      %v4094 = vadd.f32 0.0, %v4093
      %v4095 = vpop.f32.mrb[0].mxu0
      %4096 = vmatprep.mubr.f32.mxu0 0.0
      %4097 = vmatmul.mubr.f32.gmra.mrb[0].mxu0 %v3797
      %v4098 = vpop.f32.mrb[0].mxu0
      %v4099 = vadd.f32 0.0, %v4098
      %v4100 = vpop.f32.mrb[0].mxu0
      %4101 = vmatprep.mubr.f32.mxu0 0.0
      %4102 = vmatmul.mubr.f32.gmra.mrb[0].mxu0 %v3800
      %v4103 = vpop.f32.mrb[0].mxu0
      %v4104 = vadd.f32 0.0, %v4103
      %v4105 = vpop.f32.mrb[0].mxu0
      %4106 = vmatprep.mubr.f32.mxu0 0.0
      %4107 = vmatmul.mubr.f32.gmra.mrb[0].mxu0 %v3803
      %v4108 = vpop.f32.mrb[0].mxu0
      %v4109 = vadd.f32 0.0, %v4108
      %v4110 = vpop.f32.mrb[0].mxu0
      %4111 = vmatprep.mubr.f32.mxu0 0.0
      %4112 = vmatmul.mubr.f32.gmra.mrb[0].mxu0 %v3806
      %v4113 = vpop.f32.mrb[0].mxu0
      %v4114 = vadd.f32 0.0, %v4113
      %v4115 = vpop.f32.mrb[0].mxu0
      %4116 = vmatprep.mubr.f32.mxu0 0.0
      %4117 = vmatmul.mubr.f32.gmra.mrb[0].mxu0 %v3809
      %v4118 = vpop.f32.mrb[0].mxu0
      %v4119 = vadd.f32 0.0, %v4118
      %v4120 = vpop.f32.mrb[0].mxu0
      %4121 = vmatprep.mubr.f32.mxu0 0.0
      %4122 = vmatmul.mubr.f32.gmra.mrb[0].mxu0 %v3812
      %v4123 = vpop.f32.mrb[0].mxu0
      %v4124 = vadd.f32 0.0, %v4123
      %v4125 = vpop.f32.mrb[0].mxu0
      %4126 = vmatprep.mubr.f32.mxu0 0.0
      %4127 = vmatmul.mubr.f32.gmra.mrb[0].mxu0 %v3815
      %v4128 = vpop.f32.mrb[0].mxu0
      %v4129 = vadd.f32 0.0, %v4128
      %v4130 = vpop.f32.mrb[0].mxu0
      %4131 = vdwg.mxu0
      %v4132 = vadd.f32 %v4054, %v2180
      %v4133 = vadd.f32 %v4059, %v2185
      %v4134 = vadd.f32 %v4064, %v2190
      %v4135 = vadd.f32 %v4069, %v2195
      %v4136 = vadd.f32 %v4074, %v2200
      %v4137 = vadd.f32 %v4079, %v2205
      %v4138 = vadd.f32 %v4084, %v2210
      %v4139 = vadd.f32 %v4089, %v2215
      %v4140 = vadd.f32 %v4094, %v2220
      %v4141 = vadd.f32 %v4099, %v2225
      %v4142 = vadd.f32 %v4104, %v2230
      %v4143 = vadd.f32 %v4109, %v2235
      %v4144 = vadd.f32 %v4114, %v2240
      %v4145 = vadd.f32 %v4119, %v2245
      %v4146 = vadd.f32 %v4124, %v2250
      %v4147 = vadd.f32 %v4129, %v2255
      %v4148 = vld [vmem:[%s23] sm:$0x1]
      %v4150 = vlaneseq
      %v4151 = vshrl.u32 %v4150, 7
      %v4152 = vsub.s32 0, %v4151
      %v4153 = vrot.slane %v4148, %v4152
      %v4155 = vadd.f32 %v4132, %v4153
      %v4156 = vadd.f32 %v4133, %v4153
      %v4157 = vadd.f32 %v4134, %v4153
      %v4158 = vadd.f32 %v4135, %v4153
      %v4159 = vadd.f32 %v4136, %v4153
      %v4160 = vadd.f32 %v4137, %v4153
      %v4161 = vadd.f32 %v4138, %v4153
      %v4162 = vadd.f32 %v4139, %v4153
      %v4163 = vadd.f32 %v4140, %v4153
      %v4164 = vadd.f32 %v4141, %v4153
      %v4165 = vadd.f32 %v4142, %v4153
      %v4166 = vadd.f32 %v4143, %v4153
      %v4167 = vadd.f32 %v4144, %v4153
      %v4168 = vadd.f32 %v4145, %v4153
      %v4169 = vadd.f32 %v4146, %v4153
      %v4170 = vadd.f32 %v4147, %v4153
      %v4171 = vld [vmem:[%s24] sm:$0x1]
      %v4173 = vlaneseq
      %v4174 = vshrl.u32 %v4173, 7
      %v4175 = vsub.s32 0, %v4174
      %v4176 = vrot.slane %v4171, %v4175
      %v4178 = vadd.f32 %v1813, %v4176
      %v4179 = vadd.f32 %v1818, %v4176
      %v4180 = vadd.f32 %v1823, %v4176
      %v4181 = vadd.f32 %v1828, %v4176
      %v4182 = vadd.f32 %v1833, %v4176
      %v4183 = vadd.f32 %v1838, %v4176
      %v4184 = vadd.f32 %v1843, %v4176
      %v4185 = vadd.f32 %v1848, %v4176
      %v4186 = vadd.f32 %v1853, %v4176
      %v4187 = vadd.f32 %v1858, %v4176
      %v4188 = vadd.f32 %v1863, %v4176
      %v4189 = vadd.f32 %v1868, %v4176
      %v4190 = vadd.f32 %v1873, %v4176
      %v4191 = vadd.f32 %v1878, %v4176
      %v4192 = vadd.f32 %v1883, %v4176
      %v4193 = vadd.f32 %v1888, %v4176
      %v4194 = vadd.f32 %v4155, %v4178
      %v4195 = vadd.f32 %v4156, %v4179
      %v4196 = vadd.f32 %v4157, %v4180
      %v4197 = vadd.f32 %v4158, %v4181
      %v4198 = vadd.f32 %v4159, %v4182
      %v4199 = vadd.f32 %v4160, %v4183
      %v4200 = vadd.f32 %v4161, %v4184
      %v4201 = vadd.f32 %v4162, %v4185
      %v4202 = vadd.f32 %v4163, %v4186
      %v4203 = vadd.f32 %v4164, %v4187
      %v4204 = vadd.f32 %v4165, %v4188
      %v4205 = vadd.f32 %v4166, %v4189
      %v4206 = vadd.f32 %v4167, %v4190
      %v4207 = vadd.f32 %v4168, %v4191
      %v4208 = vadd.f32 %v4169, %v4192
      %v4209 = vadd.f32 %v4170, %v4193
      %v4210 = vxor.u32 %v4194, 2147483648
      %v4211 = vxor.u32 %v4195, 2147483648
      %v4212 = vxor.u32 %v4196, 2147483648
      %v4213 = vxor.u32 %v4197, 2147483648
      %v4214 = vxor.u32 %v4198, 2147483648
      %v4215 = vxor.u32 %v4199, 2147483648
      %v4216 = vxor.u32 %v4200, 2147483648
      %v4217 = vxor.u32 %v4201, 2147483648
      %v4218 = vxor.u32 %v4202, 2147483648
      %v4219 = vxor.u32 %v4203, 2147483648
      %v4220 = vxor.u32 %v4204, 2147483648
      %v4221 = vxor.u32 %v4205, 2147483648
      %v4222 = vxor.u32 %v4206, 2147483648
      %v4223 = vxor.u32 %v4207, 2147483648
      %v4224 = vxor.u32 %v4208, 2147483648
      %v4225 = vxor.u32 %v4209, 2147483648
      %v4226 = vmul.f32 %v4210, 1.442695
      %v4227 = vpow.pop %v4226
      %v4228 = vmul.f32 %v4211, 1.442695
      %v4229 = vpow.pop %v4228
      %v4230 = vmul.f32 %v4212, 1.442695
      %v4231 = vpow.pop %v4230
      %v4232 = vmul.f32 %v4213, 1.442695
      %v4233 = vpow.pop %v4232
      %v4234 = vmul.f32 %v4214, 1.442695
      %v4235 = vpow.pop %v4234
      %v4236 = vmul.f32 %v4215, 1.442695
      %v4237 = vpow.pop %v4236
      %v4238 = vmul.f32 %v4216, 1.442695
      %v4239 = vpow.pop %v4238
      %v4240 = vmul.f32 %v4217, 1.442695
      %v4241 = vpow.pop %v4240
      %v4242 = vmul.f32 %v4218, 1.442695
      %v4243 = vpow.pop %v4242
      %v4244 = vmul.f32 %v4219, 1.442695
      %v4245 = vpow.pop %v4244
      %v4246 = vmul.f32 %v4220, 1.442695
      %v4247 = vpow.pop %v4246
      %v4248 = vmul.f32 %v4221, 1.442695
      %v4249 = vpow.pop %v4248
      %v4250 = vmul.f32 %v4222, 1.442695
      %v4251 = vpow.pop %v4250
      %v4252 = vmul.f32 %v4223, 1.442695
      %v4253 = vpow.pop %v4252
      %v4254 = vmul.f32 %v4224, 1.442695
      %v4255 = vpow.pop %v4254
      %v4256 = vmul.f32 %v4225, 1.442695
      %v4257 = vpow.pop %v4256
      %v4258 = vadd.f32 %v4227, 1.0
      %v4259 = vadd.f32 %v4229, 1.0
      %v4260 = vadd.f32 %v4231, 1.0
      %v4261 = vadd.f32 %v4233, 1.0
      %v4262 = vadd.f32 %v4235, 1.0
      %v4263 = vadd.f32 %v4237, 1.0
      %v4264 = vadd.f32 %v4239, 1.0
      %v4265 = vadd.f32 %v4241, 1.0
      %v4266 = vadd.f32 %v4243, 1.0
      %v4267 = vadd.f32 %v4245, 1.0
      %v4268 = vadd.f32 %v4247, 1.0
      %v4269 = vadd.f32 %v4249, 1.0
      %v4270 = vadd.f32 %v4251, 1.0
      %v4271 = vadd.f32 %v4253, 1.0
      %v4272 = vadd.f32 %v4255, 1.0
      %v4273 = vadd.f32 %v4257, 1.0
      %v4274 = vrcp.pop %v4258
      %v4275 = vmul.f32 1.0, %v4274
      %v4276 = vrcp.pop %v4259
      %v4277 = vmul.f32 1.0, %v4276
      %v4278 = vrcp.pop %v4260
      %v4279 = vmul.f32 1.0, %v4278
      %v4280 = vrcp.pop %v4261
      %v4281 = vmul.f32 1.0, %v4280
      %v4282 = vrcp.pop %v4262
      %v4283 = vmul.f32 1.0, %v4282
      %v4284 = vrcp.pop %v4263
      %v4285 = vmul.f32 1.0, %v4284
      %v4286 = vrcp.pop %v4264
      %v4287 = vmul.f32 1.0, %v4286
      %v4288 = vrcp.pop %v4265
      %v4289 = vmul.f32 1.0, %v4288
      %v4290 = vrcp.pop %v4266
      %v4291 = vmul.f32 1.0, %v4290
      %v4292 = vrcp.pop %v4267
      %v4293 = vmul.f32 1.0, %v4292
      %v4294 = vrcp.pop %v4268
      %v4295 = vmul.f32 1.0, %v4294
      %v4296 = vrcp.pop %v4269
      %v4297 = vmul.f32 1.0, %v4296
      %v4298 = vrcp.pop %v4270
      %v4299 = vmul.f32 1.0, %v4298
      %v4300 = vrcp.pop %v4271
      %v4301 = vmul.f32 1.0, %v4300
      %v4302 = vrcp.pop %v4272
      %v4303 = vmul.f32 1.0, %v4302
      %v4304 = vrcp.pop %v4273
      %v4305 = vmul.f32 1.0, %v4304
      %4322 = vrot.lane.b32.xlu0 %v4178, 80
      %v4323 = vpop.permute.xlu0 %4322
      %4324 = vrot.lane.b32.xlu0 %v4179, 80
      %v4325 = vpop.permute.xlu0 %4324
      %4326 = vrot.lane.b32.xlu0 %v4180, 80
      %v4327 = vpop.permute.xlu0 %4326
      %4328 = vrot.lane.b32.xlu0 %v4181, 80
      %v4329 = vpop.permute.xlu0 %4328
      %4330 = vrot.lane.b32.xlu0 %v4182, 80
      %v4331 = vpop.permute.xlu0 %4330
      %4332 = vrot.lane.b32.xlu0 %v4183, 80
      %v4333 = vpop.permute.xlu0 %4332
      %4334 = vrot.lane.b32.xlu0 %v4184, 80
      %v4335 = vpop.permute.xlu0 %4334
      %4336 = vrot.lane.b32.xlu0 %v4185, 80
      %v4337 = vpop.permute.xlu0 %4336
      %4338 = vrot.lane.b32.xlu0 %v4186, 80
      %v4339 = vpop.permute.xlu0 %4338
      %4340 = vrot.lane.b32.xlu0 %v4187, 80
      %v4341 = vpop.permute.xlu0 %4340
      %4342 = vrot.lane.b32.xlu0 %v4188, 80
      %v4343 = vpop.permute.xlu0 %4342
      %4344 = vrot.lane.b32.xlu0 %v4189, 80
      %v4345 = vpop.permute.xlu0 %4344
      %4346 = vrot.lane.b32.xlu0 %v4190, 80
      %v4347 = vpop.permute.xlu0 %4346
      %4348 = vrot.lane.b32.xlu0 %v4191, 80
      %v4349 = vpop.permute.xlu0 %4348
      %4350 = vrot.lane.b32.xlu0 %v4192, 80
      %v4351 = vpop.permute.xlu0 %4350
      %4352 = vrot.lane.b32.xlu0 %v4193, 80
      %v4353 = vpop.permute.xlu0 %4352
      %v4370 = vmul.f32 %v4275, %v4323
      %v4371 = vmul.f32 %v4277, %v4325
      %v4372 = vmul.f32 %v4279, %v4327
      %v4373 = vmul.f32 %v4281, %v4329
      %v4374 = vmul.f32 %v4283, %v4331
      %v4375 = vmul.f32 %v4285, %v4333
      %v4376 = vmul.f32 %v4287, %v4335
      %v4377 = vmul.f32 %v4289, %v4337
      %v4378 = vmul.f32 %v4291, %v4339
      %v4379 = vmul.f32 %v4293, %v4341
      %v4380 = vmul.f32 %v4295, %v4343
      %v4381 = vmul.f32 %v4297, %v4345
      %v4382 = vmul.f32 %v4299, %v4347
      %v4383 = vmul.f32 %v4301, %v4349
      %v4384 = vmul.f32 %v4303, %v4351
      %v4385 = vmul.f32 %v4305, %v4353
      %4402 = vrot.lane.b32.xlu0 %v4370, 48
      %v4403 = vpop.permute.xlu0 %4402
      %4404 = vrot.lane.b32.xlu0 %v4371, 48
      %v4405 = vpop.permute.xlu0 %4404
      %4406 = vrot.lane.b32.xlu0 %v4372, 48
      %v4407 = vpop.permute.xlu0 %4406
      %4408 = vrot.lane.b32.xlu0 %v4373, 48
      %v4409 = vpop.permute.xlu0 %4408
      %4410 = vrot.lane.b32.xlu0 %v4374, 48
      %v4411 = vpop.permute.xlu0 %4410
      %4412 = vrot.lane.b32.xlu0 %v4375, 48
      %v4413 = vpop.permute.xlu0 %4412
      %4414 = vrot.lane.b32.xlu0 %v4376, 48
      %v4415 = vpop.permute.xlu0 %4414
      %4416 = vrot.lane.b32.xlu0 %v4377, 48
      %v4417 = vpop.permute.xlu0 %4416
      %4418 = vrot.lane.b32.xlu0 %v4378, 48
      %v4419 = vpop.permute.xlu0 %4418
      %4420 = vrot.lane.b32.xlu0 %v4379, 48
      %v4421 = vpop.permute.xlu0 %4420
      %4422 = vrot.lane.b32.xlu0 %v4380, 48
      %v4423 = vpop.permute.xlu0 %4422
      %4424 = vrot.lane.b32.xlu0 %v4381, 48
      %v4425 = vpop.permute.xlu0 %4424
      %4426 = vrot.lane.b32.xlu0 %v4382, 48
      %v4427 = vpop.permute.xlu0 %4426
      %4428 = vrot.lane.b32.xlu0 %v4383, 48
      %v4429 = vpop.permute.xlu0 %4428
      %4430 = vrot.lane.b32.xlu0 %v4384, 48
      %v4431 = vpop.permute.xlu0 %4430
      %4432 = vrot.lane.b32.xlu0 %v4385, 48
      %v4433 = vpop.permute.xlu0 %4432
      %v4450 = vadd.f32 %v4155, %v4403
      %v4451 = vadd.f32 %v4156, %v4405
      %v4452 = vadd.f32 %v4157, %v4407
      %v4453 = vadd.f32 %v4158, %v4409
      %v4454 = vadd.f32 %v4159, %v4411
      %v4455 = vadd.f32 %v4160, %v4413
      %v4456 = vadd.f32 %v4161, %v4415
      %v4457 = vadd.f32 %v4162, %v4417
      %v4458 = vadd.f32 %v4163, %v4419
      %v4459 = vadd.f32 %v4164, %v4421
      %v4460 = vadd.f32 %v4165, %v4423
      %v4461 = vadd.f32 %v4166, %v4425
      %v4462 = vadd.f32 %v4167, %v4427
      %v4463 = vadd.f32 %v4168, %v4429
      %v4464 = vadd.f32 %v4169, %v4431
      %v4465 = vadd.f32 %v4170, %v4433
      %v4466 = vtanh.pop %v4450
      %v4467 = vtanh.pop %v4451
      %v4468 = vtanh.pop %v4452
      %v4469 = vtanh.pop %v4453
      %v4470 = vtanh.pop %v4454
      %v4471 = vtanh.pop %v4455
      %v4472 = vtanh.pop %v4456
      %v4473 = vtanh.pop %v4457
      %v4474 = vtanh.pop %v4458
      %v4475 = vtanh.pop %v4459
      %v4476 = vtanh.pop %v4460
      %v4477 = vtanh.pop %v4461
      %v4478 = vtanh.pop %v4462
      %v4479 = vtanh.pop %v4463
      %v4480 = vtanh.pop %v4464
      %v4481 = vtanh.pop %v4465
      %v4482 = vsub.f32 1.0, %v4275
      %v4483 = vsub.f32 1.0, %v4277
      %v4484 = vsub.f32 1.0, %v4279
      %v4485 = vsub.f32 1.0, %v4281
      %v4486 = vsub.f32 1.0, %v4283
      %v4487 = vsub.f32 1.0, %v4285
      %v4488 = vsub.f32 1.0, %v4287
      %v4489 = vsub.f32 1.0, %v4289
      %v4490 = vsub.f32 1.0, %v4291
      %v4491 = vsub.f32 1.0, %v4293
      %v4492 = vsub.f32 1.0, %v4295
      %v4493 = vsub.f32 1.0, %v4297
      %v4494 = vsub.f32 1.0, %v4299
      %v4495 = vsub.f32 1.0, %v4301
      %v4496 = vsub.f32 1.0, %v4303
      %v4497 = vsub.f32 1.0, %v4305
      %4514 = vrot.lane.b32.xlu0 %v4466, 104
      %v4515 = vpop.permute.xlu0 %4514
      %4516 = vrot.lane.b32.xlu0 %v4467, 104
      %v4517 = vpop.permute.xlu0 %4516
      %4518 = vrot.lane.b32.xlu0 %v4468, 104
      %v4519 = vpop.permute.xlu0 %4518
      %4520 = vrot.lane.b32.xlu0 %v4469, 104
      %v4521 = vpop.permute.xlu0 %4520
      %4522 = vrot.lane.b32.xlu0 %v4470, 104
      %v4523 = vpop.permute.xlu0 %4522
      %4524 = vrot.lane.b32.xlu0 %v4471, 104
      %v4525 = vpop.permute.xlu0 %4524
      %4526 = vrot.lane.b32.xlu0 %v4472, 104
      %v4527 = vpop.permute.xlu0 %4526
      %4528 = vrot.lane.b32.xlu0 %v4473, 104
      %v4529 = vpop.permute.xlu0 %4528
      %4530 = vrot.lane.b32.xlu0 %v4474, 104
      %v4531 = vpop.permute.xlu0 %4530
      %4532 = vrot.lane.b32.xlu0 %v4475, 104
      %v4533 = vpop.permute.xlu0 %4532
      %4534 = vrot.lane.b32.xlu0 %v4476, 104
      %v4535 = vpop.permute.xlu0 %4534
      %4536 = vrot.lane.b32.xlu0 %v4477, 104
      %v4537 = vpop.permute.xlu0 %4536
      %4538 = vrot.lane.b32.xlu0 %v4478, 104
      %v4539 = vpop.permute.xlu0 %4538
      %4540 = vrot.lane.b32.xlu0 %v4479, 104
      %v4541 = vpop.permute.xlu0 %4540
      %4542 = vrot.lane.b32.xlu0 %v4480, 104
      %v4543 = vpop.permute.xlu0 %4542
      %4544 = vrot.lane.b32.xlu0 %v4481, 104
      %v4545 = vpop.permute.xlu0 %4544
      %v4562 = vmul.f32 %v4482, %v4515
      %v4563 = vmul.f32 %v4483, %v4517
      %v4564 = vmul.f32 %v4484, %v4519
      %v4565 = vmul.f32 %v4485, %v4521
      %v4566 = vmul.f32 %v4486, %v4523
      %v4567 = vmul.f32 %v4487, %v4525
      %v4568 = vmul.f32 %v4488, %v4527
      %v4569 = vmul.f32 %v4489, %v4529
      %v4570 = vmul.f32 %v4490, %v4531
      %v4571 = vmul.f32 %v4491, %v4533
      %v4572 = vmul.f32 %v4492, %v4535
      %v4573 = vmul.f32 %v4493, %v4537
      %v4574 = vmul.f32 %v4494, %v4539
      %v4575 = vmul.f32 %v4495, %v4541
      %v4576 = vmul.f32 %v4496, %v4543
      %v4577 = vmul.f32 %v4497, %v4545
      %4578 = vrot.lane.b32.xlu0 %v949, 24
      %v4579 = vpop.permute.xlu0 %4578
      %4580 = vrot.lane.b32.xlu0 %v950, 24
      %v4581 = vpop.permute.xlu0 %4580
      %4582 = vrot.lane.b32.xlu0 %v951, 24
      %v4583 = vpop.permute.xlu0 %4582
      %4584 = vrot.lane.b32.xlu0 %v952, 24
      %v4585 = vpop.permute.xlu0 %4584
      %4586 = vrot.lane.b32.xlu0 %v953, 24
      %v4587 = vpop.permute.xlu0 %4586
      %4588 = vrot.lane.b32.xlu0 %v954, 24
      %v4589 = vpop.permute.xlu0 %4588
      %4590 = vrot.lane.b32.xlu0 %v955, 24
      %v4591 = vpop.permute.xlu0 %4590
      %4592 = vrot.lane.b32.xlu0 %v956, 24
      %v4593 = vpop.permute.xlu0 %4592
      %4594 = vrot.lane.b32.xlu0 %v957, 24
      %v4595 = vpop.permute.xlu0 %4594
      %4596 = vrot.lane.b32.xlu0 %v958, 24
      %v4597 = vpop.permute.xlu0 %4596
      %4598 = vrot.lane.b32.xlu0 %v959, 24
      %v4599 = vpop.permute.xlu0 %4598
      %4600 = vrot.lane.b32.xlu0 %v960, 24
      %v4601 = vpop.permute.xlu0 %4600
      %4602 = vrot.lane.b32.xlu0 %v961, 24
      %v4603 = vpop.permute.xlu0 %4602
      %4604 = vrot.lane.b32.xlu0 %v962, 24
      %v4605 = vpop.permute.xlu0 %4604
      %4606 = vrot.lane.b32.xlu0 %v963, 24
      %v4607 = vpop.permute.xlu0 %4606
      %4608 = vrot.lane.b32.xlu0 %v964, 24
      %v4609 = vpop.permute.xlu0 %4608
      %v4626 = vmul.f32 %v4275, %v4579
      %v4627 = vmul.f32 %v4277, %v4581
      %v4628 = vmul.f32 %v4279, %v4583
      %v4629 = vmul.f32 %v4281, %v4585
      %v4630 = vmul.f32 %v4283, %v4587
      %v4631 = vmul.f32 %v4285, %v4589
      %v4632 = vmul.f32 %v4287, %v4591
      %v4633 = vmul.f32 %v4289, %v4593
      %v4634 = vmul.f32 %v4291, %v4595
      %v4635 = vmul.f32 %v4293, %v4597
      %v4636 = vmul.f32 %v4295, %v4599
      %v4637 = vmul.f32 %v4297, %v4601
      %v4638 = vmul.f32 %v4299, %v4603
      %v4639 = vmul.f32 %v4301, %v4605
      %v4640 = vmul.f32 %v4303, %v4607
      %v4641 = vmul.f32 %v4305, %v4609
      %v4642 = vadd.f32 %v4562, %v4626
      %v4643 = vadd.f32 %v4563, %v4627
      %v4644 = vadd.f32 %v4564, %v4628
      %v4645 = vadd.f32 %v4565, %v4629
      %v4646 = vadd.f32 %v4566, %v4630
      %v4647 = vadd.f32 %v4567, %v4631
      %v4648 = vadd.f32 %v4568, %v4632
      %v4649 = vadd.f32 %v4569, %v4633
      %v4650 = vadd.f32 %v4570, %v4634
      %v4651 = vadd.f32 %v4571, %v4635
      %v4652 = vadd.f32 %v4572, %v4636
      %v4653 = vadd.f32 %v4573, %v4637
      %v4654 = vadd.f32 %v4574, %v4638
      %v4655 = vadd.f32 %v4575, %v4639
      %v4656 = vadd.f32 %v4576, %v4640
      %v4657 = vadd.f32 %v4577, %v4641
      %v4658 = vld [vmem:[%s13] sm:$0xff]
      %v4659 = vld [vmem:[%s13 + $0x8] sm:$0xff]
      %v4660 = vld [vmem:[%s13 + $0x10] sm:$0xff]
      %v4661 = vld [vmem:[%s13 + $0x18] sm:$0xff]
      %v4662 = vld [vmem:[%s13 + $0x20] sm:$0xff]
      %v4663 = vld [vmem:[%s13 + $0x28] sm:$0xff]
      %4680 = vrot.lane.b32.xlu0 %v4642, 104
      %v4681 = vpop.permute.xlu0 %4680
      %4682 = vrot.lane.b32.xlu0 %v4643, 104
      %v4683 = vpop.permute.xlu0 %4682
      %4684 = vrot.lane.b32.xlu0 %v4644, 104
      %v4685 = vpop.permute.xlu0 %4684
      %4686 = vrot.lane.b32.xlu0 %v4645, 104
      %v4687 = vpop.permute.xlu0 %4686
      %4688 = vrot.lane.b32.xlu0 %v4646, 104
      %v4689 = vpop.permute.xlu0 %4688
      %4690 = vrot.lane.b32.xlu0 %v4647, 104
      %v4691 = vpop.permute.xlu0 %4690
      %4692 = vrot.lane.b32.xlu0 %v4648, 104
      %v4693 = vpop.permute.xlu0 %4692
      %4694 = vrot.lane.b32.xlu0 %v4649, 104
      %v4695 = vpop.permute.xlu0 %4694
      %4696 = vrot.lane.b32.xlu0 %v4650, 104
      %v4697 = vpop.permute.xlu0 %4696
      %4698 = vrot.lane.b32.xlu0 %v4651, 104
      %v4699 = vpop.permute.xlu0 %4698
      %4700 = vrot.lane.b32.xlu0 %v4652, 104
      %v4701 = vpop.permute.xlu0 %4700
      %4702 = vrot.lane.b32.xlu0 %v4653, 104
      %v4703 = vpop.permute.xlu0 %4702
      %4704 = vrot.lane.b32.xlu0 %v4654, 104
      %v4705 = vpop.permute.xlu0 %4704
      %4706 = vrot.lane.b32.xlu0 %v4655, 104
      %v4707 = vpop.permute.xlu0 %4706
      %4708 = vrot.lane.b32.xlu0 %v4656, 104
      %v4709 = vpop.permute.xlu0 %4708
      %4710 = vrot.lane.b32.xlu0 %v4657, 104
      %v4711 = vpop.permute.xlu0 %4710
      %v4712 = vsel %vm1375, %v4681, 0
      %v4714 = vsel %vm1375, %v4683, 0
      %v4716 = vsel %vm1375, %v4685, 0
      %v4718 = vsel %vm1375, %v4687, 0
      %v4720 = vsel %vm1375, %v4689, 0
      %v4722 = vsel %vm1375, %v4691, 0
      %v4724 = vsel %vm1375, %v4693, 0
      %v4726 = vsel %vm1375, %v4695, 0
      %v4728 = vsel %vm1375, %v4697, 0
      %v4730 = vsel %vm1375, %v4699, 0
      %v4732 = vsel %vm1375, %v4701, 0
      %v4734 = vsel %vm1375, %v4703, 0
      %v4736 = vsel %vm1375, %v4705, 0
      %v4738 = vsel %vm1375, %v4707, 0
      %v4740 = vsel %vm1375, %v4709, 0
      %v4742 = vsel %vm1375, %v4711, 0
      %4744 = vmatprep.subr.mxu0 %v4659
      %4745 = vmatpush1.msra.mxu0 %v4658
      %4746 = vmatprep.subr.mxu0 %v4661
      %4747 = vmatpush1.msra.mxu0 %v4660
      %4748 = vmatprep.subr.mxu0 %v4663
      %4749 = vmatpush1.msra.mxu0 %v4662
      %4750 = vmatprep.subr.mxu0 0.0
      %4751 = vmatpush1.msra.mxu0 0.0
      %4752 = vmatprep.subr.mxu0 0.0
      %4753 = vmatpush1.msra.mxu0 0.0
      %4754 = vmatprep.subr.mxu0 0.0
      %4755 = vmatpush1.msra.mxu0 0.0
      %4756 = vmatprep.subr.mxu0 0.0
      %4757 = vmatpush1.msra.mxu0 0.0
      %4758 = vmatprep.subr.mxu0 0.0
      %4759 = vmatpush1.msra.mxu0 0.0
      %4760 = vmatprep.subr.mxu0 0.0
      %4761 = vmatpush1.msra.mxu0 0.0
      %4762 = vmatprep.subr.mxu0 0.0
      %4763 = vmatpush1.msra.mxu0 0.0
      %4764 = vmatprep.subr.mxu0 0.0
      %4765 = vmatpush1.msra.mxu0 0.0
      %4766 = vmatprep.subr.mxu0 0.0
      %4767 = vmatpush1.msra.mxu0 0.0
      %4768 = vmatprep.subr.mxu0 0.0
      %4769 = vmatpush1.msra.mxu0 0.0
      %4770 = vmatprep.subr.mxu0 0.0
      %4771 = vmatpush1.msra.mxu0 0.0
      %4772 = vmatprep.subr.mxu0 0.0
      %4773 = vmatpush1.msra.mxu0 0.0
      %4774 = vmatprep.subr.mxu0 0.0
      %4775 = vmatpush1.msra.mxu0 0.0
      %4776 = vmatprep.subr.mxu0 0.0
      %4777 = vmatpush1.msra.mxu0 0.0
      %4778 = vmatprep.subr.mxu0 0.0
      %4779 = vmatpush1.msra.mxu0 0.0
      %4780 = vmatprep.subr.mxu0 0.0
      %4781 = vmatpush1.msra.mxu0 0.0
      %4782 = vmatprep.subr.mxu0 0.0
      %4783 = vmatpush1.msra.mxu0 0.0
      %4784 = vmatprep.subr.mxu0 0.0
      %4785 = vmatpush1.msra.mxu0 0.0
      %4786 = vmatprep.subr.mxu0 0.0
      %4787 = vmatpush1.msra.mxu0 0.0
      %4788 = vmatprep.subr.mxu0 0.0
      %4789 = vmatpush1.msra.mxu0 0.0
      %4790 = vmatprep.subr.mxu0 0.0
      %4791 = vmatpush1.msra.mxu0 0.0
      %4792 = vmatprep.subr.mxu0 0.0
      %4793 = vmatpush1.msra.mxu0 0.0
      %4794 = vmatprep.subr.mxu0 0.0
      %4795 = vmatpush1.msra.mxu0 0.0
      %4796 = vmatprep.subr.mxu0 0.0
      %4797 = vmatpush1.msra.mxu0 0.0
      %4798 = vmatprep.subr.mxu0 0.0
      %4799 = vmatpush1.msra.mxu0 0.0
      %4800 = vmatprep.subr.mxu0 0.0
      %4801 = vmatpush1.msra.mxu0 0.0
      %4802 = vmatprep.subr.mxu0 0.0
      %4803 = vmatpush1.msra.mxu0 0.0
      %4804 = vmatprep.subr.mxu0 0.0
      %4805 = vmatpush1.msra.mxu0 0.0
      %4806 = vmatprep.subr.mxu0 0.0
      %4807 = vmatpush1.msra.mxu0 0.0
      %4808 = vmatprep.mubr.f32.mxu0 0.0
      %4809 = vmatmul.mubr.f32.gmra.mrb[0].mxu0 %v4712
      %v4810 = vpop.f32.mrb[0].mxu0
      %v4811 = vadd.f32 %v3893, %v4810
      %v4812 = vpop.f32.mrb[0].mxu0
      %v4813 = vadd.f32 %v3895, %v4812
      %4814 = vmatprep.mubr.f32.mxu0 0.0
      %4815 = vmatmul.mubr.f32.gmra.mrb[0].mxu0 %v4714
      %v4816 = vpop.f32.mrb[0].mxu0
      %v4817 = vadd.f32 %v3899, %v4816
      %v4818 = vpop.f32.mrb[0].mxu0
      %v4819 = vadd.f32 %v3901, %v4818
      %4820 = vmatprep.mubr.f32.mxu0 0.0
      %4821 = vmatmul.mubr.f32.gmra.mrb[0].mxu0 %v4716
      %v4822 = vpop.f32.mrb[0].mxu0
      %v4823 = vadd.f32 %v3905, %v4822
      %v4824 = vpop.f32.mrb[0].mxu0
      %v4825 = vadd.f32 %v3907, %v4824
      %4826 = vmatprep.mubr.f32.mxu0 0.0
      %4827 = vmatmul.mubr.f32.gmra.mrb[0].mxu0 %v4718
      %v4828 = vpop.f32.mrb[0].mxu0
      %v4829 = vadd.f32 %v3911, %v4828
      %v4830 = vpop.f32.mrb[0].mxu0
      %v4831 = vadd.f32 %v3913, %v4830
      %4832 = vmatprep.mubr.f32.mxu0 0.0
      %4833 = vmatmul.mubr.f32.gmra.mrb[0].mxu0 %v4720
      %v4834 = vpop.f32.mrb[0].mxu0
      %v4835 = vadd.f32 %v3917, %v4834
      %v4836 = vpop.f32.mrb[0].mxu0
      %v4837 = vadd.f32 %v3919, %v4836
      %4838 = vmatprep.mubr.f32.mxu0 0.0
      %4839 = vmatmul.mubr.f32.gmra.mrb[0].mxu0 %v4722
      %v4840 = vpop.f32.mrb[0].mxu0
      %v4841 = vadd.f32 %v3923, %v4840
      %v4842 = vpop.f32.mrb[0].mxu0
      %v4843 = vadd.f32 %v3925, %v4842
      %4844 = vmatprep.mubr.f32.mxu0 0.0
      %4845 = vmatmul.mubr.f32.gmra.mrb[0].mxu0 %v4724
      %v4846 = vpop.f32.mrb[0].mxu0
      %v4847 = vadd.f32 %v3929, %v4846
      %v4848 = vpop.f32.mrb[0].mxu0
      %v4849 = vadd.f32 %v3931, %v4848
      %4850 = vmatprep.mubr.f32.mxu0 0.0
      %4851 = vmatmul.mubr.f32.gmra.mrb[0].mxu0 %v4726
      %v4852 = vpop.f32.mrb[0].mxu0
      %v4853 = vadd.f32 %v3935, %v4852
      %v4854 = vpop.f32.mrb[0].mxu0
      %v4855 = vadd.f32 %v3937, %v4854
      %4856 = vmatprep.mubr.f32.mxu0 0.0
      %4857 = vmatmul.mubr.f32.gmra.mrb[0].mxu0 %v4728
      %v4858 = vpop.f32.mrb[0].mxu0
      %v4859 = vadd.f32 %v3941, %v4858
      %v4860 = vpop.f32.mrb[0].mxu0
      %v4861 = vadd.f32 %v3943, %v4860
      %4862 = vmatprep.mubr.f32.mxu0 0.0
      %4863 = vmatmul.mubr.f32.gmra.mrb[0].mxu0 %v4730
      %v4864 = vpop.f32.mrb[0].mxu0
      %v4865 = vadd.f32 %v3947, %v4864
      %v4866 = vpop.f32.mrb[0].mxu0
      %v4867 = vadd.f32 %v3949, %v4866
      %4868 = vmatprep.mubr.f32.mxu0 0.0
      %4869 = vmatmul.mubr.f32.gmra.mrb[0].mxu0 %v4732
      %v4870 = vpop.f32.mrb[0].mxu0
      %v4871 = vadd.f32 %v3953, %v4870
      %v4872 = vpop.f32.mrb[0].mxu0
      %v4873 = vadd.f32 %v3955, %v4872
      %4874 = vmatprep.mubr.f32.mxu0 0.0
      %4875 = vmatmul.mubr.f32.gmra.mrb[0].mxu0 %v4734
      %v4876 = vpop.f32.mrb[0].mxu0
      %v4877 = vadd.f32 %v3959, %v4876
      %v4878 = vpop.f32.mrb[0].mxu0
      %v4879 = vadd.f32 %v3961, %v4878
      %4880 = vmatprep.mubr.f32.mxu0 0.0
      %4881 = vmatmul.mubr.f32.gmra.mrb[0].mxu0 %v4736
      %v4882 = vpop.f32.mrb[0].mxu0
      %v4883 = vadd.f32 %v3965, %v4882
      %v4884 = vpop.f32.mrb[0].mxu0
      %v4885 = vadd.f32 %v3967, %v4884
      %4886 = vmatprep.mubr.f32.mxu0 0.0
      %4887 = vmatmul.mubr.f32.gmra.mrb[0].mxu0 %v4738
      %v4888 = vpop.f32.mrb[0].mxu0
      %v4889 = vadd.f32 %v3971, %v4888
      %v4890 = vpop.f32.mrb[0].mxu0
      %v4891 = vadd.f32 %v3973, %v4890
      %4892 = vmatprep.mubr.f32.mxu0 0.0
      %4893 = vmatmul.mubr.f32.gmra.mrb[0].mxu0 %v4740
      %v4894 = vpop.f32.mrb[0].mxu0
      %v4895 = vadd.f32 %v3977, %v4894
      %v4896 = vpop.f32.mrb[0].mxu0
      %v4897 = vadd.f32 %v3979, %v4896
      %4898 = vmatprep.mubr.f32.mxu0 0.0
      %4899 = vmatmul.mubr.f32.gmra.mrb[0].mxu0 %v4742
      %v4900 = vpop.f32.mrb[0].mxu0
      %v4901 = vadd.f32 %v3983, %v4900
      %v4902 = vpop.f32.mrb[0].mxu0
      %v4903 = vadd.f32 %v3985, %v4902
      %4904 = vdwg.mxu0
      %v4905 = vld [vmem:[%s25] sm:$0x3]
      %v4907 = vlaneseq
      %v4908 = vshrl.u32 %v4907, 7
      %v4909 = vsub.s32 0, %v4908
      %v4910 = vrot.slane %v4905, %v4909
      %v4911 = vlaneseq
      %v4912 = vshrl.u32 %v4911, 7
      %v4913 = vsub.s32 1, %v4912
      %v4914 = vrot.slane %v4905, %v4913
      %v4917 = vadd.f32 %v4811, %v4910
      %v4918 = vadd.f32 %v4813, %v4914
      %v4919 = vadd.f32 %v4817, %v4910
      %v4920 = vadd.f32 %v4819, %v4914
      %v4921 = vadd.f32 %v4823, %v4910
      %v4922 = vadd.f32 %v4825, %v4914
      %v4923 = vadd.f32 %v4829, %v4910
      %v4924 = vadd.f32 %v4831, %v4914
      %v4925 = vadd.f32 %v4835, %v4910
      %v4926 = vadd.f32 %v4837, %v4914
      %v4927 = vadd.f32 %v4841, %v4910
      %v4928 = vadd.f32 %v4843, %v4914
      %v4929 = vadd.f32 %v4847, %v4910
      %v4930 = vadd.f32 %v4849, %v4914
      %v4931 = vadd.f32 %v4853, %v4910
      %v4932 = vadd.f32 %v4855, %v4914
      %v4933 = vadd.f32 %v4859, %v4910
      %v4934 = vadd.f32 %v4861, %v4914
      %v4935 = vadd.f32 %v4865, %v4910
      %v4936 = vadd.f32 %v4867, %v4914
      %v4937 = vadd.f32 %v4871, %v4910
      %v4938 = vadd.f32 %v4873, %v4914
      %v4939 = vadd.f32 %v4877, %v4910
      %v4940 = vadd.f32 %v4879, %v4914
      %v4941 = vadd.f32 %v4883, %v4910
      %v4942 = vadd.f32 %v4885, %v4914
      %v4943 = vadd.f32 %v4889, %v4910
      %v4944 = vadd.f32 %v4891, %v4914
      %v4945 = vadd.f32 %v4895, %v4910
      %v4946 = vadd.f32 %v4897, %v4914
      %v4947 = vadd.f32 %v4901, %v4910
      %v4948 = vadd.f32 %v4903, %v4914
      %v4949 = vmax.f32 %v4917, 0.0
      %v4950 = vmax.f32 %v4918, 0.0
      %v4951 = vmax.f32 %v4919, 0.0
      %v4952 = vmax.f32 %v4920, 0.0
      %v4953 = vmax.f32 %v4921, 0.0
      %v4954 = vmax.f32 %v4922, 0.0
      %v4955 = vmax.f32 %v4923, 0.0
      %v4956 = vmax.f32 %v4924, 0.0
      %v4957 = vmax.f32 %v4925, 0.0
      %v4958 = vmax.f32 %v4926, 0.0
      %v4959 = vmax.f32 %v4927, 0.0
      %v4960 = vmax.f32 %v4928, 0.0
      %v4961 = vmax.f32 %v4929, 0.0
      %v4962 = vmax.f32 %v4930, 0.0
      %v4963 = vmax.f32 %v4931, 0.0
      %v4964 = vmax.f32 %v4932, 0.0
      %v4965 = vmax.f32 %v4933, 0.0
      %v4966 = vmax.f32 %v4934, 0.0
      %v4967 = vmax.f32 %v4935, 0.0
      %v4968 = vmax.f32 %v4936, 0.0
      %v4969 = vmax.f32 %v4937, 0.0
      %v4970 = vmax.f32 %v4938, 0.0
      %v4971 = vmax.f32 %v4939, 0.0
      %v4972 = vmax.f32 %v4940, 0.0
      %v4973 = vmax.f32 %v4941, 0.0
      %v4974 = vmax.f32 %v4942, 0.0
      %v4975 = vmax.f32 %v4943, 0.0
      %v4976 = vmax.f32 %v4944, 0.0
      %v4977 = vmax.f32 %v4945, 0.0
      %v4978 = vmax.f32 %v4946, 0.0
      %v4979 = vmax.f32 %v4947, 0.0
      %v4980 = vmax.f32 %v4948, 0.0
      %v4981 = vld [vmem:[%s14] sm:$0xff]
      %v4982 = vld [vmem:[%s14 + $0x8] sm:$0xff]
      %v4983 = vld [vmem:[%s14 + $0x10] sm:$0xff]
      %v4984 = vld [vmem:[%s14 + $0x18] sm:$0xff]
      %v4985 = vld [vmem:[%s14 + $0x20] sm:$0xff]
      %v4986 = vld [vmem:[%s14 + $0x28] sm:$0xff]
      %v4987 = vld [vmem:[%s14 + $0x30] sm:$0xff]
      %v4988 = vld [vmem:[%s14 + $0x38] sm:$0xff]
      %v4989 = vld [vmem:[%s14 + $0x40] sm:$0xff]
      %v4990 = vld [vmem:[%s14 + $0x48] sm:$0xff]
      %v4991 = vld [vmem:[%s14 + $0x50] sm:$0xff]
      %v4992 = vld [vmem:[%s14 + $0x58] sm:$0xff]
      %v4993 = vld [vmem:[%s14 + $0x60] sm:$0xff]
      %v4994 = vld [vmem:[%s14 + $0x68] sm:$0xff]
      %v4995 = vld [vmem:[%s14 + $0x70] sm:$0xff]
      %v4996 = vld [vmem:[%s14 + $0x78] sm:$0xff]
      %v4997 = vld [vmem:[%s14 + $0x80] sm:$0xff]
      %v4998 = vld [vmem:[%s14 + $0x88] sm:$0xff]
      %v4999 = vld [vmem:[%s14 + $0x90] sm:$0xff]
      %v5000 = vld [vmem:[%s14 + $0x98] sm:$0xff]
      %v5001 = vld [vmem:[%s14 + $0xa0] sm:$0xff]
      %v5002 = vld [vmem:[%s14 + $0xa8] sm:$0xff]
      %v5003 = vld [vmem:[%s14 + $0xb0] sm:$0xff]
      %v5004 = vld [vmem:[%s14 + $0xb8] sm:$0xff]
      %v5005 = vld [vmem:[%s14 + $0xc0] sm:$0xff]
      %v5006 = vld [vmem:[%s14 + $0xc8] sm:$0xff]
      %v5007 = vld [vmem:[%s14 + $0xd0] sm:$0xff]
      %v5008 = vld [vmem:[%s14 + $0xd8] sm:$0xff]
      %v5009 = vld [vmem:[%s14 + $0xe0] sm:$0xff]
      %v5010 = vld [vmem:[%s14 + $0xe8] sm:$0xff]
      %v5011 = vld [vmem:[%s14 + $0xf0] sm:$0xff]
      %v5012 = vld [vmem:[%s14 + $0xf8] sm:$0xff]
      %v5013 = vld [vmem:[%s14 + $0x100] sm:$0xff]
      %v5014 = vld [vmem:[%s14 + $0x108] sm:$0xff]
      %v5015 = vld [vmem:[%s14 + $0x110] sm:$0xff]
      %v5016 = vld [vmem:[%s14 + $0x118] sm:$0xff]
      %v5017 = vld [vmem:[%s14 + $0x120] sm:$0xff]
      %v5018 = vld [vmem:[%s14 + $0x128] sm:$0xff]
      %v5019 = vld [vmem:[%s14 + $0x130] sm:$0xff]
      %v5020 = vld [vmem:[%s14 + $0x138] sm:$0xff]
      %v5021 = vld [vmem:[%s14 + $0x140] sm:$0xff]
      %v5022 = vld [vmem:[%s14 + $0x148] sm:$0xff]
      %v5023 = vld [vmem:[%s14 + $0x150] sm:$0xff]
      %v5024 = vld [vmem:[%s14 + $0x158] sm:$0xff]
      %v5025 = vld [vmem:[%s14 + $0x160] sm:$0xff]
      %v5026 = vld [vmem:[%s14 + $0x168] sm:$0xff]
      %v5027 = vld [vmem:[%s14 + $0x170] sm:$0xff]
      %v5028 = vld [vmem:[%s14 + $0x178] sm:$0xff]
      %v5029 = vld [vmem:[%s14 + $0x180] sm:$0xff]
      %v5030 = vld [vmem:[%s14 + $0x188] sm:$0xff]
      %v5031 = vld [vmem:[%s14 + $0x190] sm:$0xff]
      %v5032 = vld [vmem:[%s14 + $0x198] sm:$0xff]
      %v5033 = vld [vmem:[%s14 + $0x1a0] sm:$0xff]
      %v5034 = vld [vmem:[%s14 + $0x1a8] sm:$0xff]
      %v5035 = vld [vmem:[%s14 + $0x1b0] sm:$0xff]
      %v5036 = vld [vmem:[%s14 + $0x1b8] sm:$0xff]
      %v5037 = vld [vmem:[%s14 + $0x1c0] sm:$0xff]
      %v5038 = vld [vmem:[%s14 + $0x1c8] sm:$0xff]
      %v5039 = vld [vmem:[%s14 + $0x1d0] sm:$0xff]
      %v5040 = vld [vmem:[%s14 + $0x1d8] sm:$0xff]
      %v5041 = vld [vmem:[%s14 + $0x1e0] sm:$0xff]
      %v5042 = vld [vmem:[%s14 + $0x1e8] sm:$0xff]
      %v5043 = vld [vmem:[%s14 + $0x1f0] sm:$0xff]
      %v5044 = vld [vmem:[%s14 + $0x1f8] sm:$0xff]
      %v5045 = vld [vmem:[%s26] sm:$0x3]
      %v5047 = vlaneseq
      %v5048 = vshrl.u32 %v5047, 7
      %v5049 = vsub.s32 0, %v5048
      %v5050 = vrot.slane %v5045, %v5049
      %v5051 = vlaneseq
      %v5052 = vshrl.u32 %v5051, 7
      %v5053 = vsub.s32 1, %v5052
      %v5054 = vrot.slane %v5045, %v5053
      %5057 = vmatprep.subr.mxu0 %v4982
      %5058 = vmatpush1.msra.mxu0 %v4981
      %5059 = vmatprep.subr.mxu0 %v4984
      %5060 = vmatpush1.msra.mxu0 %v4983
      %5061 = vmatprep.subr.mxu0 %v4986
      %5062 = vmatpush1.msra.mxu0 %v4985
      %5063 = vmatprep.subr.mxu0 %v4988
      %5064 = vmatpush1.msra.mxu0 %v4987
      %5065 = vmatprep.subr.mxu0 %v4990
      %5066 = vmatpush1.msra.mxu0 %v4989
      %5067 = vmatprep.subr.mxu0 %v4992
      %5068 = vmatpush1.msra.mxu0 %v4991
      %5069 = vmatprep.subr.mxu0 %v4994
      %5070 = vmatpush1.msra.mxu0 %v4993
      %5071 = vmatprep.subr.mxu0 %v4996
      %5072 = vmatpush1.msra.mxu0 %v4995
      %5073 = vmatprep.subr.mxu0 %v4998
      %5074 = vmatpush1.msra.mxu0 %v4997
      %5075 = vmatprep.subr.mxu0 %v5000
      %5076 = vmatpush1.msra.mxu0 %v4999
      %5077 = vmatprep.subr.mxu0 %v5002
      %5078 = vmatpush1.msra.mxu0 %v5001
      %5079 = vmatprep.subr.mxu0 %v5004
      %5080 = vmatpush1.msra.mxu0 %v5003
      %5081 = vmatprep.subr.mxu0 %v5006
      %5082 = vmatpush1.msra.mxu0 %v5005
      %5083 = vmatprep.subr.mxu0 %v5008
      %5084 = vmatpush1.msra.mxu0 %v5007
      %5085 = vmatprep.subr.mxu0 %v5010
      %5086 = vmatpush1.msra.mxu0 %v5009
      %5087 = vmatprep.subr.mxu0 %v5012
      %5088 = vmatpush1.msra.mxu0 %v5011
      %5089 = vmatprep.subr.mxu0 %v5014
      %5090 = vmatpush1.msra.mxu0 %v5013
      %5091 = vmatprep.subr.mxu0 %v5016
      %5092 = vmatpush1.msra.mxu0 %v5015
      %5093 = vmatprep.subr.mxu0 %v5018
      %5094 = vmatpush1.msra.mxu0 %v5017
      %5095 = vmatprep.subr.mxu0 %v5020
      %5096 = vmatpush1.msra.mxu0 %v5019
      %5097 = vmatprep.subr.mxu0 %v5022
      %5098 = vmatpush1.msra.mxu0 %v5021
      %5099 = vmatprep.subr.mxu0 %v5024
      %5100 = vmatpush1.msra.mxu0 %v5023
      %5101 = vmatprep.subr.mxu0 %v5026
      %5102 = vmatpush1.msra.mxu0 %v5025
      %5103 = vmatprep.subr.mxu0 %v5028
      %5104 = vmatpush1.msra.mxu0 %v5027
      %5105 = vmatprep.subr.mxu0 %v5030
      %5106 = vmatpush1.msra.mxu0 %v5029
      %5107 = vmatprep.subr.mxu0 %v5032
      %5108 = vmatpush1.msra.mxu0 %v5031
      %5109 = vmatprep.subr.mxu0 %v5034
      %5110 = vmatpush1.msra.mxu0 %v5033
      %5111 = vmatprep.subr.mxu0 %v5036
      %5112 = vmatpush1.msra.mxu0 %v5035
      %5113 = vmatprep.subr.mxu0 %v5038
      %5114 = vmatpush1.msra.mxu0 %v5037
      %5115 = vmatprep.subr.mxu0 %v5040
      %5116 = vmatpush1.msra.mxu0 %v5039
      %5117 = vmatprep.subr.mxu0 %v5042
      %5118 = vmatpush1.msra.mxu0 %v5041
      %5119 = vmatprep.subr.mxu0 %v5044
      %5120 = vmatpush1.msra.mxu0 %v5043
      %5121 = vmatprep.mubr.f32.mxu0 %v4950
      %5122 = vmatmul.mubr.f32.gmra.mrb[0].mxu0 %v4949
      %v5123 = vpop.f32.mrb[0].mxu0
      %v5124 = vadd.f32 %v5050, %v5123
      %v5125 = vpop.f32.mrb[0].mxu0
      %v5126 = vadd.f32 %v5054, %v5125
      %5127 = vmatprep.mubr.f32.mxu0 %v4952
      %5128 = vmatmul.mubr.f32.gmra.mrb[0].mxu0 %v4951
      %v5129 = vpop.f32.mrb[0].mxu0
      %v5130 = vadd.f32 %v5050, %v5129
      %v5131 = vpop.f32.mrb[0].mxu0
      %v5132 = vadd.f32 %v5054, %v5131
      %5133 = vmatprep.mubr.f32.mxu0 %v4954
      %5134 = vmatmul.mubr.f32.gmra.mrb[0].mxu0 %v4953
      %v5135 = vpop.f32.mrb[0].mxu0
      %v5136 = vadd.f32 %v5050, %v5135
      %v5137 = vpop.f32.mrb[0].mxu0
      %v5138 = vadd.f32 %v5054, %v5137
      %5139 = vmatprep.mubr.f32.mxu0 %v4956
      %5140 = vmatmul.mubr.f32.gmra.mrb[0].mxu0 %v4955
      %v5141 = vpop.f32.mrb[0].mxu0
      %v5142 = vadd.f32 %v5050, %v5141
      %v5143 = vpop.f32.mrb[0].mxu0
      %v5144 = vadd.f32 %v5054, %v5143
      %5145 = vmatprep.mubr.f32.mxu0 %v4958
      %5146 = vmatmul.mubr.f32.gmra.mrb[0].mxu0 %v4957
      %v5147 = vpop.f32.mrb[0].mxu0
      %v5148 = vadd.f32 %v5050, %v5147
      %v5149 = vpop.f32.mrb[0].mxu0
      %v5150 = vadd.f32 %v5054, %v5149
      %5151 = vmatprep.mubr.f32.mxu0 %v4960
      %5152 = vmatmul.mubr.f32.gmra.mrb[0].mxu0 %v4959
      %v5153 = vpop.f32.mrb[0].mxu0
      %v5154 = vadd.f32 %v5050, %v5153
      %v5155 = vpop.f32.mrb[0].mxu0
      %v5156 = vadd.f32 %v5054, %v5155
      %5157 = vmatprep.mubr.f32.mxu0 %v4962
      %5158 = vmatmul.mubr.f32.gmra.mrb[0].mxu0 %v4961
      %v5159 = vpop.f32.mrb[0].mxu0
      %v5160 = vadd.f32 %v5050, %v5159
      %v5161 = vpop.f32.mrb[0].mxu0
      %v5162 = vadd.f32 %v5054, %v5161
      %5163 = vmatprep.mubr.f32.mxu0 %v4964
      %5164 = vmatmul.mubr.f32.gmra.mrb[0].mxu0 %v4963
      %v5165 = vpop.f32.mrb[0].mxu0
      %v5166 = vadd.f32 %v5050, %v5165
      %v5167 = vpop.f32.mrb[0].mxu0
      %v5168 = vadd.f32 %v5054, %v5167
      %5169 = vmatprep.mubr.f32.mxu0 %v4966
      %5170 = vmatmul.mubr.f32.gmra.mrb[0].mxu0 %v4965
      %v5171 = vpop.f32.mrb[0].mxu0
      %v5172 = vadd.f32 %v5050, %v5171
      %v5173 = vpop.f32.mrb[0].mxu0
      %v5174 = vadd.f32 %v5054, %v5173
      %5175 = vmatprep.mubr.f32.mxu0 %v4968
      %5176 = vmatmul.mubr.f32.gmra.mrb[0].mxu0 %v4967
      %v5177 = vpop.f32.mrb[0].mxu0
      %v5178 = vadd.f32 %v5050, %v5177
      %v5179 = vpop.f32.mrb[0].mxu0
      %v5180 = vadd.f32 %v5054, %v5179
      %5181 = vmatprep.mubr.f32.mxu0 %v4970
      %5182 = vmatmul.mubr.f32.gmra.mrb[0].mxu0 %v4969
      %v5183 = vpop.f32.mrb[0].mxu0
      %v5184 = vadd.f32 %v5050, %v5183
      %v5185 = vpop.f32.mrb[0].mxu0
      %v5186 = vadd.f32 %v5054, %v5185
      %5187 = vmatprep.mubr.f32.mxu0 %v4972
      %5188 = vmatmul.mubr.f32.gmra.mrb[0].mxu0 %v4971
      %v5189 = vpop.f32.mrb[0].mxu0
      %v5190 = vadd.f32 %v5050, %v5189
      %v5191 = vpop.f32.mrb[0].mxu0
      %v5192 = vadd.f32 %v5054, %v5191
      %5193 = vmatprep.mubr.f32.mxu0 %v4974
      %5194 = vmatmul.mubr.f32.gmra.mrb[0].mxu0 %v4973
      %v5195 = vpop.f32.mrb[0].mxu0
      %v5196 = vadd.f32 %v5050, %v5195
      %v5197 = vpop.f32.mrb[0].mxu0
      %v5198 = vadd.f32 %v5054, %v5197
      %5199 = vmatprep.mubr.f32.mxu0 %v4976
      %5200 = vmatmul.mubr.f32.gmra.mrb[0].mxu0 %v4975
      %v5201 = vpop.f32.mrb[0].mxu0
      %v5202 = vadd.f32 %v5050, %v5201
      %v5203 = vpop.f32.mrb[0].mxu0
      %v5204 = vadd.f32 %v5054, %v5203
      %5205 = vmatprep.mubr.f32.mxu0 %v4978
      %5206 = vmatmul.mubr.f32.gmra.mrb[0].mxu0 %v4977
      %v5207 = vpop.f32.mrb[0].mxu0
      %v5208 = vadd.f32 %v5050, %v5207
      %v5209 = vpop.f32.mrb[0].mxu0
      %v5210 = vadd.f32 %v5054, %v5209
      %5211 = vmatprep.mubr.f32.mxu0 %v4980
      %5212 = vmatmul.mubr.f32.gmra.mrb[0].mxu0 %v4979
      %v5213 = vpop.f32.mrb[0].mxu0
      %v5214 = vadd.f32 %v5050, %v5213
      %v5215 = vpop.f32.mrb[0].mxu0
      %v5216 = vadd.f32 %v5054, %v5215
      %5217 = vdwg.mxu0
      %v5218 = vmax.f32 %v5124, 0.0
      %v5219 = vmax.f32 %v5126, 0.0
      %v5220 = vmax.f32 %v5130, 0.0
      %v5221 = vmax.f32 %v5132, 0.0
      %v5222 = vmax.f32 %v5136, 0.0
      %v5223 = vmax.f32 %v5138, 0.0
      %v5224 = vmax.f32 %v5142, 0.0
      %v5225 = vmax.f32 %v5144, 0.0
      %v5226 = vmax.f32 %v5148, 0.0
      %v5227 = vmax.f32 %v5150, 0.0
      %v5228 = vmax.f32 %v5154, 0.0
      %v5229 = vmax.f32 %v5156, 0.0
      %v5230 = vmax.f32 %v5160, 0.0
      %v5231 = vmax.f32 %v5162, 0.0
      %v5232 = vmax.f32 %v5166, 0.0
      %v5233 = vmax.f32 %v5168, 0.0
      %v5234 = vmax.f32 %v5172, 0.0
      %v5235 = vmax.f32 %v5174, 0.0
      %v5236 = vmax.f32 %v5178, 0.0
      %v5237 = vmax.f32 %v5180, 0.0
      %v5238 = vmax.f32 %v5184, 0.0
      %v5239 = vmax.f32 %v5186, 0.0
      %v5240 = vmax.f32 %v5190, 0.0
      %v5241 = vmax.f32 %v5192, 0.0
      %v5242 = vmax.f32 %v5196, 0.0
      %v5243 = vmax.f32 %v5198, 0.0
      %v5244 = vmax.f32 %v5202, 0.0
      %v5245 = vmax.f32 %v5204, 0.0
      %v5246 = vmax.f32 %v5208, 0.0
      %v5247 = vmax.f32 %v5210, 0.0
      %v5248 = vmax.f32 %v5214, 0.0
      %v5249 = vmax.f32 %v5216, 0.0
      %v5250 = vld [vmem:[%s15] sm:$0xff]
      %v5251 = vld [vmem:[%s15 + $0x8] sm:$0xff]
      %v5252 = vld [vmem:[%s15 + $0x10] sm:$0xff]
      %v5253 = vld [vmem:[%s15 + $0x18] sm:$0xff]
      %v5254 = vld [vmem:[%s15 + $0x20] sm:$0xff]
      %v5255 = vld [vmem:[%s15 + $0x28] sm:$0xff]
      %v5256 = vld [vmem:[%s15 + $0x30] sm:$0xff]
      %v5257 = vld [vmem:[%s15 + $0x38] sm:$0xff]
      %v5258 = vld [vmem:[%s15 + $0x40] sm:$0xff]
      %v5259 = vld [vmem:[%s15 + $0x48] sm:$0xff]
      %v5260 = vld [vmem:[%s15 + $0x50] sm:$0xff]
      %v5261 = vld [vmem:[%s15 + $0x58] sm:$0xff]
      %v5262 = vld [vmem:[%s15 + $0x60] sm:$0xff]
      %v5263 = vld [vmem:[%s15 + $0x68] sm:$0xff]
      %v5264 = vld [vmem:[%s15 + $0x70] sm:$0xff]
      %v5265 = vld [vmem:[%s15 + $0x78] sm:$0xff]
      %v5266 = vld [vmem:[%s15 + $0x80] sm:$0xff]
      %v5267 = vld [vmem:[%s15 + $0x88] sm:$0xff]
      %v5268 = vld [vmem:[%s15 + $0x90] sm:$0xff]
      %v5269 = vld [vmem:[%s15 + $0x98] sm:$0xff]
      %v5270 = vld [vmem:[%s15 + $0xa0] sm:$0xff]
      %v5271 = vld [vmem:[%s15 + $0xa8] sm:$0xff]
      %v5272 = vld [vmem:[%s15 + $0xb0] sm:$0xff]
      %v5273 = vld [vmem:[%s15 + $0xb8] sm:$0xff]
      %v5274 = vld [vmem:[%s15 + $0xc0] sm:$0xff]
      %v5275 = vld [vmem:[%s15 + $0xc8] sm:$0xff]
      %v5276 = vld [vmem:[%s15 + $0xd0] sm:$0xff]
      %v5277 = vld [vmem:[%s15 + $0xd8] sm:$0xff]
      %v5278 = vld [vmem:[%s15 + $0xe0] sm:$0xff]
      %v5279 = vld [vmem:[%s15 + $0xe8] sm:$0xff]
      %v5280 = vld [vmem:[%s15 + $0xf0] sm:$0xff]
      %v5281 = vld [vmem:[%s15 + $0xf8] sm:$0xff]
      %v5282 = vld [vmem:[%s27] sm:$0x1]
      %v5284 = vlaneseq
      %v5285 = vshrl.u32 %v5284, 7
      %v5286 = vsub.s32 0, %v5285
      %v5287 = vrot.slane %v5282, %v5286
      %5289 = vmatprep.subr.mxu0 0.0
      %5290 = vmatpush1.msra.mxu0 %v5250
      %5291 = vmatprep.subr.mxu0 0.0
      %5292 = vmatpush1.msra.mxu0 %v5251
      %5293 = vmatprep.subr.mxu0 0.0
      %5294 = vmatpush1.msra.mxu0 %v5252
      %5295 = vmatprep.subr.mxu0 0.0
      %5296 = vmatpush1.msra.mxu0 %v5253
      %5297 = vmatprep.subr.mxu0 0.0
      %5298 = vmatpush1.msra.mxu0 %v5254
      %5299 = vmatprep.subr.mxu0 0.0
      %5300 = vmatpush1.msra.mxu0 %v5255
      %5301 = vmatprep.subr.mxu0 0.0
      %5302 = vmatpush1.msra.mxu0 %v5256
      %5303 = vmatprep.subr.mxu0 0.0
      %5304 = vmatpush1.msra.mxu0 %v5257
      %5305 = vmatprep.subr.mxu0 0.0
      %5306 = vmatpush1.msra.mxu0 %v5258
      %5307 = vmatprep.subr.mxu0 0.0
      %5308 = vmatpush1.msra.mxu0 %v5259
      %5309 = vmatprep.subr.mxu0 0.0
      %5310 = vmatpush1.msra.mxu0 %v5260
      %5311 = vmatprep.subr.mxu0 0.0
      %5312 = vmatpush1.msra.mxu0 %v5261
      %5313 = vmatprep.subr.mxu0 0.0
      %5314 = vmatpush1.msra.mxu0 %v5262
      %5315 = vmatprep.subr.mxu0 0.0
      %5316 = vmatpush1.msra.mxu0 %v5263
      %5317 = vmatprep.subr.mxu0 0.0
      %5318 = vmatpush1.msra.mxu0 %v5264
      %5319 = vmatprep.subr.mxu0 0.0
      %5320 = vmatpush1.msra.mxu0 %v5265
      %5321 = vmatprep.subr.mxu0 0.0
      %5322 = vmatpush1.msra.mxu0 %v5266
      %5323 = vmatprep.subr.mxu0 0.0
      %5324 = vmatpush1.msra.mxu0 %v5267
      %5325 = vmatprep.subr.mxu0 0.0
      %5326 = vmatpush1.msra.mxu0 %v5268
      %5327 = vmatprep.subr.mxu0 0.0
      %5328 = vmatpush1.msra.mxu0 %v5269
      %5329 = vmatprep.subr.mxu0 0.0
      %5330 = vmatpush1.msra.mxu0 %v5270
      %5331 = vmatprep.subr.mxu0 0.0
      %5332 = vmatpush1.msra.mxu0 %v5271
      %5333 = vmatprep.subr.mxu0 0.0
      %5334 = vmatpush1.msra.mxu0 %v5272
      %5335 = vmatprep.subr.mxu0 0.0
      %5336 = vmatpush1.msra.mxu0 %v5273
      %5337 = vmatprep.subr.mxu0 0.0
      %5338 = vmatpush1.msra.mxu0 %v5274
      %5339 = vmatprep.subr.mxu0 0.0
      %5340 = vmatpush1.msra.mxu0 %v5275
      %5341 = vmatprep.subr.mxu0 0.0
      %5342 = vmatpush1.msra.mxu0 %v5276
      %5343 = vmatprep.subr.mxu0 0.0
      %5344 = vmatpush1.msra.mxu0 %v5277
      %5345 = vmatprep.subr.mxu0 0.0
      %5346 = vmatpush1.msra.mxu0 %v5278
      %5347 = vmatprep.subr.mxu0 0.0
      %5348 = vmatpush1.msra.mxu0 %v5279
      %5349 = vmatprep.subr.mxu0 0.0
      %5350 = vmatpush1.msra.mxu0 %v5280
      %5351 = vmatprep.subr.mxu0 0.0
      %5352 = vmatpush1.msra.mxu0 %v5281
      %5353 = vmatprep.mubr.f32.mxu0 %v5219
      %5354 = vmatmul.mubr.f32.gmra.mrb[0].mxu0 %v5218
      %v5355 = vpop.f32.mrb[0].mxu0
      %v5356 = vadd.f32 %v5287, %v5355
      %v5357 = vpop.f32.mrb[0].mxu0
      %5358 = vmatprep.mubr.f32.mxu0 %v5221
      %5359 = vmatmul.mubr.f32.gmra.mrb[0].mxu0 %v5220
      %v5360 = vpop.f32.mrb[0].mxu0
      %v5361 = vadd.f32 %v5287, %v5360
      %v5362 = vpop.f32.mrb[0].mxu0
      %5363 = vmatprep.mubr.f32.mxu0 %v5223
      %5364 = vmatmul.mubr.f32.gmra.mrb[0].mxu0 %v5222
      %v5365 = vpop.f32.mrb[0].mxu0
      %v5366 = vadd.f32 %v5287, %v5365
      %v5367 = vpop.f32.mrb[0].mxu0
      %5368 = vmatprep.mubr.f32.mxu0 %v5225
      %5369 = vmatmul.mubr.f32.gmra.mrb[0].mxu0 %v5224
      %v5370 = vpop.f32.mrb[0].mxu0
      %v5371 = vadd.f32 %v5287, %v5370
      %v5372 = vpop.f32.mrb[0].mxu0
      %5373 = vmatprep.mubr.f32.mxu0 %v5227
      %5374 = vmatmul.mubr.f32.gmra.mrb[0].mxu0 %v5226
      %v5375 = vpop.f32.mrb[0].mxu0
      %v5376 = vadd.f32 %v5287, %v5375
      %v5377 = vpop.f32.mrb[0].mxu0
      %5378 = vmatprep.mubr.f32.mxu0 %v5229
      %5379 = vmatmul.mubr.f32.gmra.mrb[0].mxu0 %v5228
      %v5380 = vpop.f32.mrb[0].mxu0
      %v5381 = vadd.f32 %v5287, %v5380
      %v5382 = vpop.f32.mrb[0].mxu0
      %5383 = vmatprep.mubr.f32.mxu0 %v5231
      %5384 = vmatmul.mubr.f32.gmra.mrb[0].mxu0 %v5230
      %v5385 = vpop.f32.mrb[0].mxu0
      %v5386 = vadd.f32 %v5287, %v5385
      %v5387 = vpop.f32.mrb[0].mxu0
      %5388 = vmatprep.mubr.f32.mxu0 %v5233
      %5389 = vmatmul.mubr.f32.gmra.mrb[0].mxu0 %v5232
      %v5390 = vpop.f32.mrb[0].mxu0
      %v5391 = vadd.f32 %v5287, %v5390
      %v5392 = vpop.f32.mrb[0].mxu0
      %5393 = vmatprep.mubr.f32.mxu0 %v5235
      %5394 = vmatmul.mubr.f32.gmra.mrb[0].mxu0 %v5234
      %v5395 = vpop.f32.mrb[0].mxu0
      %v5396 = vadd.f32 %v5287, %v5395
      %v5397 = vpop.f32.mrb[0].mxu0
      %5398 = vmatprep.mubr.f32.mxu0 %v5237
      %5399 = vmatmul.mubr.f32.gmra.mrb[0].mxu0 %v5236
      %v5400 = vpop.f32.mrb[0].mxu0
      %v5401 = vadd.f32 %v5287, %v5400
      %v5402 = vpop.f32.mrb[0].mxu0
      %5403 = vmatprep.mubr.f32.mxu0 %v5239
      %5404 = vmatmul.mubr.f32.gmra.mrb[0].mxu0 %v5238
      %v5405 = vpop.f32.mrb[0].mxu0
      %v5406 = vadd.f32 %v5287, %v5405
      %v5407 = vpop.f32.mrb[0].mxu0
      %5408 = vmatprep.mubr.f32.mxu0 %v5241
      %5409 = vmatmul.mubr.f32.gmra.mrb[0].mxu0 %v5240
      %v5410 = vpop.f32.mrb[0].mxu0
      %v5411 = vadd.f32 %v5287, %v5410
      %v5412 = vpop.f32.mrb[0].mxu0
      %5413 = vmatprep.mubr.f32.mxu0 %v5243
      %5414 = vmatmul.mubr.f32.gmra.mrb[0].mxu0 %v5242
      %v5415 = vpop.f32.mrb[0].mxu0
      %v5416 = vadd.f32 %v5287, %v5415
      %v5417 = vpop.f32.mrb[0].mxu0
      %5418 = vmatprep.mubr.f32.mxu0 %v5245
      %5419 = vmatmul.mubr.f32.gmra.mrb[0].mxu0 %v5244
      %v5420 = vpop.f32.mrb[0].mxu0
      %v5421 = vadd.f32 %v5287, %v5420
      %v5422 = vpop.f32.mrb[0].mxu0
      %5423 = vmatprep.mubr.f32.mxu0 %v5247
      %5424 = vmatmul.mubr.f32.gmra.mrb[0].mxu0 %v5246
      %v5425 = vpop.f32.mrb[0].mxu0
      %v5426 = vadd.f32 %v5287, %v5425
      %v5427 = vpop.f32.mrb[0].mxu0
      %5428 = vmatprep.mubr.f32.mxu0 %v5249
      %5429 = vmatmul.mubr.f32.gmra.mrb[0].mxu0 %v5248
      %v5430 = vpop.f32.mrb[0].mxu0
      %v5431 = vadd.f32 %v5287, %v5430
      %v5432 = vpop.f32.mrb[0].mxu0
      %5433 = vdwg.mxu0
      %5450 = vrot.lane.b32.xlu0 %v3537, 32
      %v5451 = vpop.permute.xlu0 %5450
      %5452 = vrot.lane.b32.xlu0 %v3542, 32
      %v5453 = vpop.permute.xlu0 %5452
      %5454 = vrot.lane.b32.xlu0 %v3547, 32
      %v5455 = vpop.permute.xlu0 %5454
      %5456 = vrot.lane.b32.xlu0 %v3552, 32
      %v5457 = vpop.permute.xlu0 %5456
      %5458 = vrot.lane.b32.xlu0 %v3557, 32
      %v5459 = vpop.permute.xlu0 %5458
      %5460 = vrot.lane.b32.xlu0 %v3562, 32
      %v5461 = vpop.permute.xlu0 %5460
      %5462 = vrot.lane.b32.xlu0 %v3567, 32
      %v5463 = vpop.permute.xlu0 %5462
      %5464 = vrot.lane.b32.xlu0 %v3572, 32
      %v5465 = vpop.permute.xlu0 %5464
      %5466 = vrot.lane.b32.xlu0 %v3577, 32
      %v5467 = vpop.permute.xlu0 %5466
      %5468 = vrot.lane.b32.xlu0 %v3582, 32
      %v5469 = vpop.permute.xlu0 %5468
      %5470 = vrot.lane.b32.xlu0 %v3587, 32
      %v5471 = vpop.permute.xlu0 %5470
      %5472 = vrot.lane.b32.xlu0 %v3592, 32
      %v5473 = vpop.permute.xlu0 %5472
      %5474 = vrot.lane.b32.xlu0 %v3597, 32
      %v5475 = vpop.permute.xlu0 %5474
      %5476 = vrot.lane.b32.xlu0 %v3602, 32
      %v5477 = vpop.permute.xlu0 %5476
      %5478 = vrot.lane.b32.xlu0 %v3607, 32
      %v5479 = vpop.permute.xlu0 %5478
      %5480 = vrot.lane.b32.xlu0 %v3612, 32
      %v5481 = vpop.permute.xlu0 %5480
      %5498 = vrot.lane.b32.xlu0 %v3743, 72
      %v5499 = vpop.permute.xlu0 %5498
      %5500 = vrot.lane.b32.xlu0 %v3744, 72
      %v5501 = vpop.permute.xlu0 %5500
      %5502 = vrot.lane.b32.xlu0 %v3745, 72
      %v5503 = vpop.permute.xlu0 %5502
      %5504 = vrot.lane.b32.xlu0 %v3746, 72
      %v5505 = vpop.permute.xlu0 %5504
      %5506 = vrot.lane.b32.xlu0 %v3747, 72
      %v5507 = vpop.permute.xlu0 %5506
      %5508 = vrot.lane.b32.xlu0 %v3748, 72
      %v5509 = vpop.permute.xlu0 %5508
      %5510 = vrot.lane.b32.xlu0 %v3749, 72
      %v5511 = vpop.permute.xlu0 %5510
      %5512 = vrot.lane.b32.xlu0 %v3750, 72
      %v5513 = vpop.permute.xlu0 %5512
      %5514 = vrot.lane.b32.xlu0 %v3751, 72
      %v5515 = vpop.permute.xlu0 %5514
      %5516 = vrot.lane.b32.xlu0 %v3752, 72
      %v5517 = vpop.permute.xlu0 %5516
      %5518 = vrot.lane.b32.xlu0 %v3753, 72
      %v5519 = vpop.permute.xlu0 %5518
      %5520 = vrot.lane.b32.xlu0 %v3754, 72
      %v5521 = vpop.permute.xlu0 %5520
      %5522 = vrot.lane.b32.xlu0 %v3755, 72
      %v5523 = vpop.permute.xlu0 %5522
      %5524 = vrot.lane.b32.xlu0 %v3756, 72
      %v5525 = vpop.permute.xlu0 %5524
      %5526 = vrot.lane.b32.xlu0 %v3757, 72
      %v5527 = vpop.permute.xlu0 %5526
      %5528 = vrot.lane.b32.xlu0 %v3758, 72
      %v5529 = vpop.permute.xlu0 %5528
      %5546 = vrot.lane.b32.xlu0 %v4642, 68
      %v5547 = vpop.permute.xlu0 %5546
      %5548 = vrot.lane.b32.xlu0 %v4643, 68
      %v5549 = vpop.permute.xlu0 %5548
      %5550 = vrot.lane.b32.xlu0 %v4644, 68
      %v5551 = vpop.permute.xlu0 %5550
      %5552 = vrot.lane.b32.xlu0 %v4645, 68
      %v5553 = vpop.permute.xlu0 %5552
      %5554 = vrot.lane.b32.xlu0 %v4646, 68
      %v5555 = vpop.permute.xlu0 %5554
      %5556 = vrot.lane.b32.xlu0 %v4647, 68
      %v5557 = vpop.permute.xlu0 %5556
      %5558 = vrot.lane.b32.xlu0 %v4648, 68
      %v5559 = vpop.permute.xlu0 %5558
      %5560 = vrot.lane.b32.xlu0 %v4649, 68
      %v5561 = vpop.permute.xlu0 %5560
      %5562 = vrot.lane.b32.xlu0 %v4650, 68
      %v5563 = vpop.permute.xlu0 %5562
      %5564 = vrot.lane.b32.xlu0 %v4651, 68
      %v5565 = vpop.permute.xlu0 %5564
      %5566 = vrot.lane.b32.xlu0 %v4652, 68
      %v5567 = vpop.permute.xlu0 %5566
      %5568 = vrot.lane.b32.xlu0 %v4653, 68
      %v5569 = vpop.permute.xlu0 %5568
      %5570 = vrot.lane.b32.xlu0 %v4654, 68
      %v5571 = vpop.permute.xlu0 %5570
      %5572 = vrot.lane.b32.xlu0 %v4655, 68
      %v5573 = vpop.permute.xlu0 %5572
      %5574 = vrot.lane.b32.xlu0 %v4656, 68
      %v5575 = vpop.permute.xlu0 %5574
      %5576 = vrot.lane.b32.xlu0 %v4657, 68
      %v5577 = vpop.permute.xlu0 %5576
      %5610 = vrot.lane.b32.xlu0 %v5356, 116
      %v5611 = vpop.permute.xlu0 %5610
      %5612 = vrot.lane.b32.xlu0 %v5361, 116
      %v5613 = vpop.permute.xlu0 %5612
      %5614 = vrot.lane.b32.xlu0 %v5366, 116
      %v5615 = vpop.permute.xlu0 %5614
      %5616 = vrot.lane.b32.xlu0 %v5371, 116
      %v5617 = vpop.permute.xlu0 %5616
      %5618 = vrot.lane.b32.xlu0 %v5376, 116
      %v5619 = vpop.permute.xlu0 %5618
      %5620 = vrot.lane.b32.xlu0 %v5381, 116
      %v5621 = vpop.permute.xlu0 %5620
      %5622 = vrot.lane.b32.xlu0 %v5386, 116
      %v5623 = vpop.permute.xlu0 %5622
      %5624 = vrot.lane.b32.xlu0 %v5391, 116
      %v5625 = vpop.permute.xlu0 %5624
      %5626 = vrot.lane.b32.xlu0 %v5396, 116
      %v5627 = vpop.permute.xlu0 %5626
      %5628 = vrot.lane.b32.xlu0 %v5401, 116
      %v5629 = vpop.permute.xlu0 %5628
      %5630 = vrot.lane.b32.xlu0 %v5406, 116
      %v5631 = vpop.permute.xlu0 %5630
      %5632 = vrot.lane.b32.xlu0 %v5411, 116
      %v5633 = vpop.permute.xlu0 %5632
      %5634 = vrot.lane.b32.xlu0 %v5416, 116
      %v5635 = vpop.permute.xlu0 %5634
      %5636 = vrot.lane.b32.xlu0 %v5421, 116
      %v5637 = vpop.permute.xlu0 %5636
      %5638 = vrot.lane.b32.xlu0 %v5426, 116
      %v5639 = vpop.permute.xlu0 %5638
      %5640 = vrot.lane.b32.xlu0 %v5431, 116
      %v5641 = vpop.permute.xlu0 %5640
      %vm5658 = vcmask 261120
      %v5659 = vsel %vm5658, %v3213, %v5451
      %v5660 = vsel %vm5658, %v3218, %v5453
      %v5661 = vsel %vm5658, %v3223, %v5455
      %v5662 = vsel %vm5658, %v3228, %v5457
      %v5663 = vsel %vm5658, %v3233, %v5459
      %v5664 = vsel %vm5658, %v3238, %v5461
      %v5665 = vsel %vm5658, %v3243, %v5463
      %v5666 = vsel %vm5658, %v3248, %v5465
      %v5667 = vsel %vm5658, %v3253, %v5467
      %v5668 = vsel %vm5658, %v3258, %v5469
      %v5669 = vsel %vm5658, %v3263, %v5471
      %v5670 = vsel %vm5658, %v3268, %v5473
      %v5671 = vsel %vm5658, %v3273, %v5475
      %v5672 = vsel %vm5658, %v3278, %v5477
      %v5673 = vsel %vm5658, %v3283, %v5479
      %v5674 = vsel %vm5658, %v3288, %v5481
      %vm5675 = vcmask 588800
      %v5676 = vsel %vm5675, %v5659, %v5499
      %v5677 = vsel %vm5675, %v5660, %v5501
      %v5678 = vsel %vm5675, %v5661, %v5503
      %v5679 = vsel %vm5675, %v5662, %v5505
      %v5680 = vsel %vm5675, %v5663, %v5507
      %v5681 = vsel %vm5675, %v5664, %v5509
      %v5682 = vsel %vm5675, %v5665, %v5511
      %v5683 = vsel %vm5675, %v5666, %v5513
      %v5684 = vsel %vm5675, %v5667, %v5515
      %v5685 = vsel %vm5675, %v5668, %v5517
      %v5686 = vsel %vm5675, %v5669, %v5519
      %v5687 = vsel %vm5675, %v5670, %v5521
      %v5688 = vsel %vm5675, %v5671, %v5523
      %v5689 = vsel %vm5675, %v5672, %v5525
      %v5690 = vsel %vm5675, %v5673, %v5527
      %v5691 = vsel %vm5675, %v5674, %v5529
      %vm5692 = vcmask 752640
      %v5693 = vsel %vm5692, %v5676, %v5547
      %v5694 = vsel %vm5692, %v5677, %v5549
      %v5695 = vsel %vm5692, %v5678, %v5551
      %v5696 = vsel %vm5692, %v5679, %v5553
      %v5697 = vsel %vm5692, %v5680, %v5555
      %v5698 = vsel %vm5692, %v5681, %v5557
      %v5699 = vsel %vm5692, %v5682, %v5559
      %v5700 = vsel %vm5692, %v5683, %v5561
      %v5701 = vsel %vm5692, %v5684, %v5563
      %v5702 = vsel %vm5692, %v5685, %v5565
      %v5703 = vsel %vm5692, %v5686, %v5567
      %v5704 = vsel %vm5692, %v5687, %v5569
      %v5705 = vsel %vm5692, %v5688, %v5571
      %v5706 = vsel %vm5692, %v5689, %v5573
      %v5707 = vsel %vm5692, %v5690, %v5575
      %v5708 = vsel %vm5692, %v5691, %v5577
      %vm5709 = vcmask 949248
      %v5710 = vsel %vm5709, %v5693, %v5611
      %v5711 = vsel %vm5709, %v5694, %v5613
      %v5712 = vsel %vm5709, %v5695, %v5615
      %v5713 = vsel %vm5709, %v5696, %v5617
      %v5714 = vsel %vm5709, %v5697, %v5619
      %v5715 = vsel %vm5709, %v5698, %v5621
      %v5716 = vsel %vm5709, %v5699, %v5623
      %v5717 = vsel %vm5709, %v5700, %v5625
      %v5718 = vsel %vm5709, %v5701, %v5627
      %v5719 = vsel %vm5709, %v5702, %v5629
      %v5720 = vsel %vm5709, %v5703, %v5631
      %v5721 = vsel %vm5709, %v5704, %v5633
      %v5722 = vsel %vm5709, %v5705, %v5635
      %v5723 = vsel %vm5709, %v5706, %v5637
      %v5724 = vsel %vm5709, %v5707, %v5639
      %v5725 = vsel %vm5709, %v5708, %v5641
      %v5726 = vsel %vm1896, %v5611, 0.0
      %v5727 = vsel %vm1896, %v5613, 0.0
      %v5728 = vsel %vm1896, %v5615, 0.0
      %v5729 = vsel %vm1896, %v5617, 0.0
      %v5730 = vsel %vm1896, %v5619, 0.0
      %v5731 = vsel %vm1896, %v5621, 0.0
      %v5732 = vsel %vm1896, %v5623, 0.0
      %v5733 = vsel %vm1896, %v5625, 0.0
      %v5734 = vsel %vm1896, %v5627, 0.0
      %v5735 = vsel %vm1896, %v5629, 0.0
      %v5736 = vsel %vm1896, %v5631, 0.0
      %v5737 = vsel %vm1896, %v5633, 0.0
      %v5738 = vsel %vm1896, %v5635, 0.0
      %v5739 = vsel %vm1896, %v5637, 0.0
      %v5740 = vsel %vm1896, %v5639, 0.0
      %v5741 = vsel %vm1896, %v5641, 0.0
      %5742 = vst [vmem:[%s915] sm:$0xff] %v5710
      %5743 = vst [vmem:[%s915 + $0x8] sm:$0xff] %v5726
      %5744 = vst [vmem:[%s915 + $0x10] sm:$0xff] %v5711
      %5745 = vst [vmem:[%s915 + $0x18] sm:$0xff] %v5727
      %5746 = vst [vmem:[%s915 + $0x20] sm:$0xff] %v5712
      %5747 = vst [vmem:[%s915 + $0x28] sm:$0xff] %v5728
      %5748 = vst [vmem:[%s915 + $0x30] sm:$0xff] %v5713
      %5749 = vst [vmem:[%s915 + $0x38] sm:$0xff] %v5729
      %5750 = vst [vmem:[%s915 + $0x40] sm:$0xff] %v5714
      %5751 = vst [vmem:[%s915 + $0x48] sm:$0xff] %v5730
      %5752 = vst [vmem:[%s915 + $0x50] sm:$0xff] %v5715
      %5753 = vst [vmem:[%s915 + $0x58] sm:$0xff] %v5731
      %5754 = vst [vmem:[%s915 + $0x60] sm:$0xff] %v5716
      %5755 = vst [vmem:[%s915 + $0x68] sm:$0xff] %v5732
      %5756 = vst [vmem:[%s915 + $0x70] sm:$0xff] %v5717
      %5757 = vst [vmem:[%s915 + $0x78] sm:$0xff] %v5733
      %5758 = vst [vmem:[%s915 + $0x80] sm:$0xff] %v5718
      %5759 = vst [vmem:[%s915 + $0x88] sm:$0xff] %v5734
      %5760 = vst [vmem:[%s915 + $0x90] sm:$0xff] %v5719
      %5761 = vst [vmem:[%s915 + $0x98] sm:$0xff] %v5735
      %5762 = vst [vmem:[%s915 + $0xa0] sm:$0xff] %v5720
      %5763 = vst [vmem:[%s915 + $0xa8] sm:$0xff] %v5736
      %5764 = vst [vmem:[%s915 + $0xb0] sm:$0xff] %v5721
      %5765 = vst [vmem:[%s915 + $0xb8] sm:$0xff] %v5737
      %5766 = vst [vmem:[%s915 + $0xc0] sm:$0xff] %v5722
      %5767 = vst [vmem:[%s915 + $0xc8] sm:$0xff] %v5738
      %5768 = vst [vmem:[%s915 + $0xd0] sm:$0xff] %v5723
      %5769 = vst [vmem:[%s915 + $0xd8] sm:$0xff] %v5739
      %5770 = vst [vmem:[%s915 + $0xe0] sm:$0xff] %v5724
      %5771 = vst [vmem:[%s915 + $0xe8] sm:$0xff] %v5740
      %5772 = vst [vmem:[%s915 + $0xf0] sm:$0xff] %v5725
      %5773 = vst [vmem:[%s915 + $0xf8] sm:$0xff] %v5741
      %s5774 = smul.u32 16, %s39
      %p5775 = scmp.lt.s32.totalorder %s5774, 31
      %s5776 = scalar_select %p5775, %s5774, 31
      %s5777 = smul.addr %s5776, 2
      %s5778 = smul.addr %s5777, 8
      %s5779 = scalar_lea.vmem %s28, %s5778
      // Predicated region
      $region133: #{rssm_forward.1} parent=131 // pred_check
        %p5780 = pneg %p665
      $region134: #{rssm_forward.1} parent=131 // pred_check_branch
        %5782 = sbr.rel (%p5780) target = $region136
      $region135: #{rssm_forward.1} parent=131 // pred_region
        %s5783 = smul.u32 16, %s39
      $region136: #{rssm_forward.1} parent=131 // pred_fallthru
        _
    $region132: #{rssm_forward.1} parent=5 // pred_fallthru
      _
    %p5784 = scmp.le.s32.totalorder 2, %s34
    // Predicated region
    $region137: #{rssm_forward.1} parent=5 // pred_check
      %p5785 = pneg %p5784
    $region138: #{rssm_forward.1} parent=5 // pred_check_branch
      %5787 = sbr.rel (%p5785) target = $region140
    $region139: #{rssm_forward.1} parent=5 // pred_region
      %s5788 = ssub.s32 %s34, 2
      // Predicated region
      $region141: #{rssm_forward.1} parent=139 // pred_check
        %p5789 = pneg %p671
      $region142: #{rssm_forward.1} parent=139 // pred_check_branch
        %5791 = sbr.rel (%p5789) target = $region144
      $region143: #{rssm_forward.1} parent=139 // pred_region
        %s5792 = smul.u32 16, %s40
        %p5793 = scmp.lt.s32.totalorder %s5792, 31
        %s5794 = scalar_select %p5793, %s5792, 31
        %s5795 = smul.addr %s5794, 2
        %s5796 = smul.addr %s5795, 8
        %s5797 = scalar_lea.vmem %s28, %s5796
      $region144: #{rssm_forward.1} parent=139 // pred_fallthru
        _
    $region140: #{rssm_forward.1} parent=5 // pred_fallthru
      _
  $region6: #{rssm_forward.1} parent=0 // loop_footer
    %s38 = sadd.s32 1, %s34
  $region7: #{rssm_forward.1} parent=0 // loop_footer_branch
    %33 = sbr.rel target = $region3
  $region8: #{rssm_forward.1} parent=0 // loop_exit
    _

</llo_original>
